<compile_context>
chip_gen: v6e
topology: v6e:2x2x1
jax: 0.10.0
libtpu: 0.0.40
codegen_flags: <defaults>
</compile_context>

<pallas_src>
import functools
import math

import jax
import jax.numpy as jnp
from jax.experimental import pallas as pl
from jax.experimental.pallas import tpu as pltpu


def _time_kernel_body(t_ref, w_ref, b_ref, o_ref, *, norm):
    # t_ref: (TR, k_dim)  packed time rows (zero-padded contraction cols)
    # w_ref: (k_dim, width) block-diagonal expansion of the interleaved weight
    # b_ref: (1, width)     tiled interleaved bias (+pi/2 on odd lanes)
    # o_ref: (TR, width)    lane-dense output slab
    phase = jax.lax.dot_general(
        t_ref[...], w_ref[...],
        dimension_numbers=(((1,), (0,)), ((), ())),
        preferred_element_type=jnp.float32,
        precision=jax.lax.Precision.HIGHEST,  # required: keep f32 phase accuracy
    )
    o_ref[...] = (jnp.sin(phase + b_ref[...]) * norm).astype(o_ref.dtype)


def time_kernel_forward(t, weight, bias, *, dim, max_block_bytes=4 << 20,
                        out_dtype=jnp.float32):
    """t: (N, 1) f32; weight/bias: (dim//2,) f32 -> (N, dim) out_dtype."""
    assert dim % 2 == 0
    half = dim // 2
    assert weight.shape == (half,) and bias.shape == (half,)
    n = t.shape[0]
    norm = math.sqrt(1.0 / half)

    # ---- interleave Linear params; fold cos into sin via +pi/2 on odd lanes.
    w_inter = jnp.repeat(weight.astype(jnp.float32), 2)                 # (dim,)
    phase_off = jnp.tile(jnp.array([0.0, math.pi / 2.0], jnp.float32), half)
    b_inter = jnp.repeat(bias.astype(jnp.float32), 2) + phase_off       # (dim,)

    # ---- row packing factor: width = groups*dim must be a multiple of 128
    # (unmasked stores) and ideally >= 1024 lanes (so the 128-lane-padded t
    # block stays tiny); groups is kept modest so the HIGHEST-precision
    # expansion matmul stays off the critical path on every generation.
    g0 = 128 // math.gcd(dim, 128)               # minimal factor for width%128==0
    k_max = max(1, 32 // g0)                     # cap MXU MACs/element (= groups)
    k_fac = max(1, min(k_max, -(-1024 // (g0 * dim))))
    groups = g0 * k_fac
    width = groups * dim

    n_pad = pl.cdiv(n, groups) * groups
    rows = n_pad // groups
    t32 = t.astype(jnp.float32).reshape(n, 1)
    if n_pad != n:
        t32 = jnp.pad(t32, ((0, n_pad - n), (0, 0)))
    t_packed = t32.reshape(rows, groups)

    # Pad the contraction dim to a multiple of 8 (clean f32 sublane layout);
    # the extra columns are zeros and the matching W rows are zeros -> no-op.
    k_dim = max(8, ((groups + 7) // 8) * 8)
    if k_dim != groups:
        t_packed = jnp.pad(t_packed, ((0, 0), (0, k_dim - groups)))

    # Expansion operands: W_expand[g, c] = w_inter[c % dim] iff c // dim == g.
    col_group = jnp.arange(width, dtype=jnp.int32) // dim               # (width,)
    sel = (jnp.arange(k_dim, dtype=jnp.int32)[:, None] == col_group[None, :])
    w_expand = sel.astype(jnp.float32) * jnp.tile(w_inter, groups)[None, :]
    b_tiled = jnp.tile(b_inter, groups).reshape(1, width)

    # ---- row tile: ~4 MiB blocks (output + 128-lane-padded t accounted for),
    # capped at half the rows so the grid has >= 2 steps (v7x two-TC sharding
    # via dimension_semantics, and something for the DMA pipeline to overlap).
    out_itemsize = 2 if out_dtype == jnp.bfloat16 else 4
    sub = 16 if out_dtype == jnp.bfloat16 else 8
    bytes_per_row = width * out_itemsize + 128 * 4
    budget_rows = max(sub, (max_block_bytes // bytes_per_row) // sub * sub)
    rows_up = ((rows + sub - 1) // sub) * sub
    half_rows = max(sub, ((rows_up // 2) // sub) * sub)
    tile_rows = max(sub, min(budget_rows, half_rows))

    grid = (pl.cdiv(rows, tile_rows),)
    out_packed = pl.pallas_call(
        functools.partial(_time_kernel_body, norm=norm),
        out_shape=jax.ShapeDtypeStruct((rows, width), out_dtype),
        grid_spec=pltpu.PrefetchScalarGridSpec(
            num_scalar_prefetch=0,
            grid=grid,
            in_specs=[
                pl.BlockSpec((tile_rows, k_dim), lambda i: (i, 0)),
                pl.BlockSpec((k_dim, width), lambda i: (0, 0)),
                pl.BlockSpec((1, width), lambda i: (0, 0)),
            ],
            out_specs=pl.BlockSpec((tile_rows, width), lambda i: (i, 0)),
        ),
        compiler_params=pltpu.CompilerParams(
            dimension_semantics=("parallel",),
            vmem_limit_bytes=32 << 20,
        ),
    )(t_packed, w_expand, b_tiled)

    out = out_packed.reshape(n_pad, dim)   # free: same row-major memory
    if n_pad != n:
        # One full read+write of the output; align N to `groups` upstream to
        # avoid it (matters most on v5e, which is closest to HBM-write-bound).
        out = out[:n]
    return out


def time_kernel_reference(t, weight, bias, *, dim):
    """Pure-JAX reference matching the PyTorch forward exactly (sin/cos)."""
    half = dim // 2
    norm = math.sqrt(1.0 / half)
    phase = t @ weight.reshape(half, 1).T + bias                      # (N, half)
    stacked = jnp.stack([jnp.sin(phase), jnp.cos(phase)], axis=2)     # (N, half, 2)
    return stacked.reshape(t.shape[0], dim) * norm


if __name__ == "__main__":
    N = 8
    DIM = 32
    HALF = DIM // 2

    key = jax.random.PRNGKey(0)
    k_t, k_w, k_b = jax.random.split(key, 3)

    # nn.Linear(1, dim//2) params: fan_in = 1 -> U(-1, 1) PyTorch default init.
    weight = jax.random.uniform(k_w, (HALF,), jnp.float32, -1.0, 1.0)
    bias = jax.random.uniform(k_b, (HALF,), jnp.float32, -1.0, 1.0)
    t = jax.random.uniform(k_t, (N, 1), jnp.float32, 0.0, 10.0)

    out = jax.block_until_ready(time_kernel_forward(t, weight, bias, dim=DIM))
    ref = time_kernel_reference(t, weight, bias, dim=DIM)
    assert out.shape == (N, DIM)
    assert jnp.allclose(out, ref, atol=1e-5, rtol=1e-5), "mismatch vs reference"

    # Extra checks: ragged N, dim that already is a multiple of 128, a dim that
    # does NOT divide 128 (generalized packing), and a multi-grid-step run.
    for (n2, d2) in [(37, 32), (16, 128), (64, 48), (4096, 64)]:
        k1, k2, k3 = jax.random.split(jax.random.PRNGKey(n2 + d2), 3)
        w2 = jax.random.uniform(k1, (d2 // 2,), jnp.float32, -1.0, 1.0)
        b2 = jax.random.uniform(k2, (d2 // 2,), jnp.float32, -1.0, 1.0)
        t2 = jax.random.uniform(k3, (n2, 1), jnp.float32, 0.0, 10.0)
        o2 = jax.block_until_ready(time_kernel_forward(t2, w2, b2, dim=d2))
        r2 = time_kernel_reference(t2, w2, b2, dim=d2)
        assert o2.shape == (n2, d2)
        assert jnp.allclose(o2, r2, atol=1e-5, rtol=1e-5), f"mismatch at {(n2, d2)}"

    print("KERNEL_OK")
</pallas_src>

<mosaic_0001>
module attributes {stable_mosaic.version = 11 : i64} {
  func.func @_time_kernel_body(%arg0: i32, %arg1: memref<8x32xf32, #tpu.memory_space<vmem>>, %arg2: memref<32x1024xf32, #tpu.memory_space<vmem>>, %arg3: memref<1x1024xf32, #tpu.memory_space<vmem>>, %arg4: memref<8x1024xf32, #tpu.memory_space<vmem>>) attributes {dimension_semantics = [#tpu.dimension_semantics<parallel>], iteration_bounds = array<i64: 1>, scalar_prefetch = 0 : i64, scratch_operands = 0 : i64, tpu.core_type = #tpu.core_type<tc>, window_params = [{transform_indices = @transform_0, window_bounds = array<i64: 8, 32>}, {pipeline_mode = #tpu.pipeline_mode<synchronous>, transform_indices = @transform_1, window_bounds = array<i64: 32, 1024>}, {pipeline_mode = #tpu.pipeline_mode<synchronous>, transform_indices = @transform_2, window_bounds = array<i64: 1, 1024>}, {transform_indices = @transform_3, window_bounds = array<i64: 8, 1024>}]} {
    %c0 = arith.constant 0 : index
    %c0_0 = arith.constant 0 : index
    %0 = vector.load %arg1[%c0, %c0_0] : memref<8x32xf32, #tpu.memory_space<vmem>>, vector<8x32xf32>
    %c0_1 = arith.constant 0 : index
    %c0_2 = arith.constant 0 : index
    %1 = vector.load %arg2[%c0_1, %c0_2] : memref<32x1024xf32, #tpu.memory_space<vmem>>, vector<32x1024xf32>
    %cst = arith.constant dense<0.000000e+00> : vector<8x1024xf32>
    %2 = tpu.matmul %0, %1, %cst {dimension_numbers = #tpu.dot_dimension_numbers<[1], [0], [0], [1], [0, 0, 1, 1], [], []>, precision = #tpu.contract_precision<fp32>} : vector<8x32xf32>, vector<32x1024xf32>, vector<8x1024xf32> -> vector<8x1024xf32>
    %c0_3 = arith.constant 0 : index
    %c0_4 = arith.constant 0 : index
    %3 = vector.load %arg3[%c0_3, %c0_4] : memref<1x1024xf32, #tpu.memory_space<vmem>>, vector<1x1024xf32>
    %4 = vector.broadcast %3 : vector<1x1024xf32> to vector<8x1024xf32>
    %5 = arith.addf %2, %4 : vector<8x1024xf32>
    %6 = math.sin %5 : vector<8x1024xf32>
    %cst_5 = arith.constant 2.500000e-01 : f32
    %7 = vector.broadcast %cst_5 : f32 to vector<8x1024xf32>
    %8 = arith.mulf %6, %7 : vector<8x1024xf32>
    %c0_6 = arith.constant 0 : index
    %c0_7 = arith.constant 0 : index
    %9 = vector.load %arg4[%c0_6, %c0_7] : memref<8x1024xf32, #tpu.memory_space<vmem>>, vector<8x1024xf32>
    tpu.vector_store %arg4[%c0_6, %c0_7], %8 {strides = array<i32>} : memref<8x1024xf32, #tpu.memory_space<vmem>>, vector<8x1024xf32>,
    return
  }
  func.func @transform_0(%arg0: i32) -> (i32, i32) {
    %c0_i32 = arith.constant 0 : i32
    %c0_i32_0 = arith.constant 0 : i32
    return %arg0, %c0_i32 : i32, i32
  }
  func.func @transform_1(%arg0: i32) -> (i32, i32) {
    %c0_i32 = arith.constant 0 : i32
    %c0_i32_0 = arith.constant 0 : i32
    %c0_i32_1 = arith.constant 0 : i32
    return %c0_i32, %c0_i32_0 : i32, i32
  }
  func.func @transform_2(%arg0: i32) -> (i32, i32) {
    %c0_i32 = arith.constant 0 : i32
    %c0_i32_0 = arith.constant 0 : i32
    %c0_i32_1 = arith.constant 0 : i32
    return %c0_i32, %c0_i32_0 : i32, i32
  }
  func.func @transform_3(%arg0: i32) -> (i32, i32) {
    %c0_i32 = arith.constant 0 : i32
    %c0_i32_0 = arith.constant 0 : i32
    return %arg0, %c0_i32 : i32, i32
  }
}

</mosaic_0001>

<llo_original>
// kernel: tpu_custom_call.1
$region0: #{tpu_custom_call.1}
  #allocation0 [shape = 'u32[]', space=smem, size = 0x4, offset = 0x4, fixed_abs, tag = 'smem constant byte address 0x4 - core index']
  #allocation1 [shape = 'u32[144,128]{1,0:T(1,128)}', space=vmem, size = 0x12000, scoped, tag = 'internal scratch']
  %s0 = inlined_call_operand.hbm [shape: f32[1,32], index: 0, kind: input, shape index: {}]
  %s1 = inlined_call_operand.hbm [shape: f32[32,1024], index: 1, kind: input, shape index: {}]
  %s2 = inlined_call_operand.hbm [shape: f32[1,1024], index: 2, kind: input, shape index: {}]
  %s3 = inlined_call_operand.hbm [shape: f32[1,1024], index: 3, kind: output, shape index: {}]
  %s4 = sld [smem:[#allocation0]]
  $region34: #{tpu_custom_call.1} parent=0
    _
  %s6 = ssub.s32 1, %s4
  %s7 = scalar_select 0, %s6, %s4
  $region1: #{tpu_custom_call.1} parent=0
    #allocation2 [shape = 'u8[4096]{0}', space=vmem, size = 0x1000, scoped, tag = 'input window, operand 0, single buffered']
    #allocation3 [shape = 's32[1]{0}', space=sflag, size = 0x4, scoped, tag = 'scoped memory for tpu_custom_call.1']
    #allocation4 [shape = 's32[1]{0}', space=sflag, size = 0x4, scoped, tag = 'scoped memory for tpu_custom_call.1']
    #allocation5 [shape = 'u8[131072]{0}', space=vmem, size = 0x20000, scoped, tag = 'input window, operand 1, single buffered']
    #allocation6 [shape = 's32[1]{0}', space=sflag, size = 0x4, scoped, tag = 'scoped memory for tpu_custom_call.1']
    #allocation7 [shape = 'u8[4096]{0}', space=vmem, size = 0x1000, scoped, tag = 'input window, operand 2, single buffered']
    #allocation8 [shape = 'u8[32768]{0}', space=vmem, size = 0x8000, scoped, tag = 'output window, operand 0, single buffered']
    %8 = vsyncpa [#allocation3], 0
    %9 = vsyncpa [#allocation6], 0
    %10 = vsyncpa [#allocation4], 0
    // Predicated region
    $region2: #{tpu_custom_call.1} parent=1 // pred_check
      _
    $region3: #{tpu_custom_call.1} parent=1 // pred_check_branch
      %12 = sbr.rel (0) target = $region5
    $region4: #{tpu_custom_call.1} parent=1 // pred_region
      %s14 = ssub.s32 128, 16
      %15 = vsyncadd [#allocation3], %s14
      %s16 = sshll.u32 [#allocation2], 4
      %s17 = int_to_ptr.vmem [resolvable:$true] %s16
      %22 = dma.hbm_to_vmem [thread:$0]  %s0, 16, %s17, [#allocation3], 16, 16, 1
    $region5: #{tpu_custom_call.1} parent=1 // pred_fallthru
      _
    // Predicated region
    $region6: #{tpu_custom_call.1} parent=1 // pred_check
      _
    $region7: #{tpu_custom_call.1} parent=1 // pred_check_branch
      %24 = sbr.rel (0) target = $region9
    $region8: #{tpu_custom_call.1} parent=1 // pred_region
      %s26 = ssub.s32 4096, 4096
      %27 = vsyncadd [#allocation6], %s26
      %s28 = sshll.u32 [#allocation5], 4
      %s29 = int_to_ptr.vmem [resolvable:$true] %s28
      %34 = dma.hbm_to_vmem [thread:$0]  %s1, 4096, %s29, [#allocation6], 1024, 1024, 64
    $region9: #{tpu_custom_call.1} parent=1 // pred_fallthru
      _
    // Predicated region
    $region10: #{tpu_custom_call.1} parent=1 // pred_check
      _
    $region11: #{tpu_custom_call.1} parent=1 // pred_check_branch
      %36 = sbr.rel (0) target = $region13
    $region12: #{tpu_custom_call.1} parent=1 // pred_region
      %s38 = ssub.s32 128, 128
      %39 = vsyncadd [#allocation6], %s38
      %s41 = sshll.u32 [#allocation7], 4
      %s42 = int_to_ptr.vmem [resolvable:$true] %s41
      %44 = dma.hbm_to_vmem [thread:$0]  %s2, 128, %s42, [#allocation6]
    $region13: #{tpu_custom_call.1} parent=1 // pred_fallthru
      _
    // Predicated region
    $region14: #{tpu_custom_call.1} parent=1 // pred_check
      _
    $region15: #{tpu_custom_call.1} parent=1 // pred_check_branch
      %46 = sbr.rel (0) target = $region17
    $region16: #{tpu_custom_call.1} parent=1 // pred_region
      %47 = dma.done [#allocation3], 128
    $region17: #{tpu_custom_call.1} parent=1 // pred_fallthru
      _
    // Predicated region
    $region18: #{tpu_custom_call.1} parent=1 // pred_check
      _
    $region19: #{tpu_custom_call.1} parent=1 // pred_check_branch
      %49 = sbr.rel (0) target = $region21
    $region20: #{tpu_custom_call.1} parent=1 // pred_region
      %50 = dma.done [#allocation6], 4096
    $region21: #{tpu_custom_call.1} parent=1 // pred_fallthru
      _
    // Predicated region
    $region22: #{tpu_custom_call.1} parent=1 // pred_check
      _
    $region23: #{tpu_custom_call.1} parent=1 // pred_check_branch
      %52 = sbr.rel (0) target = $region25
    $region24: #{tpu_custom_call.1} parent=1 // pred_region
      %53 = dma.done [#allocation6], 128
    $region25: #{tpu_custom_call.1} parent=1 // pred_fallthru
      _
    %v54 = vld [vmem:[#allocation2] sm:$0xff]
    %v55 = vld [vmem:[#allocation5] sm:$0xff]
    %v56 = vld [vmem:[#allocation5 + $0x8] sm:$0xff]
    %v57 = vld [vmem:[#allocation5 + $0x10] sm:$0xff]
    %v58 = vld [vmem:[#allocation5 + $0x18] sm:$0xff]
    %v59 = vld [vmem:[#allocation5 + $0x20] sm:$0xff]
    %v60 = vld [vmem:[#allocation5 + $0x28] sm:$0xff]
    %v61 = vld [vmem:[#allocation5 + $0x30] sm:$0xff]
    %v62 = vld [vmem:[#allocation5 + $0x38] sm:$0xff]
    %v63 = vld [vmem:[#allocation5 + $0x40] sm:$0xff]
    %v64 = vld [vmem:[#allocation5 + $0x48] sm:$0xff]
    %v65 = vld [vmem:[#allocation5 + $0x50] sm:$0xff]
    %v66 = vld [vmem:[#allocation5 + $0x58] sm:$0xff]
    %v67 = vld [vmem:[#allocation5 + $0x60] sm:$0xff]
    %v68 = vld [vmem:[#allocation5 + $0x68] sm:$0xff]
    %v69 = vld [vmem:[#allocation5 + $0x70] sm:$0xff]
    %v70 = vld [vmem:[#allocation5 + $0x78] sm:$0xff]
    %v71 = vld [vmem:[#allocation5 + $0x80] sm:$0xff]
    %v72 = vld [vmem:[#allocation5 + $0x88] sm:$0xff]
    %v73 = vld [vmem:[#allocation5 + $0x90] sm:$0xff]
    %v74 = vld [vmem:[#allocation5 + $0x98] sm:$0xff]
    %v75 = vld [vmem:[#allocation5 + $0xa0] sm:$0xff]
    %v76 = vld [vmem:[#allocation5 + $0xa8] sm:$0xff]
    %v77 = vld [vmem:[#allocation5 + $0xb0] sm:$0xff]
    %v78 = vld [vmem:[#allocation5 + $0xb8] sm:$0xff]
    %v79 = vld [vmem:[#allocation5 + $0xc0] sm:$0xff]
    %v80 = vld [vmem:[#allocation5 + $0xc8] sm:$0xff]
    %v81 = vld [vmem:[#allocation5 + $0xd0] sm:$0xff]
    %v82 = vld [vmem:[#allocation5 + $0xd8] sm:$0xff]
    %v83 = vld [vmem:[#allocation5 + $0xe0] sm:$0xff]
    %v84 = vld [vmem:[#allocation5 + $0xe8] sm:$0xff]
    %v85 = vld [vmem:[#allocation5 + $0xf0] sm:$0xff]
    %v86 = vld [vmem:[#allocation5 + $0xf8] sm:$0xff]
    %v87 = vld [vmem:[#allocation7] sm:$0xff]
    %v89 = vlaneseq
    %v90 = vshrl.u32 %v89, 7
    %v91 = vsub.s32 0, %v90
    %v92 = vrot.slane %v87, %v91
    %v93 = vlaneseq
    %v94 = vshrl.u32 %v93, 7
    %v95 = vsub.s32 1, %v94
    %v96 = vrot.slane %v87, %v95
    %v97 = vlaneseq
    %v98 = vshrl.u32 %v97, 7
    %v99 = vsub.s32 2, %v98
    %v100 = vrot.slane %v87, %v99
    %v101 = vlaneseq
    %v102 = vshrl.u32 %v101, 7
    %v103 = vsub.s32 3, %v102
    %v104 = vrot.slane %v87, %v103
    %v105 = vlaneseq
    %v106 = vshrl.u32 %v105, 7
    %v107 = vsub.s32 4, %v106
    %v108 = vrot.slane %v87, %v107
    %v109 = vlaneseq
    %v110 = vshrl.u32 %v109, 7
    %v111 = vsub.s32 5, %v110
    %v112 = vrot.slane %v87, %v111
    %v113 = vlaneseq
    %v114 = vshrl.u32 %v113, 7
    %v115 = vsub.s32 6, %v114
    %v116 = vrot.slane %v87, %v115
    %v117 = vlaneseq
    %v118 = vshrl.u32 %v117, 7
    %v119 = vsub.s32 7, %v118
    %v120 = vrot.slane %v87, %v119
    %vm129 = vcmask 261120
    %v131 = vsel %vm129, %v54, 0
    %133 = vmatprep.subr.mxu0 0.0
    %134 = vmatpush1.msra.mxu0 0.0
    %135 = vmatprep.subr.mxu0 0.0
    %136 = vmatpush1.msra.mxu0 0.0
    %137 = vmatprep.subr.mxu0 0.0
    %138 = vmatpush1.msra.mxu0 0.0
    %139 = vmatprep.subr.mxu0 0.0
    %140 = vmatpush1.msra.mxu0 0.0
    %141 = vmatprep.subr.mxu0 0.0
    %142 = vmatpush1.msra.mxu0 0.0
    %143 = vmatprep.subr.mxu0 0.0
    %144 = vmatpush1.msra.mxu0 0.0
    %145 = vmatprep.subr.mxu0 0.0
    %146 = vmatpush1.msra.mxu0 0.0
    %147 = vmatprep.subr.mxu0 0.0
    %148 = vmatpush1.msra.mxu0 0.0
    %149 = vmatprep.subr.mxu0 0.0
    %150 = vmatpush1.msra.mxu0 0.0
    %151 = vmatprep.subr.mxu0 0.0
    %152 = vmatpush1.msra.mxu0 0.0
    %153 = vmatprep.subr.mxu0 0.0
    %154 = vmatpush1.msra.mxu0 0.0
    %155 = vmatprep.subr.mxu0 0.0
    %156 = vmatpush1.msra.mxu0 0.0
    %v157 = vand.u32 %v80, 4294901760
    %158 = vmatprep.subr.mxu0 %v157
    %v159 = vand.u32 %v79, 4294901760
    %160 = vmatpush1.msra.mxu0 %v159
    %v161 = vand.u32 %v72, 4294901760
    %162 = vmatprep.subr.mxu0 %v161
    %v163 = vand.u32 %v71, 4294901760
    %164 = vmatpush1.msra.mxu0 %v163
    %v165 = vand.u32 %v64, 4294901760
    %166 = vmatprep.subr.mxu0 %v165
    %v167 = vand.u32 %v63, 4294901760
    %168 = vmatpush1.msra.mxu0 %v167
    %v169 = vand.u32 %v56, 4294901760
    %170 = vmatprep.subr.mxu0 %v169
    %v171 = vand.u32 %v55, 4294901760
    %172 = vmatpush1.msra.mxu0 %v171
    %173 = vmatprep.subr.mxu0 0.0
    %174 = vmatpush2.msra.mxu0 0.0
    %175 = vmatprep.subr.mxu0 0.0
    %176 = vmatpush2.msra.mxu0 0.0
    %177 = vmatprep.subr.mxu0 0.0
    %178 = vmatpush2.msra.mxu0 0.0
    %179 = vmatprep.subr.mxu0 0.0
    %180 = vmatpush2.msra.mxu0 0.0
    %181 = vmatprep.subr.mxu0 0.0
    %182 = vmatpush2.msra.mxu0 0.0
    %183 = vmatprep.subr.mxu0 0.0
    %184 = vmatpush2.msra.mxu0 0.0
    %185 = vmatprep.subr.mxu0 0.0
    %186 = vmatpush2.msra.mxu0 0.0
    %187 = vmatprep.subr.mxu0 0.0
    %188 = vmatpush2.msra.mxu0 0.0
    %189 = vmatprep.subr.mxu0 0.0
    %190 = vmatpush2.msra.mxu0 0.0
    %191 = vmatprep.subr.mxu0 0.0
    %192 = vmatpush2.msra.mxu0 0.0
    %193 = vmatprep.subr.mxu0 0.0
    %194 = vmatpush2.msra.mxu0 0.0
    %195 = vmatprep.subr.mxu0 0.0
    %196 = vmatpush2.msra.mxu0 0.0
    %197 = vmatprep.subr.mxu0 0.0
    %198 = vmatpush2.msra.mxu0 0.0
    %199 = vmatprep.subr.mxu0 0.0
    %200 = vmatpush2.msra.mxu0 0.0
    %201 = vmatprep.subr.mxu0 0.0
    %202 = vmatpush2.msra.mxu0 0.0
    %203 = vmatprep.subr.mxu0 0.0
    %204 = vmatpush2.msra.mxu0 0.0
    %205 = vmatprep.mubr.f32.mxu0 0.0
    %v206 = vand.u32 %v131, 4294901760
    %v207 = vsub.f32 %v131, %v206
    %v208 = vand.u32 %v207, 4294901760
    %v209 = vsub.f32 %v207, %v208
    %v210 = vand.u32 %v209, 4294901760
    %211 = vmatmul.mubr.f32.gmra.mxu0 %v210
    %v212 = vpop.f32.mrf.mxu0
    %v213 = vadd.f32 %v92, %v212
    %v214 = vpop.f32.mrf.mxu0
    %v215 = vadd.f32 %v96, %v214
    %216 = vdwg.mxu0
    %217 = vmatprep.subr.mxu0 0.0
    %218 = vmatpush1.msra.mxu0 0.0
    %219 = vmatprep.subr.mxu0 0.0
    %220 = vmatpush1.msra.mxu0 0.0
    %221 = vmatprep.subr.mxu0 0.0
    %222 = vmatpush1.msra.mxu0 0.0
    %223 = vmatprep.subr.mxu0 0.0
    %224 = vmatpush1.msra.mxu0 0.0
    %225 = vmatprep.subr.mxu0 0.0
    %226 = vmatpush1.msra.mxu0 0.0
    %227 = vmatprep.subr.mxu0 0.0
    %228 = vmatpush1.msra.mxu0 0.0
    %229 = vmatprep.subr.mxu0 0.0
    %230 = vmatpush1.msra.mxu0 0.0
    %231 = vmatprep.subr.mxu0 0.0
    %232 = vmatpush1.msra.mxu0 0.0
    %233 = vmatprep.subr.mxu0 0.0
    %234 = vmatpush1.msra.mxu0 0.0
    %235 = vmatprep.subr.mxu0 0.0
    %236 = vmatpush1.msra.mxu0 0.0
    %237 = vmatprep.subr.mxu0 0.0
    %238 = vmatpush1.msra.mxu0 0.0
    %239 = vmatprep.subr.mxu0 0.0
    %240 = vmatpush1.msra.mxu0 0.0
    %v241 = vand.u32 %v80, 4294901760
    %v242 = vsub.f32 %v80, %v241
    %v243 = vand.u32 %v242, 4294901760
    %v244 = vsub.f32 %v242, %v243
    %v245 = vand.u32 %v244, 4294901760
    %246 = vmatprep.subr.mxu0 %v245
    %v247 = vand.u32 %v79, 4294901760
    %v248 = vsub.f32 %v79, %v247
    %v249 = vand.u32 %v248, 4294901760
    %v250 = vsub.f32 %v248, %v249
    %v251 = vand.u32 %v250, 4294901760
    %252 = vmatpush1.msra.mxu0 %v251
    %v253 = vand.u32 %v72, 4294901760
    %v254 = vsub.f32 %v72, %v253
    %v255 = vand.u32 %v254, 4294901760
    %v256 = vsub.f32 %v254, %v255
    %v257 = vand.u32 %v256, 4294901760
    %258 = vmatprep.subr.mxu0 %v257
    %v259 = vand.u32 %v71, 4294901760
    %v260 = vsub.f32 %v71, %v259
    %v261 = vand.u32 %v260, 4294901760
    %v262 = vsub.f32 %v260, %v261
    %v263 = vand.u32 %v262, 4294901760
    %264 = vmatpush1.msra.mxu0 %v263
    %v265 = vand.u32 %v64, 4294901760
    %v266 = vsub.f32 %v64, %v265
    %v267 = vand.u32 %v266, 4294901760
    %v268 = vsub.f32 %v266, %v267
    %v269 = vand.u32 %v268, 4294901760
    %270 = vmatprep.subr.mxu0 %v269
    %v271 = vand.u32 %v63, 4294901760
    %v272 = vsub.f32 %v63, %v271
    %v273 = vand.u32 %v272, 4294901760
    %v274 = vsub.f32 %v272, %v273
    %v275 = vand.u32 %v274, 4294901760
    %276 = vmatpush1.msra.mxu0 %v275
    %v277 = vand.u32 %v56, 4294901760
    %v278 = vsub.f32 %v56, %v277
    %v279 = vand.u32 %v278, 4294901760
    %v280 = vsub.f32 %v278, %v279
    %v281 = vand.u32 %v280, 4294901760
    %282 = vmatprep.subr.mxu0 %v281
    %v283 = vand.u32 %v55, 4294901760
    %v284 = vsub.f32 %v55, %v283
    %v285 = vand.u32 %v284, 4294901760
    %v286 = vsub.f32 %v284, %v285
    %v287 = vand.u32 %v286, 4294901760
    %288 = vmatpush1.msra.mxu0 %v287
    %289 = vmatprep.subr.mxu0 0.0
    %290 = vmatpush2.msra.mxu0 0.0
    %291 = vmatprep.subr.mxu0 0.0
    %292 = vmatpush2.msra.mxu0 0.0
    %293 = vmatprep.subr.mxu0 0.0
    %294 = vmatpush2.msra.mxu0 0.0
    %295 = vmatprep.subr.mxu0 0.0
    %296 = vmatpush2.msra.mxu0 0.0
    %297 = vmatprep.subr.mxu0 0.0
    %298 = vmatpush2.msra.mxu0 0.0
    %299 = vmatprep.subr.mxu0 0.0
    %300 = vmatpush2.msra.mxu0 0.0
    %301 = vmatprep.subr.mxu0 0.0
    %302 = vmatpush2.msra.mxu0 0.0
    %303 = vmatprep.subr.mxu0 0.0
    %304 = vmatpush2.msra.mxu0 0.0
    %305 = vmatprep.subr.mxu0 0.0
    %306 = vmatpush2.msra.mxu0 0.0
    %307 = vmatprep.subr.mxu0 0.0
    %308 = vmatpush2.msra.mxu0 0.0
    %309 = vmatprep.subr.mxu0 0.0
    %310 = vmatpush2.msra.mxu0 0.0
    %311 = vmatprep.subr.mxu0 0.0
    %312 = vmatpush2.msra.mxu0 0.0
    %313 = vmatprep.subr.mxu0 0.0
    %314 = vmatpush2.msra.mxu0 0.0
    %315 = vmatprep.subr.mxu0 0.0
    %316 = vmatpush2.msra.mxu0 0.0
    %317 = vmatprep.subr.mxu0 0.0
    %318 = vmatpush2.msra.mxu0 0.0
    %319 = vmatprep.subr.mxu0 0.0
    %320 = vmatpush2.msra.mxu0 0.0
    %321 = vmatprep.mubr.f32.mxu0 0.0
    %v322 = vand.u32 %v131, 4294901760
    %323 = vmatmul.mubr.f32.gmra.mxu0 %v322
    %v324 = vpop.f32.mrf.mxu0
    %v325 = vadd.f32 %v213, %v324
    %v326 = vpop.f32.mrf.mxu0
    %v327 = vadd.f32 %v215, %v326
    %328 = vdwg.mxu0
    %329 = vmatprep.subr.mxu0 0.0
    %330 = vmatpush1.msra.mxu0 0.0
    %331 = vmatprep.subr.mxu0 0.0
    %332 = vmatpush1.msra.mxu0 0.0
    %333 = vmatprep.subr.mxu0 0.0
    %334 = vmatpush1.msra.mxu0 0.0
    %335 = vmatprep.subr.mxu0 0.0
    %336 = vmatpush1.msra.mxu0 0.0
    %337 = vmatprep.subr.mxu0 0.0
    %338 = vmatpush1.msra.mxu0 0.0
    %339 = vmatprep.subr.mxu0 0.0
    %340 = vmatpush1.msra.mxu0 0.0
    %341 = vmatprep.subr.mxu0 0.0
    %342 = vmatpush1.msra.mxu0 0.0
    %343 = vmatprep.subr.mxu0 0.0
    %344 = vmatpush1.msra.mxu0 0.0
    %345 = vmatprep.subr.mxu0 0.0
    %346 = vmatpush1.msra.mxu0 0.0
    %347 = vmatprep.subr.mxu0 0.0
    %348 = vmatpush1.msra.mxu0 0.0
    %349 = vmatprep.subr.mxu0 0.0
    %350 = vmatpush1.msra.mxu0 0.0
    %351 = vmatprep.subr.mxu0 0.0
    %352 = vmatpush1.msra.mxu0 0.0
    %v353 = vand.u32 %v80, 4294901760
    %v354 = vsub.f32 %v80, %v353
    %355 = vmatprep.subr.mxu0 %v354
    %v356 = vand.u32 %v79, 4294901760
    %v357 = vsub.f32 %v79, %v356
    %358 = vmatpush1.msra.mxu0 %v357
    %v359 = vand.u32 %v72, 4294901760
    %v360 = vsub.f32 %v72, %v359
    %361 = vmatprep.subr.mxu0 %v360
    %v362 = vand.u32 %v71, 4294901760
    %v363 = vsub.f32 %v71, %v362
    %364 = vmatpush1.msra.mxu0 %v363
    %v365 = vand.u32 %v64, 4294901760
    %v366 = vsub.f32 %v64, %v365
    %367 = vmatprep.subr.mxu0 %v366
    %v368 = vand.u32 %v63, 4294901760
    %v369 = vsub.f32 %v63, %v368
    %370 = vmatpush1.msra.mxu0 %v369
    %v371 = vand.u32 %v56, 4294901760
    %v372 = vsub.f32 %v56, %v371
    %373 = vmatprep.subr.mxu0 %v372
    %v374 = vand.u32 %v55, 4294901760
    %v375 = vsub.f32 %v55, %v374
    %376 = vmatpush1.msra.mxu0 %v375
    %377 = vmatprep.subr.mxu0 0.0
    %378 = vmatpush2.msra.mxu0 0.0
    %379 = vmatprep.subr.mxu0 0.0
    %380 = vmatpush2.msra.mxu0 0.0
    %381 = vmatprep.subr.mxu0 0.0
    %382 = vmatpush2.msra.mxu0 0.0
    %383 = vmatprep.subr.mxu0 0.0
    %384 = vmatpush2.msra.mxu0 0.0
    %385 = vmatprep.subr.mxu0 0.0
    %386 = vmatpush2.msra.mxu0 0.0
    %387 = vmatprep.subr.mxu0 0.0
    %388 = vmatpush2.msra.mxu0 0.0
    %389 = vmatprep.subr.mxu0 0.0
    %390 = vmatpush2.msra.mxu0 0.0
    %391 = vmatprep.subr.mxu0 0.0
    %392 = vmatpush2.msra.mxu0 0.0
    %393 = vmatprep.subr.mxu0 0.0
    %394 = vmatpush2.msra.mxu0 0.0
    %395 = vmatprep.subr.mxu0 0.0
    %396 = vmatpush2.msra.mxu0 0.0
    %397 = vmatprep.subr.mxu0 0.0
    %398 = vmatpush2.msra.mxu0 0.0
    %399 = vmatprep.subr.mxu0 0.0
    %400 = vmatpush2.msra.mxu0 0.0
    %401 = vmatprep.subr.mxu0 0.0
    %402 = vmatpush2.msra.mxu0 0.0
    %403 = vmatprep.subr.mxu0 0.0
    %404 = vmatpush2.msra.mxu0 0.0
    %405 = vmatprep.subr.mxu0 0.0
    %406 = vmatpush2.msra.mxu0 0.0
    %407 = vmatprep.subr.mxu0 0.0
    %408 = vmatpush2.msra.mxu0 0.0
    %409 = vmatprep.mubr.f32.mxu0 0.0
    %v410 = vand.u32 %v131, 4294901760
    %v411 = vsub.f32 %v131, %v410
    %412 = vmatmul.mubr.f32.gmra.mxu0 %v411
    %v413 = vpop.f32.mrf.mxu0
    %v414 = vadd.f32 %v325, %v413
    %v415 = vpop.f32.mrf.mxu0
    %v416 = vadd.f32 %v327, %v415
    %417 = vdwg.mxu0
    %418 = vmatprep.subr.mxu0 0.0
    %419 = vmatpush1.msra.mxu0 0.0
    %420 = vmatprep.subr.mxu0 0.0
    %421 = vmatpush1.msra.mxu0 0.0
    %422 = vmatprep.subr.mxu0 0.0
    %423 = vmatpush1.msra.mxu0 0.0
    %424 = vmatprep.subr.mxu0 0.0
    %425 = vmatpush1.msra.mxu0 0.0
    %426 = vmatprep.subr.mxu0 0.0
    %427 = vmatpush1.msra.mxu0 0.0
    %428 = vmatprep.subr.mxu0 0.0
    %429 = vmatpush1.msra.mxu0 0.0
    %430 = vmatprep.subr.mxu0 0.0
    %431 = vmatpush1.msra.mxu0 0.0
    %432 = vmatprep.subr.mxu0 0.0
    %433 = vmatpush1.msra.mxu0 0.0
    %434 = vmatprep.subr.mxu0 0.0
    %435 = vmatpush1.msra.mxu0 0.0
    %436 = vmatprep.subr.mxu0 0.0
    %437 = vmatpush1.msra.mxu0 0.0
    %438 = vmatprep.subr.mxu0 0.0
    %439 = vmatpush1.msra.mxu0 0.0
    %440 = vmatprep.subr.mxu0 0.0
    %441 = vmatpush1.msra.mxu0 0.0
    %v442 = vand.u32 %v80, 4294901760
    %443 = vmatprep.subr.mxu0 %v442
    %v444 = vand.u32 %v79, 4294901760
    %445 = vmatpush1.msra.mxu0 %v444
    %v446 = vand.u32 %v72, 4294901760
    %447 = vmatprep.subr.mxu0 %v446
    %v448 = vand.u32 %v71, 4294901760
    %449 = vmatpush1.msra.mxu0 %v448
    %v450 = vand.u32 %v64, 4294901760
    %451 = vmatprep.subr.mxu0 %v450
    %v452 = vand.u32 %v63, 4294901760
    %453 = vmatpush1.msra.mxu0 %v452
    %v454 = vand.u32 %v56, 4294901760
    %455 = vmatprep.subr.mxu0 %v454
    %v456 = vand.u32 %v55, 4294901760
    %457 = vmatpush1.msra.mxu0 %v456
    %458 = vmatprep.subr.mxu0 0.0
    %459 = vmatpush2.msra.mxu0 0.0
    %460 = vmatprep.subr.mxu0 0.0
    %461 = vmatpush2.msra.mxu0 0.0
    %462 = vmatprep.subr.mxu0 0.0
    %463 = vmatpush2.msra.mxu0 0.0
    %464 = vmatprep.subr.mxu0 0.0
    %465 = vmatpush2.msra.mxu0 0.0
    %466 = vmatprep.subr.mxu0 0.0
    %467 = vmatpush2.msra.mxu0 0.0
    %468 = vmatprep.subr.mxu0 0.0
    %469 = vmatpush2.msra.mxu0 0.0
    %470 = vmatprep.subr.mxu0 0.0
    %471 = vmatpush2.msra.mxu0 0.0
    %472 = vmatprep.subr.mxu0 0.0
    %473 = vmatpush2.msra.mxu0 0.0
    %474 = vmatprep.subr.mxu0 0.0
    %475 = vmatpush2.msra.mxu0 0.0
    %476 = vmatprep.subr.mxu0 0.0
    %477 = vmatpush2.msra.mxu0 0.0
    %478 = vmatprep.subr.mxu0 0.0
    %479 = vmatpush2.msra.mxu0 0.0
    %480 = vmatprep.subr.mxu0 0.0
    %481 = vmatpush2.msra.mxu0 0.0
    %482 = vmatprep.subr.mxu0 0.0
    %483 = vmatpush2.msra.mxu0 0.0
    %484 = vmatprep.subr.mxu0 0.0
    %485 = vmatpush2.msra.mxu0 0.0
    %486 = vmatprep.subr.mxu0 0.0
    %487 = vmatpush2.msra.mxu0 0.0
    %488 = vmatprep.subr.mxu0 0.0
    %489 = vmatpush2.msra.mxu0 0.0
    %490 = vmatprep.mubr.f32.mxu0 0.0
    %v491 = vand.u32 %v131, 4294901760
    %v492 = vsub.f32 %v131, %v491
    %v493 = vand.u32 %v492, 4294901760
    %494 = vmatmul.mubr.f32.gmra.mxu0 %v493
    %v495 = vpop.f32.mrf.mxu0
    %v496 = vadd.f32 %v414, %v495
    %v497 = vpop.f32.mrf.mxu0
    %v498 = vadd.f32 %v416, %v497
    %499 = vdwg.mxu0
    %500 = vmatprep.subr.mxu0 0.0
    %501 = vmatpush1.msra.mxu0 0.0
    %502 = vmatprep.subr.mxu0 0.0
    %503 = vmatpush1.msra.mxu0 0.0
    %504 = vmatprep.subr.mxu0 0.0
    %505 = vmatpush1.msra.mxu0 0.0
    %506 = vmatprep.subr.mxu0 0.0
    %507 = vmatpush1.msra.mxu0 0.0
    %508 = vmatprep.subr.mxu0 0.0
    %509 = vmatpush1.msra.mxu0 0.0
    %510 = vmatprep.subr.mxu0 0.0
    %511 = vmatpush1.msra.mxu0 0.0
    %512 = vmatprep.subr.mxu0 0.0
    %513 = vmatpush1.msra.mxu0 0.0
    %514 = vmatprep.subr.mxu0 0.0
    %515 = vmatpush1.msra.mxu0 0.0
    %516 = vmatprep.subr.mxu0 0.0
    %517 = vmatpush1.msra.mxu0 0.0
    %518 = vmatprep.subr.mxu0 0.0
    %519 = vmatpush1.msra.mxu0 0.0
    %520 = vmatprep.subr.mxu0 0.0
    %521 = vmatpush1.msra.mxu0 0.0
    %522 = vmatprep.subr.mxu0 0.0
    %523 = vmatpush1.msra.mxu0 0.0
    %v524 = vand.u32 %v80, 4294901760
    %v525 = vsub.f32 %v80, %v524
    %v526 = vand.u32 %v525, 4294901760
    %527 = vmatprep.subr.mxu0 %v526
    %v528 = vand.u32 %v79, 4294901760
    %v529 = vsub.f32 %v79, %v528
    %v530 = vand.u32 %v529, 4294901760
    %531 = vmatpush1.msra.mxu0 %v530
    %v532 = vand.u32 %v72, 4294901760
    %v533 = vsub.f32 %v72, %v532
    %v534 = vand.u32 %v533, 4294901760
    %535 = vmatprep.subr.mxu0 %v534
    %v536 = vand.u32 %v71, 4294901760
    %v537 = vsub.f32 %v71, %v536
    %v538 = vand.u32 %v537, 4294901760
    %539 = vmatpush1.msra.mxu0 %v538
    %v540 = vand.u32 %v64, 4294901760
    %v541 = vsub.f32 %v64, %v540
    %v542 = vand.u32 %v541, 4294901760
    %543 = vmatprep.subr.mxu0 %v542
    %v544 = vand.u32 %v63, 4294901760
    %v545 = vsub.f32 %v63, %v544
    %v546 = vand.u32 %v545, 4294901760
    %547 = vmatpush1.msra.mxu0 %v546
    %v548 = vand.u32 %v56, 4294901760
    %v549 = vsub.f32 %v56, %v548
    %v550 = vand.u32 %v549, 4294901760
    %551 = vmatprep.subr.mxu0 %v550
    %v552 = vand.u32 %v55, 4294901760
    %v553 = vsub.f32 %v55, %v552
    %v554 = vand.u32 %v553, 4294901760
    %555 = vmatpush1.msra.mxu0 %v554
    %556 = vmatprep.subr.mxu0 0.0
    %557 = vmatpush2.msra.mxu0 0.0
    %558 = vmatprep.subr.mxu0 0.0
    %559 = vmatpush2.msra.mxu0 0.0
    %560 = vmatprep.subr.mxu0 0.0
    %561 = vmatpush2.msra.mxu0 0.0
    %562 = vmatprep.subr.mxu0 0.0
    %563 = vmatpush2.msra.mxu0 0.0
    %564 = vmatprep.subr.mxu0 0.0
    %565 = vmatpush2.msra.mxu0 0.0
    %566 = vmatprep.subr.mxu0 0.0
    %567 = vmatpush2.msra.mxu0 0.0
    %568 = vmatprep.subr.mxu0 0.0
    %569 = vmatpush2.msra.mxu0 0.0
    %570 = vmatprep.subr.mxu0 0.0
    %571 = vmatpush2.msra.mxu0 0.0
    %572 = vmatprep.subr.mxu0 0.0
    %573 = vmatpush2.msra.mxu0 0.0
    %574 = vmatprep.subr.mxu0 0.0
    %575 = vmatpush2.msra.mxu0 0.0
    %576 = vmatprep.subr.mxu0 0.0
    %577 = vmatpush2.msra.mxu0 0.0
    %578 = vmatprep.subr.mxu0 0.0
    %579 = vmatpush2.msra.mxu0 0.0
    %580 = vmatprep.subr.mxu0 0.0
    %581 = vmatpush2.msra.mxu0 0.0
    %582 = vmatprep.subr.mxu0 0.0
    %583 = vmatpush2.msra.mxu0 0.0
    %584 = vmatprep.subr.mxu0 0.0
    %585 = vmatpush2.msra.mxu0 0.0
    %586 = vmatprep.subr.mxu0 0.0
    %587 = vmatpush2.msra.mxu0 0.0
    %588 = vmatprep.mubr.f32.mxu0 0.0
    %v589 = vand.u32 %v131, 4294901760
    %590 = vmatmul.mubr.f32.gmra.mxu0 %v589
    %v591 = vpop.f32.mrf.mxu0
    %v592 = vadd.f32 %v496, %v591
    %v593 = vpop.f32.mrf.mxu0
    %v594 = vadd.f32 %v498, %v593
    %595 = vdwg.mxu0
    %596 = vmatprep.subr.mxu0 0.0
    %597 = vmatpush1.msra.mxu0 0.0
    %598 = vmatprep.subr.mxu0 0.0
    %599 = vmatpush1.msra.mxu0 0.0
    %600 = vmatprep.subr.mxu0 0.0
    %601 = vmatpush1.msra.mxu0 0.0
    %602 = vmatprep.subr.mxu0 0.0
    %603 = vmatpush1.msra.mxu0 0.0
    %604 = vmatprep.subr.mxu0 0.0
    %605 = vmatpush1.msra.mxu0 0.0
    %606 = vmatprep.subr.mxu0 0.0
    %607 = vmatpush1.msra.mxu0 0.0
    %608 = vmatprep.subr.mxu0 0.0
    %609 = vmatpush1.msra.mxu0 0.0
    %610 = vmatprep.subr.mxu0 0.0
    %611 = vmatpush1.msra.mxu0 0.0
    %612 = vmatprep.subr.mxu0 0.0
    %613 = vmatpush1.msra.mxu0 0.0
    %614 = vmatprep.subr.mxu0 0.0
    %615 = vmatpush1.msra.mxu0 0.0
    %616 = vmatprep.subr.mxu0 0.0
    %617 = vmatpush1.msra.mxu0 0.0
    %618 = vmatprep.subr.mxu0 0.0
    %619 = vmatpush1.msra.mxu0 0.0
    %v620 = vand.u32 %v80, 4294901760
    %621 = vmatprep.subr.mxu0 %v620
    %v622 = vand.u32 %v79, 4294901760
    %623 = vmatpush1.msra.mxu0 %v622
    %v624 = vand.u32 %v72, 4294901760
    %625 = vmatprep.subr.mxu0 %v624
    %v626 = vand.u32 %v71, 4294901760
    %627 = vmatpush1.msra.mxu0 %v626
    %v628 = vand.u32 %v64, 4294901760
    %629 = vmatprep.subr.mxu0 %v628
    %v630 = vand.u32 %v63, 4294901760
    %631 = vmatpush1.msra.mxu0 %v630
    %v632 = vand.u32 %v56, 4294901760
    %633 = vmatprep.subr.mxu0 %v632
    %v634 = vand.u32 %v55, 4294901760
    %635 = vmatpush1.msra.mxu0 %v634
    %636 = vmatprep.subr.mxu0 0.0
    %637 = vmatpush2.msra.mxu0 0.0
    %638 = vmatprep.subr.mxu0 0.0
    %639 = vmatpush2.msra.mxu0 0.0
    %640 = vmatprep.subr.mxu0 0.0
    %641 = vmatpush2.msra.mxu0 0.0
    %642 = vmatprep.subr.mxu0 0.0
    %643 = vmatpush2.msra.mxu0 0.0
    %644 = vmatprep.subr.mxu0 0.0
    %645 = vmatpush2.msra.mxu0 0.0
    %646 = vmatprep.subr.mxu0 0.0
    %647 = vmatpush2.msra.mxu0 0.0
    %648 = vmatprep.subr.mxu0 0.0
    %649 = vmatpush2.msra.mxu0 0.0
    %650 = vmatprep.subr.mxu0 0.0
    %651 = vmatpush2.msra.mxu0 0.0
    %652 = vmatprep.subr.mxu0 0.0
    %653 = vmatpush2.msra.mxu0 0.0
    %654 = vmatprep.subr.mxu0 0.0
    %655 = vmatpush2.msra.mxu0 0.0
    %656 = vmatprep.subr.mxu0 0.0
    %657 = vmatpush2.msra.mxu0 0.0
    %658 = vmatprep.subr.mxu0 0.0
    %659 = vmatpush2.msra.mxu0 0.0
    %660 = vmatprep.subr.mxu0 0.0
    %661 = vmatpush2.msra.mxu0 0.0
    %662 = vmatprep.subr.mxu0 0.0
    %663 = vmatpush2.msra.mxu0 0.0
    %664 = vmatprep.subr.mxu0 0.0
    %665 = vmatpush2.msra.mxu0 0.0
    %666 = vmatprep.subr.mxu0 0.0
    %667 = vmatpush2.msra.mxu0 0.0
    %668 = vmatprep.mubr.f32.mxu0 0.0
    %v669 = vand.u32 %v131, 4294901760
    %670 = vmatmul.mubr.f32.gmra.mxu0 %v669
    %v671 = vpop.f32.mrf.mxu0
    %v672 = vadd.f32 %v592, %v671
    %v673 = vpop.f32.mrf.mxu0
    %v674 = vadd.f32 %v594, %v673
    %675 = vdwg.mxu0
    %676 = vmatprep.subr.mxu0 0.0
    %677 = vmatpush1.msra.mxu0 0.0
    %678 = vmatprep.subr.mxu0 0.0
    %679 = vmatpush1.msra.mxu0 0.0
    %680 = vmatprep.subr.mxu0 0.0
    %681 = vmatpush1.msra.mxu0 0.0
    %682 = vmatprep.subr.mxu0 0.0
    %683 = vmatpush1.msra.mxu0 0.0
    %684 = vmatprep.subr.mxu0 0.0
    %685 = vmatpush1.msra.mxu0 0.0
    %686 = vmatprep.subr.mxu0 0.0
    %687 = vmatpush1.msra.mxu0 0.0
    %688 = vmatprep.subr.mxu0 0.0
    %689 = vmatpush1.msra.mxu0 0.0
    %690 = vmatprep.subr.mxu0 0.0
    %691 = vmatpush1.msra.mxu0 0.0
    %692 = vmatprep.subr.mxu0 0.0
    %693 = vmatpush1.msra.mxu0 0.0
    %694 = vmatprep.subr.mxu0 0.0
    %695 = vmatpush1.msra.mxu0 0.0
    %696 = vmatprep.subr.mxu0 0.0
    %697 = vmatpush1.msra.mxu0 0.0
    %698 = vmatprep.subr.mxu0 0.0
    %699 = vmatpush1.msra.mxu0 0.0
    %v700 = vand.u32 %v82, 4294901760
    %701 = vmatprep.subr.mxu0 %v700
    %v702 = vand.u32 %v81, 4294901760
    %703 = vmatpush1.msra.mxu0 %v702
    %v704 = vand.u32 %v74, 4294901760
    %705 = vmatprep.subr.mxu0 %v704
    %v706 = vand.u32 %v73, 4294901760
    %707 = vmatpush1.msra.mxu0 %v706
    %v708 = vand.u32 %v66, 4294901760
    %709 = vmatprep.subr.mxu0 %v708
    %v710 = vand.u32 %v65, 4294901760
    %711 = vmatpush1.msra.mxu0 %v710
    %v712 = vand.u32 %v58, 4294901760
    %713 = vmatprep.subr.mxu0 %v712
    %v714 = vand.u32 %v57, 4294901760
    %715 = vmatpush1.msra.mxu0 %v714
    %716 = vmatprep.subr.mxu0 0.0
    %717 = vmatpush2.msra.mxu0 0.0
    %718 = vmatprep.subr.mxu0 0.0
    %719 = vmatpush2.msra.mxu0 0.0
    %720 = vmatprep.subr.mxu0 0.0
    %721 = vmatpush2.msra.mxu0 0.0
    %722 = vmatprep.subr.mxu0 0.0
    %723 = vmatpush2.msra.mxu0 0.0
    %724 = vmatprep.subr.mxu0 0.0
    %725 = vmatpush2.msra.mxu0 0.0
    %726 = vmatprep.subr.mxu0 0.0
    %727 = vmatpush2.msra.mxu0 0.0
    %728 = vmatprep.subr.mxu0 0.0
    %729 = vmatpush2.msra.mxu0 0.0
    %730 = vmatprep.subr.mxu0 0.0
    %731 = vmatpush2.msra.mxu0 0.0
    %732 = vmatprep.subr.mxu0 0.0
    %733 = vmatpush2.msra.mxu0 0.0
    %734 = vmatprep.subr.mxu0 0.0
    %735 = vmatpush2.msra.mxu0 0.0
    %736 = vmatprep.subr.mxu0 0.0
    %737 = vmatpush2.msra.mxu0 0.0
    %738 = vmatprep.subr.mxu0 0.0
    %739 = vmatpush2.msra.mxu0 0.0
    %740 = vmatprep.subr.mxu0 0.0
    %741 = vmatpush2.msra.mxu0 0.0
    %742 = vmatprep.subr.mxu0 0.0
    %743 = vmatpush2.msra.mxu0 0.0
    %744 = vmatprep.subr.mxu0 0.0
    %745 = vmatpush2.msra.mxu0 0.0
    %746 = vmatprep.subr.mxu0 0.0
    %747 = vmatpush2.msra.mxu0 0.0
    %748 = vmatprep.mubr.f32.mxu0 0.0
    %v749 = vand.u32 %v131, 4294901760
    %v750 = vsub.f32 %v131, %v749
    %v751 = vand.u32 %v750, 4294901760
    %v752 = vsub.f32 %v750, %v751
    %v753 = vand.u32 %v752, 4294901760
    %754 = vmatmul.mubr.f32.gmra.mxu0 %v753
    %v755 = vpop.f32.mrf.mxu0
    %v756 = vadd.f32 %v100, %v755
    %v757 = vpop.f32.mrf.mxu0
    %v758 = vadd.f32 %v104, %v757
    %759 = vdwg.mxu0
    %760 = vmatprep.subr.mxu0 0.0
    %761 = vmatpush1.msra.mxu0 0.0
    %762 = vmatprep.subr.mxu0 0.0
    %763 = vmatpush1.msra.mxu0 0.0
    %764 = vmatprep.subr.mxu0 0.0
    %765 = vmatpush1.msra.mxu0 0.0
    %766 = vmatprep.subr.mxu0 0.0
    %767 = vmatpush1.msra.mxu0 0.0
    %768 = vmatprep.subr.mxu0 0.0
    %769 = vmatpush1.msra.mxu0 0.0
    %770 = vmatprep.subr.mxu0 0.0
    %771 = vmatpush1.msra.mxu0 0.0
    %772 = vmatprep.subr.mxu0 0.0
    %773 = vmatpush1.msra.mxu0 0.0
    %774 = vmatprep.subr.mxu0 0.0
    %775 = vmatpush1.msra.mxu0 0.0
    %776 = vmatprep.subr.mxu0 0.0
    %777 = vmatpush1.msra.mxu0 0.0
    %778 = vmatprep.subr.mxu0 0.0
    %779 = vmatpush1.msra.mxu0 0.0
    %780 = vmatprep.subr.mxu0 0.0
    %781 = vmatpush1.msra.mxu0 0.0
    %782 = vmatprep.subr.mxu0 0.0
    %783 = vmatpush1.msra.mxu0 0.0
    %v784 = vand.u32 %v82, 4294901760
    %v785 = vsub.f32 %v82, %v784
    %v786 = vand.u32 %v785, 4294901760
    %v787 = vsub.f32 %v785, %v786
    %v788 = vand.u32 %v787, 4294901760
    %789 = vmatprep.subr.mxu0 %v788
    %v790 = vand.u32 %v81, 4294901760
    %v791 = vsub.f32 %v81, %v790
    %v792 = vand.u32 %v791, 4294901760
    %v793 = vsub.f32 %v791, %v792
    %v794 = vand.u32 %v793, 4294901760
    %795 = vmatpush1.msra.mxu0 %v794
    %v796 = vand.u32 %v74, 4294901760
    %v797 = vsub.f32 %v74, %v796
    %v798 = vand.u32 %v797, 4294901760
    %v799 = vsub.f32 %v797, %v798
    %v800 = vand.u32 %v799, 4294901760
    %801 = vmatprep.subr.mxu0 %v800
    %v802 = vand.u32 %v73, 4294901760
    %v803 = vsub.f32 %v73, %v802
    %v804 = vand.u32 %v803, 4294901760
    %v805 = vsub.f32 %v803, %v804
    %v806 = vand.u32 %v805, 4294901760
    %807 = vmatpush1.msra.mxu0 %v806
    %v808 = vand.u32 %v66, 4294901760
    %v809 = vsub.f32 %v66, %v808
    %v810 = vand.u32 %v809, 4294901760
    %v811 = vsub.f32 %v809, %v810
    %v812 = vand.u32 %v811, 4294901760
    %813 = vmatprep.subr.mxu0 %v812
    %v814 = vand.u32 %v65, 4294901760
    %v815 = vsub.f32 %v65, %v814
    %v816 = vand.u32 %v815, 4294901760
    %v817 = vsub.f32 %v815, %v816
    %v818 = vand.u32 %v817, 4294901760
    %819 = vmatpush1.msra.mxu0 %v818
    %v820 = vand.u32 %v58, 4294901760
    %v821 = vsub.f32 %v58, %v820
    %v822 = vand.u32 %v821, 4294901760
    %v823 = vsub.f32 %v821, %v822
    %v824 = vand.u32 %v823, 4294901760
    %825 = vmatprep.subr.mxu0 %v824
    %v826 = vand.u32 %v57, 4294901760
    %v827 = vsub.f32 %v57, %v826
    %v828 = vand.u32 %v827, 4294901760
    %v829 = vsub.f32 %v827, %v828
    %v830 = vand.u32 %v829, 4294901760
    %831 = vmatpush1.msra.mxu0 %v830
    %832 = vmatprep.subr.mxu0 0.0
    %833 = vmatpush2.msra.mxu0 0.0
    %834 = vmatprep.subr.mxu0 0.0
    %835 = vmatpush2.msra.mxu0 0.0
    %836 = vmatprep.subr.mxu0 0.0
    %837 = vmatpush2.msra.mxu0 0.0
    %838 = vmatprep.subr.mxu0 0.0
    %839 = vmatpush2.msra.mxu0 0.0
    %840 = vmatprep.subr.mxu0 0.0
    %841 = vmatpush2.msra.mxu0 0.0
    %842 = vmatprep.subr.mxu0 0.0
    %843 = vmatpush2.msra.mxu0 0.0
    %844 = vmatprep.subr.mxu0 0.0
    %845 = vmatpush2.msra.mxu0 0.0
    %846 = vmatprep.subr.mxu0 0.0
    %847 = vmatpush2.msra.mxu0 0.0
    %848 = vmatprep.subr.mxu0 0.0
    %849 = vmatpush2.msra.mxu0 0.0
    %850 = vmatprep.subr.mxu0 0.0
    %851 = vmatpush2.msra.mxu0 0.0
    %852 = vmatprep.subr.mxu0 0.0
    %853 = vmatpush2.msra.mxu0 0.0
    %854 = vmatprep.subr.mxu0 0.0
    %855 = vmatpush2.msra.mxu0 0.0
    %856 = vmatprep.subr.mxu0 0.0
    %857 = vmatpush2.msra.mxu0 0.0
    %858 = vmatprep.subr.mxu0 0.0
    %859 = vmatpush2.msra.mxu0 0.0
    %860 = vmatprep.subr.mxu0 0.0
    %861 = vmatpush2.msra.mxu0 0.0
    %862 = vmatprep.subr.mxu0 0.0
    %863 = vmatpush2.msra.mxu0 0.0
    %864 = vmatprep.mubr.f32.mxu0 0.0
    %v865 = vand.u32 %v131, 4294901760
    %866 = vmatmul.mubr.f32.gmra.mxu0 %v865
    %v867 = vpop.f32.mrf.mxu0
    %v868 = vadd.f32 %v756, %v867
    %v869 = vpop.f32.mrf.mxu0
    %v870 = vadd.f32 %v758, %v869
    %871 = vdwg.mxu0
    %872 = vmatprep.subr.mxu0 0.0
    %873 = vmatpush1.msra.mxu0 0.0
    %874 = vmatprep.subr.mxu0 0.0
    %875 = vmatpush1.msra.mxu0 0.0
    %876 = vmatprep.subr.mxu0 0.0
    %877 = vmatpush1.msra.mxu0 0.0
    %878 = vmatprep.subr.mxu0 0.0
    %879 = vmatpush1.msra.mxu0 0.0
    %880 = vmatprep.subr.mxu0 0.0
    %881 = vmatpush1.msra.mxu0 0.0
    %882 = vmatprep.subr.mxu0 0.0
    %883 = vmatpush1.msra.mxu0 0.0
    %884 = vmatprep.subr.mxu0 0.0
    %885 = vmatpush1.msra.mxu0 0.0
    %886 = vmatprep.subr.mxu0 0.0
    %887 = vmatpush1.msra.mxu0 0.0
    %888 = vmatprep.subr.mxu0 0.0
    %889 = vmatpush1.msra.mxu0 0.0
    %890 = vmatprep.subr.mxu0 0.0
    %891 = vmatpush1.msra.mxu0 0.0
    %892 = vmatprep.subr.mxu0 0.0
    %893 = vmatpush1.msra.mxu0 0.0
    %894 = vmatprep.subr.mxu0 0.0
    %895 = vmatpush1.msra.mxu0 0.0
    %v896 = vand.u32 %v82, 4294901760
    %v897 = vsub.f32 %v82, %v896
    %898 = vmatprep.subr.mxu0 %v897
    %v899 = vand.u32 %v81, 4294901760
    %v900 = vsub.f32 %v81, %v899
    %901 = vmatpush1.msra.mxu0 %v900
    %v902 = vand.u32 %v74, 4294901760
    %v903 = vsub.f32 %v74, %v902
    %904 = vmatprep.subr.mxu0 %v903
    %v905 = vand.u32 %v73, 4294901760
    %v906 = vsub.f32 %v73, %v905
    %907 = vmatpush1.msra.mxu0 %v906
    %v908 = vand.u32 %v66, 4294901760
    %v909 = vsub.f32 %v66, %v908
    %910 = vmatprep.subr.mxu0 %v909
    %v911 = vand.u32 %v65, 4294901760
    %v912 = vsub.f32 %v65, %v911
    %913 = vmatpush1.msra.mxu0 %v912
    %v914 = vand.u32 %v58, 4294901760
    %v915 = vsub.f32 %v58, %v914
    %916 = vmatprep.subr.mxu0 %v915
    %v917 = vand.u32 %v57, 4294901760
    %v918 = vsub.f32 %v57, %v917
    %919 = vmatpush1.msra.mxu0 %v918
    %920 = vmatprep.subr.mxu0 0.0
    %921 = vmatpush2.msra.mxu0 0.0
    %922 = vmatprep.subr.mxu0 0.0
    %923 = vmatpush2.msra.mxu0 0.0
    %924 = vmatprep.subr.mxu0 0.0
    %925 = vmatpush2.msra.mxu0 0.0
    %926 = vmatprep.subr.mxu0 0.0
    %927 = vmatpush2.msra.mxu0 0.0
    %928 = vmatprep.subr.mxu0 0.0
    %929 = vmatpush2.msra.mxu0 0.0
    %930 = vmatprep.subr.mxu0 0.0
    %931 = vmatpush2.msra.mxu0 0.0
    %932 = vmatprep.subr.mxu0 0.0
    %933 = vmatpush2.msra.mxu0 0.0
    %934 = vmatprep.subr.mxu0 0.0
    %935 = vmatpush2.msra.mxu0 0.0
    %936 = vmatprep.subr.mxu0 0.0
    %937 = vmatpush2.msra.mxu0 0.0
    %938 = vmatprep.subr.mxu0 0.0
    %939 = vmatpush2.msra.mxu0 0.0
    %940 = vmatprep.subr.mxu0 0.0
    %941 = vmatpush2.msra.mxu0 0.0
    %942 = vmatprep.subr.mxu0 0.0
    %943 = vmatpush2.msra.mxu0 0.0
    %944 = vmatprep.subr.mxu0 0.0
    %945 = vmatpush2.msra.mxu0 0.0
    %946 = vmatprep.subr.mxu0 0.0
    %947 = vmatpush2.msra.mxu0 0.0
    %948 = vmatprep.subr.mxu0 0.0
    %949 = vmatpush2.msra.mxu0 0.0
    %950 = vmatprep.subr.mxu0 0.0
    %951 = vmatpush2.msra.mxu0 0.0
    %952 = vmatprep.mubr.f32.mxu0 0.0
    %v953 = vand.u32 %v131, 4294901760
    %v954 = vsub.f32 %v131, %v953
    %955 = vmatmul.mubr.f32.gmra.mxu0 %v954
    %v956 = vpop.f32.mrf.mxu0
    %v957 = vadd.f32 %v868, %v956
    %v958 = vpop.f32.mrf.mxu0
    %v959 = vadd.f32 %v870, %v958
    %960 = vdwg.mxu0
    %961 = vmatprep.subr.mxu0 0.0
    %962 = vmatpush1.msra.mxu0 0.0
    %963 = vmatprep.subr.mxu0 0.0
    %964 = vmatpush1.msra.mxu0 0.0
    %965 = vmatprep.subr.mxu0 0.0
    %966 = vmatpush1.msra.mxu0 0.0
    %967 = vmatprep.subr.mxu0 0.0
    %968 = vmatpush1.msra.mxu0 0.0
    %969 = vmatprep.subr.mxu0 0.0
    %970 = vmatpush1.msra.mxu0 0.0
    %971 = vmatprep.subr.mxu0 0.0
    %972 = vmatpush1.msra.mxu0 0.0
    %973 = vmatprep.subr.mxu0 0.0
    %974 = vmatpush1.msra.mxu0 0.0
    %975 = vmatprep.subr.mxu0 0.0
    %976 = vmatpush1.msra.mxu0 0.0
    %977 = vmatprep.subr.mxu0 0.0
    %978 = vmatpush1.msra.mxu0 0.0
    %979 = vmatprep.subr.mxu0 0.0
    %980 = vmatpush1.msra.mxu0 0.0
    %981 = vmatprep.subr.mxu0 0.0
    %982 = vmatpush1.msra.mxu0 0.0
    %983 = vmatprep.subr.mxu0 0.0
    %984 = vmatpush1.msra.mxu0 0.0
    %v985 = vand.u32 %v82, 4294901760
    %986 = vmatprep.subr.mxu0 %v985
    %v987 = vand.u32 %v81, 4294901760
    %988 = vmatpush1.msra.mxu0 %v987
    %v989 = vand.u32 %v74, 4294901760
    %990 = vmatprep.subr.mxu0 %v989
    %v991 = vand.u32 %v73, 4294901760
    %992 = vmatpush1.msra.mxu0 %v991
    %v993 = vand.u32 %v66, 4294901760
    %994 = vmatprep.subr.mxu0 %v993
    %v995 = vand.u32 %v65, 4294901760
    %996 = vmatpush1.msra.mxu0 %v995
    %v997 = vand.u32 %v58, 4294901760
    %998 = vmatprep.subr.mxu0 %v997
    %v999 = vand.u32 %v57, 4294901760
    %1000 = vmatpush1.msra.mxu0 %v999
    %1001 = vmatprep.subr.mxu0 0.0
    %1002 = vmatpush2.msra.mxu0 0.0
    %1003 = vmatprep.subr.mxu0 0.0
    %1004 = vmatpush2.msra.mxu0 0.0
    %1005 = vmatprep.subr.mxu0 0.0
    %1006 = vmatpush2.msra.mxu0 0.0
    %1007 = vmatprep.subr.mxu0 0.0
    %1008 = vmatpush2.msra.mxu0 0.0
    %1009 = vmatprep.subr.mxu0 0.0
    %1010 = vmatpush2.msra.mxu0 0.0
    %1011 = vmatprep.subr.mxu0 0.0
    %1012 = vmatpush2.msra.mxu0 0.0
    %1013 = vmatprep.subr.mxu0 0.0
    %1014 = vmatpush2.msra.mxu0 0.0
    %1015 = vmatprep.subr.mxu0 0.0
    %1016 = vmatpush2.msra.mxu0 0.0
    %1017 = vmatprep.subr.mxu0 0.0
    %1018 = vmatpush2.msra.mxu0 0.0
    %1019 = vmatprep.subr.mxu0 0.0
    %1020 = vmatpush2.msra.mxu0 0.0
    %1021 = vmatprep.subr.mxu0 0.0
    %1022 = vmatpush2.msra.mxu0 0.0
    %1023 = vmatprep.subr.mxu0 0.0
    %1024 = vmatpush2.msra.mxu0 0.0
    %1025 = vmatprep.subr.mxu0 0.0
    %1026 = vmatpush2.msra.mxu0 0.0
    %1027 = vmatprep.subr.mxu0 0.0
    %1028 = vmatpush2.msra.mxu0 0.0
    %1029 = vmatprep.subr.mxu0 0.0
    %1030 = vmatpush2.msra.mxu0 0.0
    %1031 = vmatprep.subr.mxu0 0.0
    %1032 = vmatpush2.msra.mxu0 0.0
    %1033 = vmatprep.mubr.f32.mxu0 0.0
    %v1034 = vand.u32 %v131, 4294901760
    %v1035 = vsub.f32 %v131, %v1034
    %v1036 = vand.u32 %v1035, 4294901760
    %1037 = vmatmul.mubr.f32.gmra.mxu0 %v1036
    %v1038 = vpop.f32.mrf.mxu0
    %v1039 = vadd.f32 %v957, %v1038
    %v1040 = vpop.f32.mrf.mxu0
    %v1041 = vadd.f32 %v959, %v1040
    %1042 = vdwg.mxu0
    %1043 = vmatprep.subr.mxu0 0.0
    %1044 = vmatpush1.msra.mxu0 0.0
    %1045 = vmatprep.subr.mxu0 0.0
    %1046 = vmatpush1.msra.mxu0 0.0
    %1047 = vmatprep.subr.mxu0 0.0
    %1048 = vmatpush1.msra.mxu0 0.0
    %1049 = vmatprep.subr.mxu0 0.0
    %1050 = vmatpush1.msra.mxu0 0.0
    %1051 = vmatprep.subr.mxu0 0.0
    %1052 = vmatpush1.msra.mxu0 0.0
    %1053 = vmatprep.subr.mxu0 0.0
    %1054 = vmatpush1.msra.mxu0 0.0
    %1055 = vmatprep.subr.mxu0 0.0
    %1056 = vmatpush1.msra.mxu0 0.0
    %1057 = vmatprep.subr.mxu0 0.0
    %1058 = vmatpush1.msra.mxu0 0.0
    %1059 = vmatprep.subr.mxu0 0.0
    %1060 = vmatpush1.msra.mxu0 0.0
    %1061 = vmatprep.subr.mxu0 0.0
    %1062 = vmatpush1.msra.mxu0 0.0
    %1063 = vmatprep.subr.mxu0 0.0
    %1064 = vmatpush1.msra.mxu0 0.0
    %1065 = vmatprep.subr.mxu0 0.0
    %1066 = vmatpush1.msra.mxu0 0.0
    %v1067 = vand.u32 %v82, 4294901760
    %v1068 = vsub.f32 %v82, %v1067
    %v1069 = vand.u32 %v1068, 4294901760
    %1070 = vmatprep.subr.mxu0 %v1069
    %v1071 = vand.u32 %v81, 4294901760
    %v1072 = vsub.f32 %v81, %v1071
    %v1073 = vand.u32 %v1072, 4294901760
    %1074 = vmatpush1.msra.mxu0 %v1073
    %v1075 = vand.u32 %v74, 4294901760
    %v1076 = vsub.f32 %v74, %v1075
    %v1077 = vand.u32 %v1076, 4294901760
    %1078 = vmatprep.subr.mxu0 %v1077
    %v1079 = vand.u32 %v73, 4294901760
    %v1080 = vsub.f32 %v73, %v1079
    %v1081 = vand.u32 %v1080, 4294901760
    %1082 = vmatpush1.msra.mxu0 %v1081
    %v1083 = vand.u32 %v66, 4294901760
    %v1084 = vsub.f32 %v66, %v1083
    %v1085 = vand.u32 %v1084, 4294901760
    %1086 = vmatprep.subr.mxu0 %v1085
    %v1087 = vand.u32 %v65, 4294901760
    %v1088 = vsub.f32 %v65, %v1087
    %v1089 = vand.u32 %v1088, 4294901760
    %1090 = vmatpush1.msra.mxu0 %v1089
    %v1091 = vand.u32 %v58, 4294901760
    %v1092 = vsub.f32 %v58, %v1091
    %v1093 = vand.u32 %v1092, 4294901760
    %1094 = vmatprep.subr.mxu0 %v1093
    %v1095 = vand.u32 %v57, 4294901760
    %v1096 = vsub.f32 %v57, %v1095
    %v1097 = vand.u32 %v1096, 4294901760
    %1098 = vmatpush1.msra.mxu0 %v1097
    %1099 = vmatprep.subr.mxu0 0.0
    %1100 = vmatpush2.msra.mxu0 0.0
    %1101 = vmatprep.subr.mxu0 0.0
    %1102 = vmatpush2.msra.mxu0 0.0
    %1103 = vmatprep.subr.mxu0 0.0
    %1104 = vmatpush2.msra.mxu0 0.0
    %1105 = vmatprep.subr.mxu0 0.0
    %1106 = vmatpush2.msra.mxu0 0.0
    %1107 = vmatprep.subr.mxu0 0.0
    %1108 = vmatpush2.msra.mxu0 0.0
    %1109 = vmatprep.subr.mxu0 0.0
    %1110 = vmatpush2.msra.mxu0 0.0
    %1111 = vmatprep.subr.mxu0 0.0
    %1112 = vmatpush2.msra.mxu0 0.0
    %1113 = vmatprep.subr.mxu0 0.0
    %1114 = vmatpush2.msra.mxu0 0.0
    %1115 = vmatprep.subr.mxu0 0.0
    %1116 = vmatpush2.msra.mxu0 0.0
    %1117 = vmatprep.subr.mxu0 0.0
    %1118 = vmatpush2.msra.mxu0 0.0
    %1119 = vmatprep.subr.mxu0 0.0
    %1120 = vmatpush2.msra.mxu0 0.0
    %1121 = vmatprep.subr.mxu0 0.0
    %1122 = vmatpush2.msra.mxu0 0.0
    %1123 = vmatprep.subr.mxu0 0.0
    %1124 = vmatpush2.msra.mxu0 0.0
    %1125 = vmatprep.subr.mxu0 0.0
    %1126 = vmatpush2.msra.mxu0 0.0
    %1127 = vmatprep.subr.mxu0 0.0
    %1128 = vmatpush2.msra.mxu0 0.0
    %1129 = vmatprep.subr.mxu0 0.0
    %1130 = vmatpush2.msra.mxu0 0.0
    %1131 = vmatprep.mubr.f32.mxu0 0.0
    %v1132 = vand.u32 %v131, 4294901760
    %1133 = vmatmul.mubr.f32.gmra.mxu0 %v1132
    %v1134 = vpop.f32.mrf.mxu0
    %v1135 = vadd.f32 %v1039, %v1134
    %v1136 = vpop.f32.mrf.mxu0
    %v1137 = vadd.f32 %v1041, %v1136
    %1138 = vdwg.mxu0
    %1139 = vmatprep.subr.mxu0 0.0
    %1140 = vmatpush1.msra.mxu0 0.0
    %1141 = vmatprep.subr.mxu0 0.0
    %1142 = vmatpush1.msra.mxu0 0.0
    %1143 = vmatprep.subr.mxu0 0.0
    %1144 = vmatpush1.msra.mxu0 0.0
    %1145 = vmatprep.subr.mxu0 0.0
    %1146 = vmatpush1.msra.mxu0 0.0
    %1147 = vmatprep.subr.mxu0 0.0
    %1148 = vmatpush1.msra.mxu0 0.0
    %1149 = vmatprep.subr.mxu0 0.0
    %1150 = vmatpush1.msra.mxu0 0.0
    %1151 = vmatprep.subr.mxu0 0.0
    %1152 = vmatpush1.msra.mxu0 0.0
    %1153 = vmatprep.subr.mxu0 0.0
    %1154 = vmatpush1.msra.mxu0 0.0
    %1155 = vmatprep.subr.mxu0 0.0
    %1156 = vmatpush1.msra.mxu0 0.0
    %1157 = vmatprep.subr.mxu0 0.0
    %1158 = vmatpush1.msra.mxu0 0.0
    %1159 = vmatprep.subr.mxu0 0.0
    %1160 = vmatpush1.msra.mxu0 0.0
    %1161 = vmatprep.subr.mxu0 0.0
    %1162 = vmatpush1.msra.mxu0 0.0
    %v1163 = vand.u32 %v82, 4294901760
    %1164 = vmatprep.subr.mxu0 %v1163
    %v1165 = vand.u32 %v81, 4294901760
    %1166 = vmatpush1.msra.mxu0 %v1165
    %v1167 = vand.u32 %v74, 4294901760
    %1168 = vmatprep.subr.mxu0 %v1167
    %v1169 = vand.u32 %v73, 4294901760
    %1170 = vmatpush1.msra.mxu0 %v1169
    %v1171 = vand.u32 %v66, 4294901760
    %1172 = vmatprep.subr.mxu0 %v1171
    %v1173 = vand.u32 %v65, 4294901760
    %1174 = vmatpush1.msra.mxu0 %v1173
    %v1175 = vand.u32 %v58, 4294901760
    %1176 = vmatprep.subr.mxu0 %v1175
    %v1177 = vand.u32 %v57, 4294901760
    %1178 = vmatpush1.msra.mxu0 %v1177
    %1179 = vmatprep.subr.mxu0 0.0
    %1180 = vmatpush2.msra.mxu0 0.0
    %1181 = vmatprep.subr.mxu0 0.0
    %1182 = vmatpush2.msra.mxu0 0.0
    %1183 = vmatprep.subr.mxu0 0.0
    %1184 = vmatpush2.msra.mxu0 0.0
    %1185 = vmatprep.subr.mxu0 0.0
    %1186 = vmatpush2.msra.mxu0 0.0
    %1187 = vmatprep.subr.mxu0 0.0
    %1188 = vmatpush2.msra.mxu0 0.0
    %1189 = vmatprep.subr.mxu0 0.0
    %1190 = vmatpush2.msra.mxu0 0.0
    %1191 = vmatprep.subr.mxu0 0.0
    %1192 = vmatpush2.msra.mxu0 0.0
    %1193 = vmatprep.subr.mxu0 0.0
    %1194 = vmatpush2.msra.mxu0 0.0
    %1195 = vmatprep.subr.mxu0 0.0
    %1196 = vmatpush2.msra.mxu0 0.0
    %1197 = vmatprep.subr.mxu0 0.0
    %1198 = vmatpush2.msra.mxu0 0.0
    %1199 = vmatprep.subr.mxu0 0.0
    %1200 = vmatpush2.msra.mxu0 0.0
    %1201 = vmatprep.subr.mxu0 0.0
    %1202 = vmatpush2.msra.mxu0 0.0
    %1203 = vmatprep.subr.mxu0 0.0
    %1204 = vmatpush2.msra.mxu0 0.0
    %1205 = vmatprep.subr.mxu0 0.0
    %1206 = vmatpush2.msra.mxu0 0.0
    %1207 = vmatprep.subr.mxu0 0.0
    %1208 = vmatpush2.msra.mxu0 0.0
    %1209 = vmatprep.subr.mxu0 0.0
    %1210 = vmatpush2.msra.mxu0 0.0
    %1211 = vmatprep.mubr.f32.mxu0 0.0
    %v1212 = vand.u32 %v131, 4294901760
    %1213 = vmatmul.mubr.f32.gmra.mxu0 %v1212
    %v1214 = vpop.f32.mrf.mxu0
    %v1215 = vadd.f32 %v1135, %v1214
    %v1216 = vpop.f32.mrf.mxu0
    %v1217 = vadd.f32 %v1137, %v1216
    %1218 = vdwg.mxu0
    %1219 = vmatprep.subr.mxu0 0.0
    %1220 = vmatpush1.msra.mxu0 0.0
    %1221 = vmatprep.subr.mxu0 0.0
    %1222 = vmatpush1.msra.mxu0 0.0
    %1223 = vmatprep.subr.mxu0 0.0
    %1224 = vmatpush1.msra.mxu0 0.0
    %1225 = vmatprep.subr.mxu0 0.0
    %1226 = vmatpush1.msra.mxu0 0.0
    %1227 = vmatprep.subr.mxu0 0.0
    %1228 = vmatpush1.msra.mxu0 0.0
    %1229 = vmatprep.subr.mxu0 0.0
    %1230 = vmatpush1.msra.mxu0 0.0
    %1231 = vmatprep.subr.mxu0 0.0
    %1232 = vmatpush1.msra.mxu0 0.0
    %1233 = vmatprep.subr.mxu0 0.0
    %1234 = vmatpush1.msra.mxu0 0.0
    %1235 = vmatprep.subr.mxu0 0.0
    %1236 = vmatpush1.msra.mxu0 0.0
    %1237 = vmatprep.subr.mxu0 0.0
    %1238 = vmatpush1.msra.mxu0 0.0
    %1239 = vmatprep.subr.mxu0 0.0
    %1240 = vmatpush1.msra.mxu0 0.0
    %1241 = vmatprep.subr.mxu0 0.0
    %1242 = vmatpush1.msra.mxu0 0.0
    %v1243 = vand.u32 %v84, 4294901760
    %1244 = vmatprep.subr.mxu0 %v1243
    %v1245 = vand.u32 %v83, 4294901760
    %1246 = vmatpush1.msra.mxu0 %v1245
    %v1247 = vand.u32 %v76, 4294901760
    %1248 = vmatprep.subr.mxu0 %v1247
    %v1249 = vand.u32 %v75, 4294901760
    %1250 = vmatpush1.msra.mxu0 %v1249
    %v1251 = vand.u32 %v68, 4294901760
    %1252 = vmatprep.subr.mxu0 %v1251
    %v1253 = vand.u32 %v67, 4294901760
    %1254 = vmatpush1.msra.mxu0 %v1253
    %v1255 = vand.u32 %v60, 4294901760
    %1256 = vmatprep.subr.mxu0 %v1255
    %v1257 = vand.u32 %v59, 4294901760
    %1258 = vmatpush1.msra.mxu0 %v1257
    %1259 = vmatprep.subr.mxu0 0.0
    %1260 = vmatpush2.msra.mxu0 0.0
    %1261 = vmatprep.subr.mxu0 0.0
    %1262 = vmatpush2.msra.mxu0 0.0
    %1263 = vmatprep.subr.mxu0 0.0
    %1264 = vmatpush2.msra.mxu0 0.0
    %1265 = vmatprep.subr.mxu0 0.0
    %1266 = vmatpush2.msra.mxu0 0.0
    %1267 = vmatprep.subr.mxu0 0.0
    %1268 = vmatpush2.msra.mxu0 0.0
    %1269 = vmatprep.subr.mxu0 0.0
    %1270 = vmatpush2.msra.mxu0 0.0
    %1271 = vmatprep.subr.mxu0 0.0
    %1272 = vmatpush2.msra.mxu0 0.0
    %1273 = vmatprep.subr.mxu0 0.0
    %1274 = vmatpush2.msra.mxu0 0.0
    %1275 = vmatprep.subr.mxu0 0.0
    %1276 = vmatpush2.msra.mxu0 0.0
    %1277 = vmatprep.subr.mxu0 0.0
    %1278 = vmatpush2.msra.mxu0 0.0
    %1279 = vmatprep.subr.mxu0 0.0
    %1280 = vmatpush2.msra.mxu0 0.0
    %1281 = vmatprep.subr.mxu0 0.0
    %1282 = vmatpush2.msra.mxu0 0.0
    %1283 = vmatprep.subr.mxu0 0.0
    %1284 = vmatpush2.msra.mxu0 0.0
    %1285 = vmatprep.subr.mxu0 0.0
    %1286 = vmatpush2.msra.mxu0 0.0
    %1287 = vmatprep.subr.mxu0 0.0
    %1288 = vmatpush2.msra.mxu0 0.0
    %1289 = vmatprep.subr.mxu0 0.0
    %1290 = vmatpush2.msra.mxu0 0.0
    %1291 = vmatprep.mubr.f32.mxu0 0.0
    %v1292 = vand.u32 %v131, 4294901760
    %v1293 = vsub.f32 %v131, %v1292
    %v1294 = vand.u32 %v1293, 4294901760
    %v1295 = vsub.f32 %v1293, %v1294
    %v1296 = vand.u32 %v1295, 4294901760
    %1297 = vmatmul.mubr.f32.gmra.mxu0 %v1296
    %v1298 = vpop.f32.mrf.mxu0
    %v1299 = vadd.f32 %v108, %v1298
    %v1300 = vpop.f32.mrf.mxu0
    %v1301 = vadd.f32 %v112, %v1300
    %1302 = vdwg.mxu0
    %1303 = vmatprep.subr.mxu0 0.0
    %1304 = vmatpush1.msra.mxu0 0.0
    %1305 = vmatprep.subr.mxu0 0.0
    %1306 = vmatpush1.msra.mxu0 0.0
    %1307 = vmatprep.subr.mxu0 0.0
    %1308 = vmatpush1.msra.mxu0 0.0
    %1309 = vmatprep.subr.mxu0 0.0
    %1310 = vmatpush1.msra.mxu0 0.0
    %1311 = vmatprep.subr.mxu0 0.0
    %1312 = vmatpush1.msra.mxu0 0.0
    %1313 = vmatprep.subr.mxu0 0.0
    %1314 = vmatpush1.msra.mxu0 0.0
    %1315 = vmatprep.subr.mxu0 0.0
    %1316 = vmatpush1.msra.mxu0 0.0
    %1317 = vmatprep.subr.mxu0 0.0
    %1318 = vmatpush1.msra.mxu0 0.0
    %1319 = vmatprep.subr.mxu0 0.0
    %1320 = vmatpush1.msra.mxu0 0.0
    %1321 = vmatprep.subr.mxu0 0.0
    %1322 = vmatpush1.msra.mxu0 0.0
    %1323 = vmatprep.subr.mxu0 0.0
    %1324 = vmatpush1.msra.mxu0 0.0
    %1325 = vmatprep.subr.mxu0 0.0
    %1326 = vmatpush1.msra.mxu0 0.0
    %v1327 = vand.u32 %v84, 4294901760
    %v1328 = vsub.f32 %v84, %v1327
    %v1329 = vand.u32 %v1328, 4294901760
    %v1330 = vsub.f32 %v1328, %v1329
    %v1331 = vand.u32 %v1330, 4294901760
    %1332 = vmatprep.subr.mxu0 %v1331
    %v1333 = vand.u32 %v83, 4294901760
    %v1334 = vsub.f32 %v83, %v1333
    %v1335 = vand.u32 %v1334, 4294901760
    %v1336 = vsub.f32 %v1334, %v1335
    %v1337 = vand.u32 %v1336, 4294901760
    %1338 = vmatpush1.msra.mxu0 %v1337
    %v1339 = vand.u32 %v76, 4294901760
    %v1340 = vsub.f32 %v76, %v1339
    %v1341 = vand.u32 %v1340, 4294901760
    %v1342 = vsub.f32 %v1340, %v1341
    %v1343 = vand.u32 %v1342, 4294901760
    %1344 = vmatprep.subr.mxu0 %v1343
    %v1345 = vand.u32 %v75, 4294901760
    %v1346 = vsub.f32 %v75, %v1345
    %v1347 = vand.u32 %v1346, 4294901760
    %v1348 = vsub.f32 %v1346, %v1347
    %v1349 = vand.u32 %v1348, 4294901760
    %1350 = vmatpush1.msra.mxu0 %v1349
    %v1351 = vand.u32 %v68, 4294901760
    %v1352 = vsub.f32 %v68, %v1351
    %v1353 = vand.u32 %v1352, 4294901760
    %v1354 = vsub.f32 %v1352, %v1353
    %v1355 = vand.u32 %v1354, 4294901760
    %1356 = vmatprep.subr.mxu0 %v1355
    %v1357 = vand.u32 %v67, 4294901760
    %v1358 = vsub.f32 %v67, %v1357
    %v1359 = vand.u32 %v1358, 4294901760
    %v1360 = vsub.f32 %v1358, %v1359
    %v1361 = vand.u32 %v1360, 4294901760
    %1362 = vmatpush1.msra.mxu0 %v1361
    %v1363 = vand.u32 %v60, 4294901760
    %v1364 = vsub.f32 %v60, %v1363
    %v1365 = vand.u32 %v1364, 4294901760
    %v1366 = vsub.f32 %v1364, %v1365
    %v1367 = vand.u32 %v1366, 4294901760
    %1368 = vmatprep.subr.mxu0 %v1367
    %v1369 = vand.u32 %v59, 4294901760
    %v1370 = vsub.f32 %v59, %v1369
    %v1371 = vand.u32 %v1370, 4294901760
    %v1372 = vsub.f32 %v1370, %v1371
    %v1373 = vand.u32 %v1372, 4294901760
    %1374 = vmatpush1.msra.mxu0 %v1373
    %1375 = vmatprep.subr.mxu0 0.0
    %1376 = vmatpush2.msra.mxu0 0.0
    %1377 = vmatprep.subr.mxu0 0.0
    %1378 = vmatpush2.msra.mxu0 0.0
    %1379 = vmatprep.subr.mxu0 0.0
    %1380 = vmatpush2.msra.mxu0 0.0
    %1381 = vmatprep.subr.mxu0 0.0
    %1382 = vmatpush2.msra.mxu0 0.0
    %1383 = vmatprep.subr.mxu0 0.0
    %1384 = vmatpush2.msra.mxu0 0.0
    %1385 = vmatprep.subr.mxu0 0.0
    %1386 = vmatpush2.msra.mxu0 0.0
    %1387 = vmatprep.subr.mxu0 0.0
    %1388 = vmatpush2.msra.mxu0 0.0
    %1389 = vmatprep.subr.mxu0 0.0
    %1390 = vmatpush2.msra.mxu0 0.0
    %1391 = vmatprep.subr.mxu0 0.0
    %1392 = vmatpush2.msra.mxu0 0.0
    %1393 = vmatprep.subr.mxu0 0.0
    %1394 = vmatpush2.msra.mxu0 0.0
    %1395 = vmatprep.subr.mxu0 0.0
    %1396 = vmatpush2.msra.mxu0 0.0
    %1397 = vmatprep.subr.mxu0 0.0
    %1398 = vmatpush2.msra.mxu0 0.0
    %1399 = vmatprep.subr.mxu0 0.0
    %1400 = vmatpush2.msra.mxu0 0.0
    %1401 = vmatprep.subr.mxu0 0.0
    %1402 = vmatpush2.msra.mxu0 0.0
    %1403 = vmatprep.subr.mxu0 0.0
    %1404 = vmatpush2.msra.mxu0 0.0
    %1405 = vmatprep.subr.mxu0 0.0
    %1406 = vmatpush2.msra.mxu0 0.0
    %1407 = vmatprep.mubr.f32.mxu0 0.0
    %v1408 = vand.u32 %v131, 4294901760
    %1409 = vmatmul.mubr.f32.gmra.mxu0 %v1408
    %v1410 = vpop.f32.mrf.mxu0
    %v1411 = vadd.f32 %v1299, %v1410
    %v1412 = vpop.f32.mrf.mxu0
    %v1413 = vadd.f32 %v1301, %v1412
    %1414 = vdwg.mxu0
    %1415 = vmatprep.subr.mxu0 0.0
    %1416 = vmatpush1.msra.mxu0 0.0
    %1417 = vmatprep.subr.mxu0 0.0
    %1418 = vmatpush1.msra.mxu0 0.0
    %1419 = vmatprep.subr.mxu0 0.0
    %1420 = vmatpush1.msra.mxu0 0.0
    %1421 = vmatprep.subr.mxu0 0.0
    %1422 = vmatpush1.msra.mxu0 0.0
    %1423 = vmatprep.subr.mxu0 0.0
    %1424 = vmatpush1.msra.mxu0 0.0
    %1425 = vmatprep.subr.mxu0 0.0
    %1426 = vmatpush1.msra.mxu0 0.0
    %1427 = vmatprep.subr.mxu0 0.0
    %1428 = vmatpush1.msra.mxu0 0.0
    %1429 = vmatprep.subr.mxu0 0.0
    %1430 = vmatpush1.msra.mxu0 0.0
    %1431 = vmatprep.subr.mxu0 0.0
    %1432 = vmatpush1.msra.mxu0 0.0
    %1433 = vmatprep.subr.mxu0 0.0
    %1434 = vmatpush1.msra.mxu0 0.0
    %1435 = vmatprep.subr.mxu0 0.0
    %1436 = vmatpush1.msra.mxu0 0.0
    %1437 = vmatprep.subr.mxu0 0.0
    %1438 = vmatpush1.msra.mxu0 0.0
    %v1439 = vand.u32 %v84, 4294901760
    %v1440 = vsub.f32 %v84, %v1439
    %1441 = vmatprep.subr.mxu0 %v1440
    %v1442 = vand.u32 %v83, 4294901760
    %v1443 = vsub.f32 %v83, %v1442
    %1444 = vmatpush1.msra.mxu0 %v1443
    %v1445 = vand.u32 %v76, 4294901760
    %v1446 = vsub.f32 %v76, %v1445
    %1447 = vmatprep.subr.mxu0 %v1446
    %v1448 = vand.u32 %v75, 4294901760
    %v1449 = vsub.f32 %v75, %v1448
    %1450 = vmatpush1.msra.mxu0 %v1449
    %v1451 = vand.u32 %v68, 4294901760
    %v1452 = vsub.f32 %v68, %v1451
    %1453 = vmatprep.subr.mxu0 %v1452
    %v1454 = vand.u32 %v67, 4294901760
    %v1455 = vsub.f32 %v67, %v1454
    %1456 = vmatpush1.msra.mxu0 %v1455
    %v1457 = vand.u32 %v60, 4294901760
    %v1458 = vsub.f32 %v60, %v1457
    %1459 = vmatprep.subr.mxu0 %v1458
    %v1460 = vand.u32 %v59, 4294901760
    %v1461 = vsub.f32 %v59, %v1460
    %1462 = vmatpush1.msra.mxu0 %v1461
    %1463 = vmatprep.subr.mxu0 0.0
    %1464 = vmatpush2.msra.mxu0 0.0
    %1465 = vmatprep.subr.mxu0 0.0
    %1466 = vmatpush2.msra.mxu0 0.0
    %1467 = vmatprep.subr.mxu0 0.0
    %1468 = vmatpush2.msra.mxu0 0.0
    %1469 = vmatprep.subr.mxu0 0.0
    %1470 = vmatpush2.msra.mxu0 0.0
    %1471 = vmatprep.subr.mxu0 0.0
    %1472 = vmatpush2.msra.mxu0 0.0
    %1473 = vmatprep.subr.mxu0 0.0
    %1474 = vmatpush2.msra.mxu0 0.0
    %1475 = vmatprep.subr.mxu0 0.0
    %1476 = vmatpush2.msra.mxu0 0.0
    %1477 = vmatprep.subr.mxu0 0.0
    %1478 = vmatpush2.msra.mxu0 0.0
    %1479 = vmatprep.subr.mxu0 0.0
    %1480 = vmatpush2.msra.mxu0 0.0
    %1481 = vmatprep.subr.mxu0 0.0
    %1482 = vmatpush2.msra.mxu0 0.0
    %1483 = vmatprep.subr.mxu0 0.0
    %1484 = vmatpush2.msra.mxu0 0.0
    %1485 = vmatprep.subr.mxu0 0.0
    %1486 = vmatpush2.msra.mxu0 0.0
    %1487 = vmatprep.subr.mxu0 0.0
    %1488 = vmatpush2.msra.mxu0 0.0
    %1489 = vmatprep.subr.mxu0 0.0
    %1490 = vmatpush2.msra.mxu0 0.0
    %1491 = vmatprep.subr.mxu0 0.0
    %1492 = vmatpush2.msra.mxu0 0.0
    %1493 = vmatprep.subr.mxu0 0.0
    %1494 = vmatpush2.msra.mxu0 0.0
    %1495 = vmatprep.mubr.f32.mxu0 0.0
    %v1496 = vand.u32 %v131, 4294901760
    %v1497 = vsub.f32 %v131, %v1496
    %1498 = vmatmul.mubr.f32.gmra.mxu0 %v1497
    %v1499 = vpop.f32.mrf.mxu0
    %v1500 = vadd.f32 %v1411, %v1499
    %v1501 = vpop.f32.mrf.mxu0
    %v1502 = vadd.f32 %v1413, %v1501
    %1503 = vdwg.mxu0
    %1504 = vmatprep.subr.mxu0 0.0
    %1505 = vmatpush1.msra.mxu0 0.0
    %1506 = vmatprep.subr.mxu0 0.0
    %1507 = vmatpush1.msra.mxu0 0.0
    %1508 = vmatprep.subr.mxu0 0.0
    %1509 = vmatpush1.msra.mxu0 0.0
    %1510 = vmatprep.subr.mxu0 0.0
    %1511 = vmatpush1.msra.mxu0 0.0
    %1512 = vmatprep.subr.mxu0 0.0
    %1513 = vmatpush1.msra.mxu0 0.0
    %1514 = vmatprep.subr.mxu0 0.0
    %1515 = vmatpush1.msra.mxu0 0.0
    %1516 = vmatprep.subr.mxu0 0.0
    %1517 = vmatpush1.msra.mxu0 0.0
    %1518 = vmatprep.subr.mxu0 0.0
    %1519 = vmatpush1.msra.mxu0 0.0
    %1520 = vmatprep.subr.mxu0 0.0
    %1521 = vmatpush1.msra.mxu0 0.0
    %1522 = vmatprep.subr.mxu0 0.0
    %1523 = vmatpush1.msra.mxu0 0.0
    %1524 = vmatprep.subr.mxu0 0.0
    %1525 = vmatpush1.msra.mxu0 0.0
    %1526 = vmatprep.subr.mxu0 0.0
    %1527 = vmatpush1.msra.mxu0 0.0
    %v1528 = vand.u32 %v84, 4294901760
    %1529 = vmatprep.subr.mxu0 %v1528
    %v1530 = vand.u32 %v83, 4294901760
    %1531 = vmatpush1.msra.mxu0 %v1530
    %v1532 = vand.u32 %v76, 4294901760
    %1533 = vmatprep.subr.mxu0 %v1532
    %v1534 = vand.u32 %v75, 4294901760
    %1535 = vmatpush1.msra.mxu0 %v1534
    %v1536 = vand.u32 %v68, 4294901760
    %1537 = vmatprep.subr.mxu0 %v1536
    %v1538 = vand.u32 %v67, 4294901760
    %1539 = vmatpush1.msra.mxu0 %v1538
    %v1540 = vand.u32 %v60, 4294901760
    %1541 = vmatprep.subr.mxu0 %v1540
    %v1542 = vand.u32 %v59, 4294901760
    %1543 = vmatpush1.msra.mxu0 %v1542
    %1544 = vmatprep.subr.mxu0 0.0
    %1545 = vmatpush2.msra.mxu0 0.0
    %1546 = vmatprep.subr.mxu0 0.0
    %1547 = vmatpush2.msra.mxu0 0.0
    %1548 = vmatprep.subr.mxu0 0.0
    %1549 = vmatpush2.msra.mxu0 0.0
    %1550 = vmatprep.subr.mxu0 0.0
    %1551 = vmatpush2.msra.mxu0 0.0
    %1552 = vmatprep.subr.mxu0 0.0
    %1553 = vmatpush2.msra.mxu0 0.0
    %1554 = vmatprep.subr.mxu0 0.0
    %1555 = vmatpush2.msra.mxu0 0.0
    %1556 = vmatprep.subr.mxu0 0.0
    %1557 = vmatpush2.msra.mxu0 0.0
    %1558 = vmatprep.subr.mxu0 0.0
    %1559 = vmatpush2.msra.mxu0 0.0
    %1560 = vmatprep.subr.mxu0 0.0
    %1561 = vmatpush2.msra.mxu0 0.0
    %1562 = vmatprep.subr.mxu0 0.0
    %1563 = vmatpush2.msra.mxu0 0.0
    %1564 = vmatprep.subr.mxu0 0.0
    %1565 = vmatpush2.msra.mxu0 0.0
    %1566 = vmatprep.subr.mxu0 0.0
    %1567 = vmatpush2.msra.mxu0 0.0
    %1568 = vmatprep.subr.mxu0 0.0
    %1569 = vmatpush2.msra.mxu0 0.0
    %1570 = vmatprep.subr.mxu0 0.0
    %1571 = vmatpush2.msra.mxu0 0.0
    %1572 = vmatprep.subr.mxu0 0.0
    %1573 = vmatpush2.msra.mxu0 0.0
    %1574 = vmatprep.subr.mxu0 0.0
    %1575 = vmatpush2.msra.mxu0 0.0
    %1576 = vmatprep.mubr.f32.mxu0 0.0
    %v1577 = vand.u32 %v131, 4294901760
    %v1578 = vsub.f32 %v131, %v1577
    %v1579 = vand.u32 %v1578, 4294901760
    %1580 = vmatmul.mubr.f32.gmra.mxu0 %v1579
    %v1581 = vpop.f32.mrf.mxu0
    %v1582 = vadd.f32 %v1500, %v1581
    %v1583 = vpop.f32.mrf.mxu0
    %v1584 = vadd.f32 %v1502, %v1583
    %1585 = vdwg.mxu0
    %1586 = vmatprep.subr.mxu0 0.0
    %1587 = vmatpush1.msra.mxu0 0.0
    %1588 = vmatprep.subr.mxu0 0.0
    %1589 = vmatpush1.msra.mxu0 0.0
    %1590 = vmatprep.subr.mxu0 0.0
    %1591 = vmatpush1.msra.mxu0 0.0
    %1592 = vmatprep.subr.mxu0 0.0
    %1593 = vmatpush1.msra.mxu0 0.0
    %1594 = vmatprep.subr.mxu0 0.0
    %1595 = vmatpush1.msra.mxu0 0.0
    %1596 = vmatprep.subr.mxu0 0.0
    %1597 = vmatpush1.msra.mxu0 0.0
    %1598 = vmatprep.subr.mxu0 0.0
    %1599 = vmatpush1.msra.mxu0 0.0
    %1600 = vmatprep.subr.mxu0 0.0
    %1601 = vmatpush1.msra.mxu0 0.0
    %1602 = vmatprep.subr.mxu0 0.0
    %1603 = vmatpush1.msra.mxu0 0.0
    %1604 = vmatprep.subr.mxu0 0.0
    %1605 = vmatpush1.msra.mxu0 0.0
    %1606 = vmatprep.subr.mxu0 0.0
    %1607 = vmatpush1.msra.mxu0 0.0
    %1608 = vmatprep.subr.mxu0 0.0
    %1609 = vmatpush1.msra.mxu0 0.0
    %v1610 = vand.u32 %v84, 4294901760
    %v1611 = vsub.f32 %v84, %v1610
    %v1612 = vand.u32 %v1611, 4294901760
    %1613 = vmatprep.subr.mxu0 %v1612
    %v1614 = vand.u32 %v83, 4294901760
    %v1615 = vsub.f32 %v83, %v1614
    %v1616 = vand.u32 %v1615, 4294901760
    %1617 = vmatpush1.msra.mxu0 %v1616
    %v1618 = vand.u32 %v76, 4294901760
    %v1619 = vsub.f32 %v76, %v1618
    %v1620 = vand.u32 %v1619, 4294901760
    %1621 = vmatprep.subr.mxu0 %v1620
    %v1622 = vand.u32 %v75, 4294901760
    %v1623 = vsub.f32 %v75, %v1622
    %v1624 = vand.u32 %v1623, 4294901760
    %1625 = vmatpush1.msra.mxu0 %v1624
    %v1626 = vand.u32 %v68, 4294901760
    %v1627 = vsub.f32 %v68, %v1626
    %v1628 = vand.u32 %v1627, 4294901760
    %1629 = vmatprep.subr.mxu0 %v1628
    %v1630 = vand.u32 %v67, 4294901760
    %v1631 = vsub.f32 %v67, %v1630
    %v1632 = vand.u32 %v1631, 4294901760
    %1633 = vmatpush1.msra.mxu0 %v1632
    %v1634 = vand.u32 %v60, 4294901760
    %v1635 = vsub.f32 %v60, %v1634
    %v1636 = vand.u32 %v1635, 4294901760
    %1637 = vmatprep.subr.mxu0 %v1636
    %v1638 = vand.u32 %v59, 4294901760
    %v1639 = vsub.f32 %v59, %v1638
    %v1640 = vand.u32 %v1639, 4294901760
    %1641 = vmatpush1.msra.mxu0 %v1640
    %1642 = vmatprep.subr.mxu0 0.0
    %1643 = vmatpush2.msra.mxu0 0.0
    %1644 = vmatprep.subr.mxu0 0.0
    %1645 = vmatpush2.msra.mxu0 0.0
    %1646 = vmatprep.subr.mxu0 0.0
    %1647 = vmatpush2.msra.mxu0 0.0
    %1648 = vmatprep.subr.mxu0 0.0
    %1649 = vmatpush2.msra.mxu0 0.0
    %1650 = vmatprep.subr.mxu0 0.0
    %1651 = vmatpush2.msra.mxu0 0.0
    %1652 = vmatprep.subr.mxu0 0.0
    %1653 = vmatpush2.msra.mxu0 0.0
    %1654 = vmatprep.subr.mxu0 0.0
    %1655 = vmatpush2.msra.mxu0 0.0
    %1656 = vmatprep.subr.mxu0 0.0
    %1657 = vmatpush2.msra.mxu0 0.0
    %1658 = vmatprep.subr.mxu0 0.0
    %1659 = vmatpush2.msra.mxu0 0.0
    %1660 = vmatprep.subr.mxu0 0.0
    %1661 = vmatpush2.msra.mxu0 0.0
    %1662 = vmatprep.subr.mxu0 0.0
    %1663 = vmatpush2.msra.mxu0 0.0
    %1664 = vmatprep.subr.mxu0 0.0
    %1665 = vmatpush2.msra.mxu0 0.0
    %1666 = vmatprep.subr.mxu0 0.0
    %1667 = vmatpush2.msra.mxu0 0.0
    %1668 = vmatprep.subr.mxu0 0.0
    %1669 = vmatpush2.msra.mxu0 0.0
    %1670 = vmatprep.subr.mxu0 0.0
    %1671 = vmatpush2.msra.mxu0 0.0
    %1672 = vmatprep.subr.mxu0 0.0
    %1673 = vmatpush2.msra.mxu0 0.0
    %1674 = vmatprep.mubr.f32.mxu0 0.0
    %v1675 = vand.u32 %v131, 4294901760
    %1676 = vmatmul.mubr.f32.gmra.mxu0 %v1675
    %v1677 = vpop.f32.mrf.mxu0
    %v1678 = vadd.f32 %v1582, %v1677
    %v1679 = vpop.f32.mrf.mxu0
    %v1680 = vadd.f32 %v1584, %v1679
    %1681 = vdwg.mxu0
    %1682 = vmatprep.subr.mxu0 0.0
    %1683 = vmatpush1.msra.mxu0 0.0
    %1684 = vmatprep.subr.mxu0 0.0
    %1685 = vmatpush1.msra.mxu0 0.0
    %1686 = vmatprep.subr.mxu0 0.0
    %1687 = vmatpush1.msra.mxu0 0.0
    %1688 = vmatprep.subr.mxu0 0.0
    %1689 = vmatpush1.msra.mxu0 0.0
    %1690 = vmatprep.subr.mxu0 0.0
    %1691 = vmatpush1.msra.mxu0 0.0
    %1692 = vmatprep.subr.mxu0 0.0
    %1693 = vmatpush1.msra.mxu0 0.0
    %1694 = vmatprep.subr.mxu0 0.0
    %1695 = vmatpush1.msra.mxu0 0.0
    %1696 = vmatprep.subr.mxu0 0.0
    %1697 = vmatpush1.msra.mxu0 0.0
    %1698 = vmatprep.subr.mxu0 0.0
    %1699 = vmatpush1.msra.mxu0 0.0
    %1700 = vmatprep.subr.mxu0 0.0
    %1701 = vmatpush1.msra.mxu0 0.0
    %1702 = vmatprep.subr.mxu0 0.0
    %1703 = vmatpush1.msra.mxu0 0.0
    %1704 = vmatprep.subr.mxu0 0.0
    %1705 = vmatpush1.msra.mxu0 0.0
    %v1706 = vand.u32 %v84, 4294901760
    %1707 = vmatprep.subr.mxu0 %v1706
    %v1708 = vand.u32 %v83, 4294901760
    %1709 = vmatpush1.msra.mxu0 %v1708
    %v1710 = vand.u32 %v76, 4294901760
    %1711 = vmatprep.subr.mxu0 %v1710
    %v1712 = vand.u32 %v75, 4294901760
    %1713 = vmatpush1.msra.mxu0 %v1712
    %v1714 = vand.u32 %v68, 4294901760
    %1715 = vmatprep.subr.mxu0 %v1714
    %v1716 = vand.u32 %v67, 4294901760
    %1717 = vmatpush1.msra.mxu0 %v1716
    %v1718 = vand.u32 %v60, 4294901760
    %1719 = vmatprep.subr.mxu0 %v1718
    %v1720 = vand.u32 %v59, 4294901760
    %1721 = vmatpush1.msra.mxu0 %v1720
    %1722 = vmatprep.subr.mxu0 0.0
    %1723 = vmatpush2.msra.mxu0 0.0
    %1724 = vmatprep.subr.mxu0 0.0
    %1725 = vmatpush2.msra.mxu0 0.0
    %1726 = vmatprep.subr.mxu0 0.0
    %1727 = vmatpush2.msra.mxu0 0.0
    %1728 = vmatprep.subr.mxu0 0.0
    %1729 = vmatpush2.msra.mxu0 0.0
    %1730 = vmatprep.subr.mxu0 0.0
    %1731 = vmatpush2.msra.mxu0 0.0
    %1732 = vmatprep.subr.mxu0 0.0
    %1733 = vmatpush2.msra.mxu0 0.0
    %1734 = vmatprep.subr.mxu0 0.0
    %1735 = vmatpush2.msra.mxu0 0.0
    %1736 = vmatprep.subr.mxu0 0.0
    %1737 = vmatpush2.msra.mxu0 0.0
    %1738 = vmatprep.subr.mxu0 0.0
    %1739 = vmatpush2.msra.mxu0 0.0
    %1740 = vmatprep.subr.mxu0 0.0
    %1741 = vmatpush2.msra.mxu0 0.0
    %1742 = vmatprep.subr.mxu0 0.0
    %1743 = vmatpush2.msra.mxu0 0.0
    %1744 = vmatprep.subr.mxu0 0.0
    %1745 = vmatpush2.msra.mxu0 0.0
    %1746 = vmatprep.subr.mxu0 0.0
    %1747 = vmatpush2.msra.mxu0 0.0
    %1748 = vmatprep.subr.mxu0 0.0
    %1749 = vmatpush2.msra.mxu0 0.0
    %1750 = vmatprep.subr.mxu0 0.0
    %1751 = vmatpush2.msra.mxu0 0.0
    %1752 = vmatprep.subr.mxu0 0.0
    %1753 = vmatpush2.msra.mxu0 0.0
    %1754 = vmatprep.mubr.f32.mxu0 0.0
    %v1755 = vand.u32 %v131, 4294901760
    %1756 = vmatmul.mubr.f32.gmra.mxu0 %v1755
    %v1757 = vpop.f32.mrf.mxu0
    %v1758 = vadd.f32 %v1678, %v1757
    %v1759 = vpop.f32.mrf.mxu0
    %v1760 = vadd.f32 %v1680, %v1759
    %1761 = vdwg.mxu0
    %1762 = vmatprep.subr.mxu0 0.0
    %1763 = vmatpush1.msra.mxu0 0.0
    %1764 = vmatprep.subr.mxu0 0.0
    %1765 = vmatpush1.msra.mxu0 0.0
    %1766 = vmatprep.subr.mxu0 0.0
    %1767 = vmatpush1.msra.mxu0 0.0
    %1768 = vmatprep.subr.mxu0 0.0
    %1769 = vmatpush1.msra.mxu0 0.0
    %1770 = vmatprep.subr.mxu0 0.0
    %1771 = vmatpush1.msra.mxu0 0.0
    %1772 = vmatprep.subr.mxu0 0.0
    %1773 = vmatpush1.msra.mxu0 0.0
    %1774 = vmatprep.subr.mxu0 0.0
    %1775 = vmatpush1.msra.mxu0 0.0
    %1776 = vmatprep.subr.mxu0 0.0
    %1777 = vmatpush1.msra.mxu0 0.0
    %1778 = vmatprep.subr.mxu0 0.0
    %1779 = vmatpush1.msra.mxu0 0.0
    %1780 = vmatprep.subr.mxu0 0.0
    %1781 = vmatpush1.msra.mxu0 0.0
    %1782 = vmatprep.subr.mxu0 0.0
    %1783 = vmatpush1.msra.mxu0 0.0
    %1784 = vmatprep.subr.mxu0 0.0
    %1785 = vmatpush1.msra.mxu0 0.0
    %v1786 = vand.u32 %v86, 4294901760
    %1787 = vmatprep.subr.mxu0 %v1786
    %v1788 = vand.u32 %v85, 4294901760
    %1789 = vmatpush1.msra.mxu0 %v1788
    %v1790 = vand.u32 %v78, 4294901760
    %1791 = vmatprep.subr.mxu0 %v1790
    %v1792 = vand.u32 %v77, 4294901760
    %1793 = vmatpush1.msra.mxu0 %v1792
    %v1794 = vand.u32 %v70, 4294901760
    %1795 = vmatprep.subr.mxu0 %v1794
    %v1796 = vand.u32 %v69, 4294901760
    %1797 = vmatpush1.msra.mxu0 %v1796
    %v1798 = vand.u32 %v62, 4294901760
    %1799 = vmatprep.subr.mxu0 %v1798
    %v1800 = vand.u32 %v61, 4294901760
    %1801 = vmatpush1.msra.mxu0 %v1800
    %1802 = vmatprep.subr.mxu0 0.0
    %1803 = vmatpush2.msra.mxu0 0.0
    %1804 = vmatprep.subr.mxu0 0.0
    %1805 = vmatpush2.msra.mxu0 0.0
    %1806 = vmatprep.subr.mxu0 0.0
    %1807 = vmatpush2.msra.mxu0 0.0
    %1808 = vmatprep.subr.mxu0 0.0
    %1809 = vmatpush2.msra.mxu0 0.0
    %1810 = vmatprep.subr.mxu0 0.0
    %1811 = vmatpush2.msra.mxu0 0.0
    %1812 = vmatprep.subr.mxu0 0.0
    %1813 = vmatpush2.msra.mxu0 0.0
    %1814 = vmatprep.subr.mxu0 0.0
    %1815 = vmatpush2.msra.mxu0 0.0
    %1816 = vmatprep.subr.mxu0 0.0
    %1817 = vmatpush2.msra.mxu0 0.0
    %1818 = vmatprep.subr.mxu0 0.0
    %1819 = vmatpush2.msra.mxu0 0.0
    %1820 = vmatprep.subr.mxu0 0.0
    %1821 = vmatpush2.msra.mxu0 0.0
    %1822 = vmatprep.subr.mxu0 0.0
    %1823 = vmatpush2.msra.mxu0 0.0
    %1824 = vmatprep.subr.mxu0 0.0
    %1825 = vmatpush2.msra.mxu0 0.0
    %1826 = vmatprep.subr.mxu0 0.0
    %1827 = vmatpush2.msra.mxu0 0.0
    %1828 = vmatprep.subr.mxu0 0.0
    %1829 = vmatpush2.msra.mxu0 0.0
    %1830 = vmatprep.subr.mxu0 0.0
    %1831 = vmatpush2.msra.mxu0 0.0
    %1832 = vmatprep.subr.mxu0 0.0
    %1833 = vmatpush2.msra.mxu0 0.0
    %1834 = vmatprep.mubr.f32.mxu0 0.0
    %v1835 = vand.u32 %v131, 4294901760
    %v1836 = vsub.f32 %v131, %v1835
    %v1837 = vand.u32 %v1836, 4294901760
    %v1838 = vsub.f32 %v1836, %v1837
    %v1839 = vand.u32 %v1838, 4294901760
    %1840 = vmatmul.mubr.f32.gmra.mxu0 %v1839
    %v1841 = vpop.f32.mrf.mxu0
    %v1842 = vadd.f32 %v116, %v1841
    %v1843 = vpop.f32.mrf.mxu0
    %v1844 = vadd.f32 %v120, %v1843
    %1845 = vdwg.mxu0
    %1846 = vmatprep.subr.mxu0 0.0
    %1847 = vmatpush1.msra.mxu0 0.0
    %1848 = vmatprep.subr.mxu0 0.0
    %1849 = vmatpush1.msra.mxu0 0.0
    %1850 = vmatprep.subr.mxu0 0.0
    %1851 = vmatpush1.msra.mxu0 0.0
    %1852 = vmatprep.subr.mxu0 0.0
    %1853 = vmatpush1.msra.mxu0 0.0
    %1854 = vmatprep.subr.mxu0 0.0
    %1855 = vmatpush1.msra.mxu0 0.0
    %1856 = vmatprep.subr.mxu0 0.0
    %1857 = vmatpush1.msra.mxu0 0.0
    %1858 = vmatprep.subr.mxu0 0.0
    %1859 = vmatpush1.msra.mxu0 0.0
    %1860 = vmatprep.subr.mxu0 0.0
    %1861 = vmatpush1.msra.mxu0 0.0
    %1862 = vmatprep.subr.mxu0 0.0
    %1863 = vmatpush1.msra.mxu0 0.0
    %1864 = vmatprep.subr.mxu0 0.0
    %1865 = vmatpush1.msra.mxu0 0.0
    %1866 = vmatprep.subr.mxu0 0.0
    %1867 = vmatpush1.msra.mxu0 0.0
    %1868 = vmatprep.subr.mxu0 0.0
    %1869 = vmatpush1.msra.mxu0 0.0
    %v1870 = vand.u32 %v86, 4294901760
    %v1871 = vsub.f32 %v86, %v1870
    %v1872 = vand.u32 %v1871, 4294901760
    %v1873 = vsub.f32 %v1871, %v1872
    %v1874 = vand.u32 %v1873, 4294901760
    %1875 = vmatprep.subr.mxu0 %v1874
    %v1876 = vand.u32 %v85, 4294901760
    %v1877 = vsub.f32 %v85, %v1876
    %v1878 = vand.u32 %v1877, 4294901760
    %v1879 = vsub.f32 %v1877, %v1878
    %v1880 = vand.u32 %v1879, 4294901760
    %1881 = vmatpush1.msra.mxu0 %v1880
    %v1882 = vand.u32 %v78, 4294901760
    %v1883 = vsub.f32 %v78, %v1882
    %v1884 = vand.u32 %v1883, 4294901760
    %v1885 = vsub.f32 %v1883, %v1884
    %v1886 = vand.u32 %v1885, 4294901760
    %1887 = vmatprep.subr.mxu0 %v1886
    %v1888 = vand.u32 %v77, 4294901760
    %v1889 = vsub.f32 %v77, %v1888
    %v1890 = vand.u32 %v1889, 4294901760
    %v1891 = vsub.f32 %v1889, %v1890
    %v1892 = vand.u32 %v1891, 4294901760
    %1893 = vmatpush1.msra.mxu0 %v1892
    %v1894 = vand.u32 %v70, 4294901760
    %v1895 = vsub.f32 %v70, %v1894
    %v1896 = vand.u32 %v1895, 4294901760
    %v1897 = vsub.f32 %v1895, %v1896
    %v1898 = vand.u32 %v1897, 4294901760
    %1899 = vmatprep.subr.mxu0 %v1898
    %v1900 = vand.u32 %v69, 4294901760
    %v1901 = vsub.f32 %v69, %v1900
    %v1902 = vand.u32 %v1901, 4294901760
    %v1903 = vsub.f32 %v1901, %v1902
    %v1904 = vand.u32 %v1903, 4294901760
    %1905 = vmatpush1.msra.mxu0 %v1904
    %v1906 = vand.u32 %v62, 4294901760
    %v1907 = vsub.f32 %v62, %v1906
    %v1908 = vand.u32 %v1907, 4294901760
    %v1909 = vsub.f32 %v1907, %v1908
    %v1910 = vand.u32 %v1909, 4294901760
    %1911 = vmatprep.subr.mxu0 %v1910
    %v1912 = vand.u32 %v61, 4294901760
    %v1913 = vsub.f32 %v61, %v1912
    %v1914 = vand.u32 %v1913, 4294901760
    %v1915 = vsub.f32 %v1913, %v1914
    %v1916 = vand.u32 %v1915, 4294901760
    %1917 = vmatpush1.msra.mxu0 %v1916
    %1918 = vmatprep.subr.mxu0 0.0
    %1919 = vmatpush2.msra.mxu0 0.0
    %1920 = vmatprep.subr.mxu0 0.0
    %1921 = vmatpush2.msra.mxu0 0.0
    %1922 = vmatprep.subr.mxu0 0.0
    %1923 = vmatpush2.msra.mxu0 0.0
    %1924 = vmatprep.subr.mxu0 0.0
    %1925 = vmatpush2.msra.mxu0 0.0
    %1926 = vmatprep.subr.mxu0 0.0
    %1927 = vmatpush2.msra.mxu0 0.0
    %1928 = vmatprep.subr.mxu0 0.0
    %1929 = vmatpush2.msra.mxu0 0.0
    %1930 = vmatprep.subr.mxu0 0.0
    %1931 = vmatpush2.msra.mxu0 0.0
    %1932 = vmatprep.subr.mxu0 0.0
    %1933 = vmatpush2.msra.mxu0 0.0
    %1934 = vmatprep.subr.mxu0 0.0
    %1935 = vmatpush2.msra.mxu0 0.0
    %1936 = vmatprep.subr.mxu0 0.0
    %1937 = vmatpush2.msra.mxu0 0.0
    %1938 = vmatprep.subr.mxu0 0.0
    %1939 = vmatpush2.msra.mxu0 0.0
    %1940 = vmatprep.subr.mxu0 0.0
    %1941 = vmatpush2.msra.mxu0 0.0
    %1942 = vmatprep.subr.mxu0 0.0
    %1943 = vmatpush2.msra.mxu0 0.0
    %1944 = vmatprep.subr.mxu0 0.0
    %1945 = vmatpush2.msra.mxu0 0.0
    %1946 = vmatprep.subr.mxu0 0.0
    %1947 = vmatpush2.msra.mxu0 0.0
    %1948 = vmatprep.subr.mxu0 0.0
    %1949 = vmatpush2.msra.mxu0 0.0
    %1950 = vmatprep.mubr.f32.mxu0 0.0
    %v1951 = vand.u32 %v131, 4294901760
    %1952 = vmatmul.mubr.f32.gmra.mxu0 %v1951
    %v1953 = vpop.f32.mrf.mxu0
    %v1954 = vadd.f32 %v1842, %v1953
    %v1955 = vpop.f32.mrf.mxu0
    %v1956 = vadd.f32 %v1844, %v1955
    %1957 = vdwg.mxu0
    %1958 = vmatprep.subr.mxu0 0.0
    %1959 = vmatpush1.msra.mxu0 0.0
    %1960 = vmatprep.subr.mxu0 0.0
    %1961 = vmatpush1.msra.mxu0 0.0
    %1962 = vmatprep.subr.mxu0 0.0
    %1963 = vmatpush1.msra.mxu0 0.0
    %1964 = vmatprep.subr.mxu0 0.0
    %1965 = vmatpush1.msra.mxu0 0.0
    %1966 = vmatprep.subr.mxu0 0.0
    %1967 = vmatpush1.msra.mxu0 0.0
    %1968 = vmatprep.subr.mxu0 0.0
    %1969 = vmatpush1.msra.mxu0 0.0
    %1970 = vmatprep.subr.mxu0 0.0
    %1971 = vmatpush1.msra.mxu0 0.0
    %1972 = vmatprep.subr.mxu0 0.0
    %1973 = vmatpush1.msra.mxu0 0.0
    %1974 = vmatprep.subr.mxu0 0.0
    %1975 = vmatpush1.msra.mxu0 0.0
    %1976 = vmatprep.subr.mxu0 0.0
    %1977 = vmatpush1.msra.mxu0 0.0
    %1978 = vmatprep.subr.mxu0 0.0
    %1979 = vmatpush1.msra.mxu0 0.0
    %1980 = vmatprep.subr.mxu0 0.0
    %1981 = vmatpush1.msra.mxu0 0.0
    %v1982 = vand.u32 %v86, 4294901760
    %v1983 = vsub.f32 %v86, %v1982
    %1984 = vmatprep.subr.mxu0 %v1983
    %v1985 = vand.u32 %v85, 4294901760
    %v1986 = vsub.f32 %v85, %v1985
    %1987 = vmatpush1.msra.mxu0 %v1986
    %v1988 = vand.u32 %v78, 4294901760
    %v1989 = vsub.f32 %v78, %v1988
    %1990 = vmatprep.subr.mxu0 %v1989
    %v1991 = vand.u32 %v77, 4294901760
    %v1992 = vsub.f32 %v77, %v1991
    %1993 = vmatpush1.msra.mxu0 %v1992
    %v1994 = vand.u32 %v70, 4294901760
    %v1995 = vsub.f32 %v70, %v1994
    %1996 = vmatprep.subr.mxu0 %v1995
    %v1997 = vand.u32 %v69, 4294901760
    %v1998 = vsub.f32 %v69, %v1997
    %1999 = vmatpush1.msra.mxu0 %v1998
    %v2000 = vand.u32 %v62, 4294901760
    %v2001 = vsub.f32 %v62, %v2000
    %2002 = vmatprep.subr.mxu0 %v2001
    %v2003 = vand.u32 %v61, 4294901760
    %v2004 = vsub.f32 %v61, %v2003
    %2005 = vmatpush1.msra.mxu0 %v2004
    %2006 = vmatprep.subr.mxu0 0.0
    %2007 = vmatpush2.msra.mxu0 0.0
    %2008 = vmatprep.subr.mxu0 0.0
    %2009 = vmatpush2.msra.mxu0 0.0
    %2010 = vmatprep.subr.mxu0 0.0
    %2011 = vmatpush2.msra.mxu0 0.0
    %2012 = vmatprep.subr.mxu0 0.0
    %2013 = vmatpush2.msra.mxu0 0.0
    %2014 = vmatprep.subr.mxu0 0.0
    %2015 = vmatpush2.msra.mxu0 0.0
    %2016 = vmatprep.subr.mxu0 0.0
    %2017 = vmatpush2.msra.mxu0 0.0
    %2018 = vmatprep.subr.mxu0 0.0
    %2019 = vmatpush2.msra.mxu0 0.0
    %2020 = vmatprep.subr.mxu0 0.0
    %2021 = vmatpush2.msra.mxu0 0.0
    %2022 = vmatprep.subr.mxu0 0.0
    %2023 = vmatpush2.msra.mxu0 0.0
    %2024 = vmatprep.subr.mxu0 0.0
    %2025 = vmatpush2.msra.mxu0 0.0
    %2026 = vmatprep.subr.mxu0 0.0
    %2027 = vmatpush2.msra.mxu0 0.0
    %2028 = vmatprep.subr.mxu0 0.0
    %2029 = vmatpush2.msra.mxu0 0.0
    %2030 = vmatprep.subr.mxu0 0.0
    %2031 = vmatpush2.msra.mxu0 0.0
    %2032 = vmatprep.subr.mxu0 0.0
    %2033 = vmatpush2.msra.mxu0 0.0
    %2034 = vmatprep.subr.mxu0 0.0
    %2035 = vmatpush2.msra.mxu0 0.0
    %2036 = vmatprep.subr.mxu0 0.0
    %2037 = vmatpush2.msra.mxu0 0.0
    %2038 = vmatprep.mubr.f32.mxu0 0.0
    %v2039 = vand.u32 %v131, 4294901760
    %v2040 = vsub.f32 %v131, %v2039
    %2041 = vmatmul.mubr.f32.gmra.mxu0 %v2040
    %v2042 = vpop.f32.mrf.mxu0
    %v2043 = vadd.f32 %v1954, %v2042
    %v2044 = vpop.f32.mrf.mxu0
    %v2045 = vadd.f32 %v1956, %v2044
    %2046 = vdwg.mxu0
    %2047 = vmatprep.subr.mxu0 0.0
    %2048 = vmatpush1.msra.mxu0 0.0
    %2049 = vmatprep.subr.mxu0 0.0
    %2050 = vmatpush1.msra.mxu0 0.0
    %2051 = vmatprep.subr.mxu0 0.0
    %2052 = vmatpush1.msra.mxu0 0.0
    %2053 = vmatprep.subr.mxu0 0.0
    %2054 = vmatpush1.msra.mxu0 0.0
    %2055 = vmatprep.subr.mxu0 0.0
    %2056 = vmatpush1.msra.mxu0 0.0
    %2057 = vmatprep.subr.mxu0 0.0
    %2058 = vmatpush1.msra.mxu0 0.0
    %2059 = vmatprep.subr.mxu0 0.0
    %2060 = vmatpush1.msra.mxu0 0.0
    %2061 = vmatprep.subr.mxu0 0.0
    %2062 = vmatpush1.msra.mxu0 0.0
    %2063 = vmatprep.subr.mxu0 0.0
    %2064 = vmatpush1.msra.mxu0 0.0
    %2065 = vmatprep.subr.mxu0 0.0
    %2066 = vmatpush1.msra.mxu0 0.0
    %2067 = vmatprep.subr.mxu0 0.0
    %2068 = vmatpush1.msra.mxu0 0.0
    %2069 = vmatprep.subr.mxu0 0.0
    %2070 = vmatpush1.msra.mxu0 0.0
    %v2071 = vand.u32 %v86, 4294901760
    %2072 = vmatprep.subr.mxu0 %v2071
    %v2073 = vand.u32 %v85, 4294901760
    %2074 = vmatpush1.msra.mxu0 %v2073
    %v2075 = vand.u32 %v78, 4294901760
    %2076 = vmatprep.subr.mxu0 %v2075
    %v2077 = vand.u32 %v77, 4294901760
    %2078 = vmatpush1.msra.mxu0 %v2077
    %v2079 = vand.u32 %v70, 4294901760
    %2080 = vmatprep.subr.mxu0 %v2079
    %v2081 = vand.u32 %v69, 4294901760
    %2082 = vmatpush1.msra.mxu0 %v2081
    %v2083 = vand.u32 %v62, 4294901760
    %2084 = vmatprep.subr.mxu0 %v2083
    %v2085 = vand.u32 %v61, 4294901760
    %2086 = vmatpush1.msra.mxu0 %v2085
    %2087 = vmatprep.subr.mxu0 0.0
    %2088 = vmatpush2.msra.mxu0 0.0
    %2089 = vmatprep.subr.mxu0 0.0
    %2090 = vmatpush2.msra.mxu0 0.0
    %2091 = vmatprep.subr.mxu0 0.0
    %2092 = vmatpush2.msra.mxu0 0.0
    %2093 = vmatprep.subr.mxu0 0.0
    %2094 = vmatpush2.msra.mxu0 0.0
    %2095 = vmatprep.subr.mxu0 0.0
    %2096 = vmatpush2.msra.mxu0 0.0
    %2097 = vmatprep.subr.mxu0 0.0
    %2098 = vmatpush2.msra.mxu0 0.0
    %2099 = vmatprep.subr.mxu0 0.0
    %2100 = vmatpush2.msra.mxu0 0.0
    %2101 = vmatprep.subr.mxu0 0.0
    %2102 = vmatpush2.msra.mxu0 0.0
    %2103 = vmatprep.subr.mxu0 0.0
    %2104 = vmatpush2.msra.mxu0 0.0
    %2105 = vmatprep.subr.mxu0 0.0
    %2106 = vmatpush2.msra.mxu0 0.0
    %2107 = vmatprep.subr.mxu0 0.0
    %2108 = vmatpush2.msra.mxu0 0.0
    %2109 = vmatprep.subr.mxu0 0.0
    %2110 = vmatpush2.msra.mxu0 0.0
    %2111 = vmatprep.subr.mxu0 0.0
    %2112 = vmatpush2.msra.mxu0 0.0
    %2113 = vmatprep.subr.mxu0 0.0
    %2114 = vmatpush2.msra.mxu0 0.0
    %2115 = vmatprep.subr.mxu0 0.0
    %2116 = vmatpush2.msra.mxu0 0.0
    %2117 = vmatprep.subr.mxu0 0.0
    %2118 = vmatpush2.msra.mxu0 0.0
    %2119 = vmatprep.mubr.f32.mxu0 0.0
    %v2120 = vand.u32 %v131, 4294901760
    %v2121 = vsub.f32 %v131, %v2120
    %v2122 = vand.u32 %v2121, 4294901760
    %2123 = vmatmul.mubr.f32.gmra.mxu0 %v2122
    %v2124 = vpop.f32.mrf.mxu0
    %v2125 = vadd.f32 %v2043, %v2124
    %v2126 = vpop.f32.mrf.mxu0
    %v2127 = vadd.f32 %v2045, %v2126
    %2128 = vdwg.mxu0
    %2129 = vmatprep.subr.mxu0 0.0
    %2130 = vmatpush1.msra.mxu0 0.0
    %2131 = vmatprep.subr.mxu0 0.0
    %2132 = vmatpush1.msra.mxu0 0.0
    %2133 = vmatprep.subr.mxu0 0.0
    %2134 = vmatpush1.msra.mxu0 0.0
    %2135 = vmatprep.subr.mxu0 0.0
    %2136 = vmatpush1.msra.mxu0 0.0
    %2137 = vmatprep.subr.mxu0 0.0
    %2138 = vmatpush1.msra.mxu0 0.0
    %2139 = vmatprep.subr.mxu0 0.0
    %2140 = vmatpush1.msra.mxu0 0.0
    %2141 = vmatprep.subr.mxu0 0.0
    %2142 = vmatpush1.msra.mxu0 0.0
    %2143 = vmatprep.subr.mxu0 0.0
    %2144 = vmatpush1.msra.mxu0 0.0
    %2145 = vmatprep.subr.mxu0 0.0
    %2146 = vmatpush1.msra.mxu0 0.0
    %2147 = vmatprep.subr.mxu0 0.0
    %2148 = vmatpush1.msra.mxu0 0.0
    %2149 = vmatprep.subr.mxu0 0.0
    %2150 = vmatpush1.msra.mxu0 0.0
    %2151 = vmatprep.subr.mxu0 0.0
    %2152 = vmatpush1.msra.mxu0 0.0
    %v2153 = vand.u32 %v86, 4294901760
    %v2154 = vsub.f32 %v86, %v2153
    %v2155 = vand.u32 %v2154, 4294901760
    %2156 = vmatprep.subr.mxu0 %v2155
    %v2157 = vand.u32 %v85, 4294901760
    %v2158 = vsub.f32 %v85, %v2157
    %v2159 = vand.u32 %v2158, 4294901760
    %2160 = vmatpush1.msra.mxu0 %v2159
    %v2161 = vand.u32 %v78, 4294901760
    %v2162 = vsub.f32 %v78, %v2161
    %v2163 = vand.u32 %v2162, 4294901760
    %2164 = vmatprep.subr.mxu0 %v2163
    %v2165 = vand.u32 %v77, 4294901760
    %v2166 = vsub.f32 %v77, %v2165
    %v2167 = vand.u32 %v2166, 4294901760
    %2168 = vmatpush1.msra.mxu0 %v2167
    %v2169 = vand.u32 %v70, 4294901760
    %v2170 = vsub.f32 %v70, %v2169
    %v2171 = vand.u32 %v2170, 4294901760
    %2172 = vmatprep.subr.mxu0 %v2171
    %v2173 = vand.u32 %v69, 4294901760
    %v2174 = vsub.f32 %v69, %v2173
    %v2175 = vand.u32 %v2174, 4294901760
    %2176 = vmatpush1.msra.mxu0 %v2175
    %v2177 = vand.u32 %v62, 4294901760
    %v2178 = vsub.f32 %v62, %v2177
    %v2179 = vand.u32 %v2178, 4294901760
    %2180 = vmatprep.subr.mxu0 %v2179
    %v2181 = vand.u32 %v61, 4294901760
    %v2182 = vsub.f32 %v61, %v2181
    %v2183 = vand.u32 %v2182, 4294901760
    %2184 = vmatpush1.msra.mxu0 %v2183
    %2185 = vmatprep.subr.mxu0 0.0
    %2186 = vmatpush2.msra.mxu0 0.0
    %2187 = vmatprep.subr.mxu0 0.0
    %2188 = vmatpush2.msra.mxu0 0.0
    %2189 = vmatprep.subr.mxu0 0.0
    %2190 = vmatpush2.msra.mxu0 0.0
    %2191 = vmatprep.subr.mxu0 0.0
    %2192 = vmatpush2.msra.mxu0 0.0
    %2193 = vmatprep.subr.mxu0 0.0
    %2194 = vmatpush2.msra.mxu0 0.0
    %2195 = vmatprep.subr.mxu0 0.0
    %2196 = vmatpush2.msra.mxu0 0.0
    %2197 = vmatprep.subr.mxu0 0.0
    %2198 = vmatpush2.msra.mxu0 0.0
    %2199 = vmatprep.subr.mxu0 0.0
    %2200 = vmatpush2.msra.mxu0 0.0
    %2201 = vmatprep.subr.mxu0 0.0
    %2202 = vmatpush2.msra.mxu0 0.0
    %2203 = vmatprep.subr.mxu0 0.0
    %2204 = vmatpush2.msra.mxu0 0.0
    %2205 = vmatprep.subr.mxu0 0.0
    %2206 = vmatpush2.msra.mxu0 0.0
    %2207 = vmatprep.subr.mxu0 0.0
    %2208 = vmatpush2.msra.mxu0 0.0
    %2209 = vmatprep.subr.mxu0 0.0
    %2210 = vmatpush2.msra.mxu0 0.0
    %2211 = vmatprep.subr.mxu0 0.0
    %2212 = vmatpush2.msra.mxu0 0.0
    %2213 = vmatprep.subr.mxu0 0.0
    %2214 = vmatpush2.msra.mxu0 0.0
    %2215 = vmatprep.subr.mxu0 0.0
    %2216 = vmatpush2.msra.mxu0 0.0
    %2217 = vmatprep.mubr.f32.mxu0 0.0
    %v2218 = vand.u32 %v131, 4294901760
    %2219 = vmatmul.mubr.f32.gmra.mxu0 %v2218
    %v2220 = vpop.f32.mrf.mxu0
    %v2221 = vadd.f32 %v2125, %v2220
    %v2222 = vpop.f32.mrf.mxu0
    %v2223 = vadd.f32 %v2127, %v2222
    %2224 = vdwg.mxu0
    %2225 = vmatprep.subr.mxu0 0.0
    %2226 = vmatpush1.msra.mxu0 0.0
    %2227 = vmatprep.subr.mxu0 0.0
    %2228 = vmatpush1.msra.mxu0 0.0
    %2229 = vmatprep.subr.mxu0 0.0
    %2230 = vmatpush1.msra.mxu0 0.0
    %2231 = vmatprep.subr.mxu0 0.0
    %2232 = vmatpush1.msra.mxu0 0.0
    %2233 = vmatprep.subr.mxu0 0.0
    %2234 = vmatpush1.msra.mxu0 0.0
    %2235 = vmatprep.subr.mxu0 0.0
    %2236 = vmatpush1.msra.mxu0 0.0
    %2237 = vmatprep.subr.mxu0 0.0
    %2238 = vmatpush1.msra.mxu0 0.0
    %2239 = vmatprep.subr.mxu0 0.0
    %2240 = vmatpush1.msra.mxu0 0.0
    %2241 = vmatprep.subr.mxu0 0.0
    %2242 = vmatpush1.msra.mxu0 0.0
    %2243 = vmatprep.subr.mxu0 0.0
    %2244 = vmatpush1.msra.mxu0 0.0
    %2245 = vmatprep.subr.mxu0 0.0
    %2246 = vmatpush1.msra.mxu0 0.0
    %2247 = vmatprep.subr.mxu0 0.0
    %2248 = vmatpush1.msra.mxu0 0.0
    %v2249 = vand.u32 %v86, 4294901760
    %2250 = vmatprep.subr.mxu0 %v2249
    %v2251 = vand.u32 %v85, 4294901760
    %2252 = vmatpush1.msra.mxu0 %v2251
    %v2253 = vand.u32 %v78, 4294901760
    %2254 = vmatprep.subr.mxu0 %v2253
    %v2255 = vand.u32 %v77, 4294901760
    %2256 = vmatpush1.msra.mxu0 %v2255
    %v2257 = vand.u32 %v70, 4294901760
    %2258 = vmatprep.subr.mxu0 %v2257
    %v2259 = vand.u32 %v69, 4294901760
    %2260 = vmatpush1.msra.mxu0 %v2259
    %v2261 = vand.u32 %v62, 4294901760
    %2262 = vmatprep.subr.mxu0 %v2261
    %v2263 = vand.u32 %v61, 4294901760
    %2264 = vmatpush1.msra.mxu0 %v2263
    %2265 = vmatprep.subr.mxu0 0.0
    %2266 = vmatpush2.msra.mxu0 0.0
    %2267 = vmatprep.subr.mxu0 0.0
    %2268 = vmatpush2.msra.mxu0 0.0
    %2269 = vmatprep.subr.mxu0 0.0
    %2270 = vmatpush2.msra.mxu0 0.0
    %2271 = vmatprep.subr.mxu0 0.0
    %2272 = vmatpush2.msra.mxu0 0.0
    %2273 = vmatprep.subr.mxu0 0.0
    %2274 = vmatpush2.msra.mxu0 0.0
    %2275 = vmatprep.subr.mxu0 0.0
    %2276 = vmatpush2.msra.mxu0 0.0
    %2277 = vmatprep.subr.mxu0 0.0
    %2278 = vmatpush2.msra.mxu0 0.0
    %2279 = vmatprep.subr.mxu0 0.0
    %2280 = vmatpush2.msra.mxu0 0.0
    %2281 = vmatprep.subr.mxu0 0.0
    %2282 = vmatpush2.msra.mxu0 0.0
    %2283 = vmatprep.subr.mxu0 0.0
    %2284 = vmatpush2.msra.mxu0 0.0
    %2285 = vmatprep.subr.mxu0 0.0
    %2286 = vmatpush2.msra.mxu0 0.0
    %2287 = vmatprep.subr.mxu0 0.0
    %2288 = vmatpush2.msra.mxu0 0.0
    %2289 = vmatprep.subr.mxu0 0.0
    %2290 = vmatpush2.msra.mxu0 0.0
    %2291 = vmatprep.subr.mxu0 0.0
    %2292 = vmatpush2.msra.mxu0 0.0
    %2293 = vmatprep.subr.mxu0 0.0
    %2294 = vmatpush2.msra.mxu0 0.0
    %2295 = vmatprep.subr.mxu0 0.0
    %2296 = vmatpush2.msra.mxu0 0.0
    %2297 = vmatprep.mubr.f32.mxu0 0.0
    %v2298 = vand.u32 %v131, 4294901760
    %2299 = vmatmul.mubr.f32.gmra.mxu0 %v2298
    %v2300 = vpop.f32.mrf.mxu0
    %v2301 = vadd.f32 %v2221, %v2300
    %v2302 = vpop.f32.mrf.mxu0
    %v2303 = vadd.f32 %v2223, %v2302
    %2304 = vdwg.mxu0
    %v2305 = vand.u32 2147483647, %v672
    %vm2306 = vcmp.le.f32.partialorder %v2305, 0.7853982
    %vm2307 = vcmp.lt.s32.totalorder %v672, 0
    %v2308 = vand.u32 %v672, 2139095040
    %v2309 = vshrl.u32 %v2308, 23
    %v2310 = vsub.s32 %v2309, 127
    %v2311 = vand.u32 2147483647, %v672
    %v2312 = vand.u32 %v2311, 8388607
    %v2313 = vor.u32 %v2312, 8388608
    %v2314 = vsub.s32 0, %v2313
    %v2315 = vadd.s32 %v2310, 1
    %vm2316 = vcmp.gt.s32.totalorder %v2315, 0
    %v2317 = vsel %vm2316, %v2315, 0
    %v2318 = vshrl.u32 %v2317, 5
    %v2319 = vand.u32 %v2317, 31
    %v2320 = vsub.s32 32, %v2319
    %v2321 = vshrl.u32 683565275, %v2320
    %v2322 = vshll.u32 683565275, %v2319
    %v2323 = vshrl.u32 2475754826, %v2320
    %v2324 = vor.u32 %v2322, %v2323
    %v2325 = vshll.u32 2475754826, %v2319
    %v2326 = vshrl.u32 2131351028, %v2320
    %v2327 = vor.u32 %v2325, %v2326
    %v2328 = vshll.u32 2131351028, %v2319
    %v2329 = vshrl.u32 2102212464, %v2320
    %v2330 = vor.u32 %v2328, %v2329
    %v2331 = vshll.u32 2102212464, %v2319
    %v2332 = vshrl.u32 920167782, %v2320
    %v2333 = vor.u32 %v2331, %v2332
    %v2334 = vshll.u32 920167782, %v2319
    %v2335 = vshrl.u32 1326507024, %v2320
    %v2336 = vor.u32 %v2334, %v2335
    %vm2337 = vcmp.lt.s32.totalorder %v2318, 1
    %vm2338 = vcmp.lt.s32.totalorder %v2318, 2
    %vm2339 = vcmp.lt.s32.totalorder %v2318, 3
    %vm2340 = vcmp.lt.s32.totalorder %v2318, 4
    %v2341 = vsel %vm2337, %v2321, %v2324
    %v2342 = vsel %vm2340, %v2330, 2102212464
    %v2343 = vsel %vm2339, %v2327, %v2342
    %v2344 = vsel %vm2338, %v2341, %v2343
    %v2345 = vsel %vm2337, %v2324, %v2327
    %v2346 = vsel %vm2340, %v2333, 920167782
    %v2347 = vsel %vm2339, %v2330, %v2346
    %v2348 = vsel %vm2338, %v2345, %v2347
    %v2349 = vsel %vm2337, %v2327, %v2330
    %v2350 = vsel %vm2340, %v2336, 1326507024
    %v2351 = vsel %vm2339, %v2333, %v2350
    %v2352 = vsel %vm2338, %v2349, %v2351
    %v2353 = vshll.u32 %v2313, 8
    %v2354 = vmul.u32.u64.compose %v2353, %v2352
    %v2355 = vextract.low.u32 %v2354
    %v2356 = vextract.high.u32 %v2354
    %v2357 = vmul.u32.u64.compose %v2353, %v2348
    %v2358 = vextract.low.u32 %v2357
    %v2359 = vextract.high.u32 %v2357
    %v2360 = vmul.u32 %v2353, %v2344
    %v2361 = vadd.s32 %v2356, %v2358
    %vm2362 = vc.u32 %v2356, %v2358
    %v2363 = vadd.s32 %v2359, 1
    %v2364 = vsel %vm2362, %v2363, %v2359
    %v2365 = vadd.s32 %v2360, %v2364
    %v2366 = vadd.s32 %v2365, 536870912
    %v2367 = vshrl.u32 %v2366, 30
    %v2368 = vshll.u32 %v2367, 30
    %v2369 = vsub.s32 %v2365, %v2368
    %vm2370 = vcmp.lt.s32.totalorder %v2369, 0
    %v2371 = vsub.s32 0, %v2369
    %v2372 = vsel %vm2370, %v2371, %v2369
    %v2373 = vclz %v2372
    %v2374 = vsub.s32 %v2373, 2
    %vm2375 = vcmp.gt.s32.totalorder 0, %v2374
    %v2376 = vsel %vm2375, 0, %v2374
    %v2377 = vsub.s32 32, %v2376
    %v2378 = vshll.u32 %v2369, %v2376
    %v2379 = vshrl.u32 %v2361, %v2377
    %v2380 = vor.u32 %v2378, %v2379
    %v2381 = vsub.s32 4294967266, %v2376
    %v2382 = vadd.s32 %v2381, 127
    %v2383 = vshll.u32 %v2382, 23
    %v2384 = vor.u32 4788187, %v2383
    %v2385 = vand.u32 2147483647, %v2384
    %v2387 = vcvt.s32.f32 %v2380
    %v2388 = vmul.f32 %v2387, %v2385
    %v2389 = vxor.u32 %v2388, 2147483648
    %v2390 = vsel %vm2307, %v2389, %v2388
    %v2391 = vsub.s32 4, %v2367
    %v2392 = vsel %vm2307, %v2391, %v2367
    %v2393 = vsel %vm2306, %v672, %v2390
    %v2394 = vsel %vm2306, 0, %v2392
    %v2395 = vcosq.f32.pop %v2393
    %v2396 = vsinq.f32.pop %v2393
    %vm2397 = vweird.f32 %v672
    %v2398 = vadd.s32 %v2394, 3
    %v2399 = vand.u32 %v2398, 3
    %vm2400 = vcmp.lt.s32.totalorder %v2399, 2
    %vm2401 = vcmp.eq.s32.totalorder %v2399, 0
    %v2402 = vxor.u32 %v2396, 2147483648
    %v2403 = vsel %vm2401, %v2395, %v2402
    %vm2404 = vcmp.eq.s32.totalorder %v2399, 2
    %v2405 = vxor.u32 %v2395, 2147483648
    %v2406 = vsel %vm2404, %v2405, %v2396
    %v2407 = vsel %vm2400, %v2403, %v2406
    %v2408 = vsel %vm2397, nan, %v2407
    %v2409 = vand.u32 2147483647, %v674
    %vm2410 = vcmp.le.f32.partialorder %v2409, 0.7853982
    %vm2411 = vcmp.lt.s32.totalorder %v674, 0
    %v2412 = vand.u32 %v674, 2139095040
    %v2413 = vshrl.u32 %v2412, 23
    %v2414 = vsub.s32 %v2413, 127
    %v2415 = vand.u32 2147483647, %v674
    %v2416 = vand.u32 %v2415, 8388607
    %v2417 = vor.u32 %v2416, 8388608
    %v2418 = vsub.s32 0, %v2417
    %v2419 = vadd.s32 %v2414, 1
    %vm2420 = vcmp.gt.s32.totalorder %v2419, 0
    %v2421 = vsel %vm2420, %v2419, 0
    %v2422 = vshrl.u32 %v2421, 5
    %v2423 = vand.u32 %v2421, 31
    %v2424 = vsub.s32 32, %v2423
    %v2425 = vshrl.u32 683565275, %v2424
    %v2426 = vshll.u32 683565275, %v2423
    %v2427 = vshrl.u32 2475754826, %v2424
    %v2428 = vor.u32 %v2426, %v2427
    %v2429 = vshll.u32 2475754826, %v2423
    %v2430 = vshrl.u32 2131351028, %v2424
    %v2431 = vor.u32 %v2429, %v2430
    %v2432 = vshll.u32 2131351028, %v2423
    %v2433 = vshrl.u32 2102212464, %v2424
    %v2434 = vor.u32 %v2432, %v2433
    %v2435 = vshll.u32 2102212464, %v2423
    %v2436 = vshrl.u32 920167782, %v2424
    %v2437 = vor.u32 %v2435, %v2436
    %v2438 = vshll.u32 920167782, %v2423
    %v2439 = vshrl.u32 1326507024, %v2424
    %v2440 = vor.u32 %v2438, %v2439
    %vm2441 = vcmp.lt.s32.totalorder %v2422, 1
    %vm2442 = vcmp.lt.s32.totalorder %v2422, 2
    %vm2443 = vcmp.lt.s32.totalorder %v2422, 3
    %vm2444 = vcmp.lt.s32.totalorder %v2422, 4
    %v2445 = vsel %vm2441, %v2425, %v2428
    %v2446 = vsel %vm2444, %v2434, 2102212464
    %v2447 = vsel %vm2443, %v2431, %v2446
    %v2448 = vsel %vm2442, %v2445, %v2447
    %v2449 = vsel %vm2441, %v2428, %v2431
    %v2450 = vsel %vm2444, %v2437, 920167782
    %v2451 = vsel %vm2443, %v2434, %v2450
    %v2452 = vsel %vm2442, %v2449, %v2451
    %v2453 = vsel %vm2441, %v2431, %v2434
    %v2454 = vsel %vm2444, %v2440, 1326507024
    %v2455 = vsel %vm2443, %v2437, %v2454
    %v2456 = vsel %vm2442, %v2453, %v2455
    %v2457 = vshll.u32 %v2417, 8
    %v2458 = vmul.u32.u64.compose %v2457, %v2456
    %v2459 = vextract.low.u32 %v2458
    %v2460 = vextract.high.u32 %v2458
    %v2461 = vmul.u32.u64.compose %v2457, %v2452
    %v2462 = vextract.low.u32 %v2461
    %v2463 = vextract.high.u32 %v2461
    %v2464 = vmul.u32 %v2457, %v2448
    %v2465 = vadd.s32 %v2460, %v2462
    %vm2466 = vc.u32 %v2460, %v2462
    %v2467 = vadd.s32 %v2463, 1
    %v2468 = vsel %vm2466, %v2467, %v2463
    %v2469 = vadd.s32 %v2464, %v2468
    %v2470 = vadd.s32 %v2469, 536870912
    %v2471 = vshrl.u32 %v2470, 30
    %v2472 = vshll.u32 %v2471, 30
    %v2473 = vsub.s32 %v2469, %v2472
    %vm2474 = vcmp.lt.s32.totalorder %v2473, 0
    %v2475 = vsub.s32 0, %v2473
    %v2476 = vsel %vm2474, %v2475, %v2473
    %v2477 = vclz %v2476
    %v2478 = vsub.s32 %v2477, 2
    %vm2479 = vcmp.gt.s32.totalorder 0, %v2478
    %v2480 = vsel %vm2479, 0, %v2478
    %v2481 = vsub.s32 32, %v2480
    %v2482 = vshll.u32 %v2473, %v2480
    %v2483 = vshrl.u32 %v2465, %v2481
    %v2484 = vor.u32 %v2482, %v2483
    %v2485 = vsub.s32 4294967266, %v2480
    %v2486 = vadd.s32 %v2485, 127
    %v2487 = vshll.u32 %v2486, 23
    %v2488 = vor.u32 4788187, %v2487
    %v2489 = vand.u32 2147483647, %v2488
    %v2491 = vcvt.s32.f32 %v2484
    %v2492 = vmul.f32 %v2491, %v2489
    %v2493 = vxor.u32 %v2492, 2147483648
    %v2494 = vsel %vm2411, %v2493, %v2492
    %v2495 = vsub.s32 4, %v2471
    %v2496 = vsel %vm2411, %v2495, %v2471
    %v2497 = vsel %vm2410, %v674, %v2494
    %v2498 = vsel %vm2410, 0, %v2496
    %v2499 = vcosq.f32.pop %v2497
    %v2500 = vsinq.f32.pop %v2497
    %vm2501 = vweird.f32 %v674
    %v2502 = vadd.s32 %v2498, 3
    %v2503 = vand.u32 %v2502, 3
    %vm2504 = vcmp.lt.s32.totalorder %v2503, 2
    %vm2505 = vcmp.eq.s32.totalorder %v2503, 0
    %v2506 = vxor.u32 %v2500, 2147483648
    %v2507 = vsel %vm2505, %v2499, %v2506
    %vm2508 = vcmp.eq.s32.totalorder %v2503, 2
    %v2509 = vxor.u32 %v2499, 2147483648
    %v2510 = vsel %vm2508, %v2509, %v2500
    %v2511 = vsel %vm2504, %v2507, %v2510
    %v2512 = vsel %vm2501, nan, %v2511
    %v2513 = vand.u32 2147483647, %v1215
    %vm2514 = vcmp.le.f32.partialorder %v2513, 0.7853982
    %vm2515 = vcmp.lt.s32.totalorder %v1215, 0
    %v2516 = vand.u32 %v1215, 2139095040
    %v2517 = vshrl.u32 %v2516, 23
    %v2518 = vsub.s32 %v2517, 127
    %v2519 = vand.u32 2147483647, %v1215
    %v2520 = vand.u32 %v2519, 8388607
    %v2521 = vor.u32 %v2520, 8388608
    %v2522 = vsub.s32 0, %v2521
    %v2523 = vadd.s32 %v2518, 1
    %vm2524 = vcmp.gt.s32.totalorder %v2523, 0
    %v2525 = vsel %vm2524, %v2523, 0
    %v2526 = vshrl.u32 %v2525, 5
    %v2527 = vand.u32 %v2525, 31
    %v2528 = vsub.s32 32, %v2527
    %v2529 = vshrl.u32 683565275, %v2528
    %v2530 = vshll.u32 683565275, %v2527
    %v2531 = vshrl.u32 2475754826, %v2528
    %v2532 = vor.u32 %v2530, %v2531
    %v2533 = vshll.u32 2475754826, %v2527
    %v2534 = vshrl.u32 2131351028, %v2528
    %v2535 = vor.u32 %v2533, %v2534
    %v2536 = vshll.u32 2131351028, %v2527
    %v2537 = vshrl.u32 2102212464, %v2528
    %v2538 = vor.u32 %v2536, %v2537
    %v2539 = vshll.u32 2102212464, %v2527
    %v2540 = vshrl.u32 920167782, %v2528
    %v2541 = vor.u32 %v2539, %v2540
    %v2542 = vshll.u32 920167782, %v2527
    %v2543 = vshrl.u32 1326507024, %v2528
    %v2544 = vor.u32 %v2542, %v2543
    %vm2545 = vcmp.lt.s32.totalorder %v2526, 1
    %vm2546 = vcmp.lt.s32.totalorder %v2526, 2
    %vm2547 = vcmp.lt.s32.totalorder %v2526, 3
    %vm2548 = vcmp.lt.s32.totalorder %v2526, 4
    %v2549 = vsel %vm2545, %v2529, %v2532
    %v2550 = vsel %vm2548, %v2538, 2102212464
    %v2551 = vsel %vm2547, %v2535, %v2550
    %v2552 = vsel %vm2546, %v2549, %v2551
    %v2553 = vsel %vm2545, %v2532, %v2535
    %v2554 = vsel %vm2548, %v2541, 920167782
    %v2555 = vsel %vm2547, %v2538, %v2554
    %v2556 = vsel %vm2546, %v2553, %v2555
    %v2557 = vsel %vm2545, %v2535, %v2538
    %v2558 = vsel %vm2548, %v2544, 1326507024
    %v2559 = vsel %vm2547, %v2541, %v2558
    %v2560 = vsel %vm2546, %v2557, %v2559
    %v2561 = vshll.u32 %v2521, 8
    %v2562 = vmul.u32.u64.compose %v2561, %v2560
    %v2563 = vextract.low.u32 %v2562
    %v2564 = vextract.high.u32 %v2562
    %v2565 = vmul.u32.u64.compose %v2561, %v2556
    %v2566 = vextract.low.u32 %v2565
    %v2567 = vextract.high.u32 %v2565
    %v2568 = vmul.u32 %v2561, %v2552
    %v2569 = vadd.s32 %v2564, %v2566
    %vm2570 = vc.u32 %v2564, %v2566
    %v2571 = vadd.s32 %v2567, 1
    %v2572 = vsel %vm2570, %v2571, %v2567
    %v2573 = vadd.s32 %v2568, %v2572
    %v2574 = vadd.s32 %v2573, 536870912
    %v2575 = vshrl.u32 %v2574, 30
    %v2576 = vshll.u32 %v2575, 30
    %v2577 = vsub.s32 %v2573, %v2576
    %vm2578 = vcmp.lt.s32.totalorder %v2577, 0
    %v2579 = vsub.s32 0, %v2577
    %v2580 = vsel %vm2578, %v2579, %v2577
    %v2581 = vclz %v2580
    %v2582 = vsub.s32 %v2581, 2
    %vm2583 = vcmp.gt.s32.totalorder 0, %v2582
    %v2584 = vsel %vm2583, 0, %v2582
    %v2585 = vsub.s32 32, %v2584
    %v2586 = vshll.u32 %v2577, %v2584
    %v2587 = vshrl.u32 %v2569, %v2585
    %v2588 = vor.u32 %v2586, %v2587
    %v2589 = vsub.s32 4294967266, %v2584
    %v2590 = vadd.s32 %v2589, 127
    %v2591 = vshll.u32 %v2590, 23
    %v2592 = vor.u32 4788187, %v2591
    %v2593 = vand.u32 2147483647, %v2592
    %v2595 = vcvt.s32.f32 %v2588
    %v2596 = vmul.f32 %v2595, %v2593
    %v2597 = vxor.u32 %v2596, 2147483648
    %v2598 = vsel %vm2515, %v2597, %v2596
    %v2599 = vsub.s32 4, %v2575
    %v2600 = vsel %vm2515, %v2599, %v2575
    %v2601 = vsel %vm2514, %v1215, %v2598
    %v2602 = vsel %vm2514, 0, %v2600
    %v2603 = vcosq.f32.pop %v2601
    %v2604 = vsinq.f32.pop %v2601
    %vm2605 = vweird.f32 %v1215
    %v2606 = vadd.s32 %v2602, 3
    %v2607 = vand.u32 %v2606, 3
    %vm2608 = vcmp.lt.s32.totalorder %v2607, 2
    %vm2609 = vcmp.eq.s32.totalorder %v2607, 0
    %v2610 = vxor.u32 %v2604, 2147483648
    %v2611 = vsel %vm2609, %v2603, %v2610
    %vm2612 = vcmp.eq.s32.totalorder %v2607, 2
    %v2613 = vxor.u32 %v2603, 2147483648
    %v2614 = vsel %vm2612, %v2613, %v2604
    %v2615 = vsel %vm2608, %v2611, %v2614
    %v2616 = vsel %vm2605, nan, %v2615
    %v2617 = vand.u32 2147483647, %v1217
    %vm2618 = vcmp.le.f32.partialorder %v2617, 0.7853982
    %vm2619 = vcmp.lt.s32.totalorder %v1217, 0
    %v2620 = vand.u32 %v1217, 2139095040
    %v2621 = vshrl.u32 %v2620, 23
    %v2622 = vsub.s32 %v2621, 127
    %v2623 = vand.u32 2147483647, %v1217
    %v2624 = vand.u32 %v2623, 8388607
    %v2625 = vor.u32 %v2624, 8388608
    %v2626 = vsub.s32 0, %v2625
    %v2627 = vadd.s32 %v2622, 1
    %vm2628 = vcmp.gt.s32.totalorder %v2627, 0
    %v2629 = vsel %vm2628, %v2627, 0
    %v2630 = vshrl.u32 %v2629, 5
    %v2631 = vand.u32 %v2629, 31
    %v2632 = vsub.s32 32, %v2631
    %v2633 = vshrl.u32 683565275, %v2632
    %v2634 = vshll.u32 683565275, %v2631
    %v2635 = vshrl.u32 2475754826, %v2632
    %v2636 = vor.u32 %v2634, %v2635
    %v2637 = vshll.u32 2475754826, %v2631
    %v2638 = vshrl.u32 2131351028, %v2632
    %v2639 = vor.u32 %v2637, %v2638
    %v2640 = vshll.u32 2131351028, %v2631
    %v2641 = vshrl.u32 2102212464, %v2632
    %v2642 = vor.u32 %v2640, %v2641
    %v2643 = vshll.u32 2102212464, %v2631
    %v2644 = vshrl.u32 920167782, %v2632
    %v2645 = vor.u32 %v2643, %v2644
    %v2646 = vshll.u32 920167782, %v2631
    %v2647 = vshrl.u32 1326507024, %v2632
    %v2648 = vor.u32 %v2646, %v2647
    %vm2649 = vcmp.lt.s32.totalorder %v2630, 1
    %vm2650 = vcmp.lt.s32.totalorder %v2630, 2
    %vm2651 = vcmp.lt.s32.totalorder %v2630, 3
    %vm2652 = vcmp.lt.s32.totalorder %v2630, 4
    %v2653 = vsel %vm2649, %v2633, %v2636
    %v2654 = vsel %vm2652, %v2642, 2102212464
    %v2655 = vsel %vm2651, %v2639, %v2654
    %v2656 = vsel %vm2650, %v2653, %v2655
    %v2657 = vsel %vm2649, %v2636, %v2639
    %v2658 = vsel %vm2652, %v2645, 920167782
    %v2659 = vsel %vm2651, %v2642, %v2658
    %v2660 = vsel %vm2650, %v2657, %v2659
    %v2661 = vsel %vm2649, %v2639, %v2642
    %v2662 = vsel %vm2652, %v2648, 1326507024
    %v2663 = vsel %vm2651, %v2645, %v2662
    %v2664 = vsel %vm2650, %v2661, %v2663
    %v2665 = vshll.u32 %v2625, 8
    %v2666 = vmul.u32.u64.compose %v2665, %v2664
    %v2667 = vextract.low.u32 %v2666
    %v2668 = vextract.high.u32 %v2666
    %v2669 = vmul.u32.u64.compose %v2665, %v2660
    %v2670 = vextract.low.u32 %v2669
    %v2671 = vextract.high.u32 %v2669
    %v2672 = vmul.u32 %v2665, %v2656
    %v2673 = vadd.s32 %v2668, %v2670
    %vm2674 = vc.u32 %v2668, %v2670
    %v2675 = vadd.s32 %v2671, 1
    %v2676 = vsel %vm2674, %v2675, %v2671
    %v2677 = vadd.s32 %v2672, %v2676
    %v2678 = vadd.s32 %v2677, 536870912
    %v2679 = vshrl.u32 %v2678, 30
    %v2680 = vshll.u32 %v2679, 30
    %v2681 = vsub.s32 %v2677, %v2680
    %vm2682 = vcmp.lt.s32.totalorder %v2681, 0
    %v2683 = vsub.s32 0, %v2681
    %v2684 = vsel %vm2682, %v2683, %v2681
    %v2685 = vclz %v2684
    %v2686 = vsub.s32 %v2685, 2
    %vm2687 = vcmp.gt.s32.totalorder 0, %v2686
    %v2688 = vsel %vm2687, 0, %v2686
    %v2689 = vsub.s32 32, %v2688
    %v2690 = vshll.u32 %v2681, %v2688
    %v2691 = vshrl.u32 %v2673, %v2689
    %v2692 = vor.u32 %v2690, %v2691
    %v2693 = vsub.s32 4294967266, %v2688
    %v2694 = vadd.s32 %v2693, 127
    %v2695 = vshll.u32 %v2694, 23
    %v2696 = vor.u32 4788187, %v2695
    %v2697 = vand.u32 2147483647, %v2696
    %v2699 = vcvt.s32.f32 %v2692
    %v2700 = vmul.f32 %v2699, %v2697
    %v2701 = vxor.u32 %v2700, 2147483648
    %v2702 = vsel %vm2619, %v2701, %v2700
    %v2703 = vsub.s32 4, %v2679
    %v2704 = vsel %vm2619, %v2703, %v2679
    %v2705 = vsel %vm2618, %v1217, %v2702
    %v2706 = vsel %vm2618, 0, %v2704
    %v2707 = vcosq.f32.pop %v2705
    %v2708 = vsinq.f32.pop %v2705
    %vm2709 = vweird.f32 %v1217
    %v2710 = vadd.s32 %v2706, 3
    %v2711 = vand.u32 %v2710, 3
    %vm2712 = vcmp.lt.s32.totalorder %v2711, 2
    %vm2713 = vcmp.eq.s32.totalorder %v2711, 0
    %v2714 = vxor.u32 %v2708, 2147483648
    %v2715 = vsel %vm2713, %v2707, %v2714
    %vm2716 = vcmp.eq.s32.totalorder %v2711, 2
    %v2717 = vxor.u32 %v2707, 2147483648
    %v2718 = vsel %vm2716, %v2717, %v2708
    %v2719 = vsel %vm2712, %v2715, %v2718
    %v2720 = vsel %vm2709, nan, %v2719
    %v2721 = vand.u32 2147483647, %v1758
    %vm2722 = vcmp.le.f32.partialorder %v2721, 0.7853982
    %vm2723 = vcmp.lt.s32.totalorder %v1758, 0
    %v2724 = vand.u32 %v1758, 2139095040
    %v2725 = vshrl.u32 %v2724, 23
    %v2726 = vsub.s32 %v2725, 127
    %v2727 = vand.u32 2147483647, %v1758
    %v2728 = vand.u32 %v2727, 8388607
    %v2729 = vor.u32 %v2728, 8388608
    %v2730 = vsub.s32 0, %v2729
    %v2731 = vadd.s32 %v2726, 1
    %vm2732 = vcmp.gt.s32.totalorder %v2731, 0
    %v2733 = vsel %vm2732, %v2731, 0
    %v2734 = vshrl.u32 %v2733, 5
    %v2735 = vand.u32 %v2733, 31
    %v2736 = vsub.s32 32, %v2735
    %v2737 = vshrl.u32 683565275, %v2736
    %v2738 = vshll.u32 683565275, %v2735
    %v2739 = vshrl.u32 2475754826, %v2736
    %v2740 = vor.u32 %v2738, %v2739
    %v2741 = vshll.u32 2475754826, %v2735
    %v2742 = vshrl.u32 2131351028, %v2736
    %v2743 = vor.u32 %v2741, %v2742
    %v2744 = vshll.u32 2131351028, %v2735
    %v2745 = vshrl.u32 2102212464, %v2736
    %v2746 = vor.u32 %v2744, %v2745
    %v2747 = vshll.u32 2102212464, %v2735
    %v2748 = vshrl.u32 920167782, %v2736
    %v2749 = vor.u32 %v2747, %v2748
    %v2750 = vshll.u32 920167782, %v2735
    %v2751 = vshrl.u32 1326507024, %v2736
    %v2752 = vor.u32 %v2750, %v2751
    %vm2753 = vcmp.lt.s32.totalorder %v2734, 1
    %vm2754 = vcmp.lt.s32.totalorder %v2734, 2
    %vm2755 = vcmp.lt.s32.totalorder %v2734, 3
    %vm2756 = vcmp.lt.s32.totalorder %v2734, 4
    %v2757 = vsel %vm2753, %v2737, %v2740
    %v2758 = vsel %vm2756, %v2746, 2102212464
    %v2759 = vsel %vm2755, %v2743, %v2758
    %v2760 = vsel %vm2754, %v2757, %v2759
    %v2761 = vsel %vm2753, %v2740, %v2743
    %v2762 = vsel %vm2756, %v2749, 920167782
    %v2763 = vsel %vm2755, %v2746, %v2762
    %v2764 = vsel %vm2754, %v2761, %v2763
    %v2765 = vsel %vm2753, %v2743, %v2746
    %v2766 = vsel %vm2756, %v2752, 1326507024
    %v2767 = vsel %vm2755, %v2749, %v2766
    %v2768 = vsel %vm2754, %v2765, %v2767
    %v2769 = vshll.u32 %v2729, 8
    %v2770 = vmul.u32.u64.compose %v2769, %v2768
    %v2771 = vextract.low.u32 %v2770
    %v2772 = vextract.high.u32 %v2770
    %v2773 = vmul.u32.u64.compose %v2769, %v2764
    %v2774 = vextract.low.u32 %v2773
    %v2775 = vextract.high.u32 %v2773
    %v2776 = vmul.u32 %v2769, %v2760
    %v2777 = vadd.s32 %v2772, %v2774
    %vm2778 = vc.u32 %v2772, %v2774
    %v2779 = vadd.s32 %v2775, 1
    %v2780 = vsel %vm2778, %v2779, %v2775
    %v2781 = vadd.s32 %v2776, %v2780
    %v2782 = vadd.s32 %v2781, 536870912
    %v2783 = vshrl.u32 %v2782, 30
    %v2784 = vshll.u32 %v2783, 30
    %v2785 = vsub.s32 %v2781, %v2784
    %vm2786 = vcmp.lt.s32.totalorder %v2785, 0
    %v2787 = vsub.s32 0, %v2785
    %v2788 = vsel %vm2786, %v2787, %v2785
    %v2789 = vclz %v2788
    %v2790 = vsub.s32 %v2789, 2
    %vm2791 = vcmp.gt.s32.totalorder 0, %v2790
    %v2792 = vsel %vm2791, 0, %v2790
    %v2793 = vsub.s32 32, %v2792
    %v2794 = vshll.u32 %v2785, %v2792
    %v2795 = vshrl.u32 %v2777, %v2793
    %v2796 = vor.u32 %v2794, %v2795
    %v2797 = vsub.s32 4294967266, %v2792
    %v2798 = vadd.s32 %v2797, 127
    %v2799 = vshll.u32 %v2798, 23
    %v2800 = vor.u32 4788187, %v2799
    %v2801 = vand.u32 2147483647, %v2800
    %v2803 = vcvt.s32.f32 %v2796
    %v2804 = vmul.f32 %v2803, %v2801
    %v2805 = vxor.u32 %v2804, 2147483648
    %v2806 = vsel %vm2723, %v2805, %v2804
    %v2807 = vsub.s32 4, %v2783
    %v2808 = vsel %vm2723, %v2807, %v2783
    %v2809 = vsel %vm2722, %v1758, %v2806
    %v2810 = vsel %vm2722, 0, %v2808
    %v2811 = vcosq.f32.pop %v2809
    %v2812 = vsinq.f32.pop %v2809
    %vm2813 = vweird.f32 %v1758
    %v2814 = vadd.s32 %v2810, 3
    %v2815 = vand.u32 %v2814, 3
    %vm2816 = vcmp.lt.s32.totalorder %v2815, 2
    %vm2817 = vcmp.eq.s32.totalorder %v2815, 0
    %v2818 = vxor.u32 %v2812, 2147483648
    %v2819 = vsel %vm2817, %v2811, %v2818
    %vm2820 = vcmp.eq.s32.totalorder %v2815, 2
    %v2821 = vxor.u32 %v2811, 2147483648
    %v2822 = vsel %vm2820, %v2821, %v2812
    %v2823 = vsel %vm2816, %v2819, %v2822
    %v2824 = vsel %vm2813, nan, %v2823
    %v2825 = vand.u32 2147483647, %v1760
    %vm2826 = vcmp.le.f32.partialorder %v2825, 0.7853982
    %vm2827 = vcmp.lt.s32.totalorder %v1760, 0
    %v2828 = vand.u32 %v1760, 2139095040
    %v2829 = vshrl.u32 %v2828, 23
    %v2830 = vsub.s32 %v2829, 127
    %v2831 = vand.u32 2147483647, %v1760
    %v2832 = vand.u32 %v2831, 8388607
    %v2833 = vor.u32 %v2832, 8388608
    %v2834 = vsub.s32 0, %v2833
    %v2835 = vadd.s32 %v2830, 1
    %vm2836 = vcmp.gt.s32.totalorder %v2835, 0
    %v2837 = vsel %vm2836, %v2835, 0
    %v2838 = vshrl.u32 %v2837, 5
    %v2839 = vand.u32 %v2837, 31
    %v2840 = vsub.s32 32, %v2839
    %v2841 = vshrl.u32 683565275, %v2840
    %v2842 = vshll.u32 683565275, %v2839
    %v2843 = vshrl.u32 2475754826, %v2840
    %v2844 = vor.u32 %v2842, %v2843
    %v2845 = vshll.u32 2475754826, %v2839
    %v2846 = vshrl.u32 2131351028, %v2840
    %v2847 = vor.u32 %v2845, %v2846
    %v2848 = vshll.u32 2131351028, %v2839
    %v2849 = vshrl.u32 2102212464, %v2840
    %v2850 = vor.u32 %v2848, %v2849
    %v2851 = vshll.u32 2102212464, %v2839
    %v2852 = vshrl.u32 920167782, %v2840
    %v2853 = vor.u32 %v2851, %v2852
    %v2854 = vshll.u32 920167782, %v2839
    %v2855 = vshrl.u32 1326507024, %v2840
    %v2856 = vor.u32 %v2854, %v2855
    %vm2857 = vcmp.lt.s32.totalorder %v2838, 1
    %vm2858 = vcmp.lt.s32.totalorder %v2838, 2
    %vm2859 = vcmp.lt.s32.totalorder %v2838, 3
    %vm2860 = vcmp.lt.s32.totalorder %v2838, 4
    %v2861 = vsel %vm2857, %v2841, %v2844
    %v2862 = vsel %vm2860, %v2850, 2102212464
    %v2863 = vsel %vm2859, %v2847, %v2862
    %v2864 = vsel %vm2858, %v2861, %v2863
    %v2865 = vsel %vm2857, %v2844, %v2847
    %v2866 = vsel %vm2860, %v2853, 920167782
    %v2867 = vsel %vm2859, %v2850, %v2866
    %v2868 = vsel %vm2858, %v2865, %v2867
    %v2869 = vsel %vm2857, %v2847, %v2850
    %v2870 = vsel %vm2860, %v2856, 1326507024
    %v2871 = vsel %vm2859, %v2853, %v2870
    %v2872 = vsel %vm2858, %v2869, %v2871
    %v2873 = vshll.u32 %v2833, 8
    %v2874 = vmul.u32.u64.compose %v2873, %v2872
    %v2875 = vextract.low.u32 %v2874
    %v2876 = vextract.high.u32 %v2874
    %v2877 = vmul.u32.u64.compose %v2873, %v2868
    %v2878 = vextract.low.u32 %v2877
    %v2879 = vextract.high.u32 %v2877
    %v2880 = vmul.u32 %v2873, %v2864
    %v2881 = vadd.s32 %v2876, %v2878
    %vm2882 = vc.u32 %v2876, %v2878
    %v2883 = vadd.s32 %v2879, 1
    %v2884 = vsel %vm2882, %v2883, %v2879
    %v2885 = vadd.s32 %v2880, %v2884
    %v2886 = vadd.s32 %v2885, 536870912
    %v2887 = vshrl.u32 %v2886, 30
    %v2888 = vshll.u32 %v2887, 30
    %v2889 = vsub.s32 %v2885, %v2888
    %vm2890 = vcmp.lt.s32.totalorder %v2889, 0
    %v2891 = vsub.s32 0, %v2889
    %v2892 = vsel %vm2890, %v2891, %v2889
    %v2893 = vclz %v2892
    %v2894 = vsub.s32 %v2893, 2
    %vm2895 = vcmp.gt.s32.totalorder 0, %v2894
    %v2896 = vsel %vm2895, 0, %v2894
    %v2897 = vsub.s32 32, %v2896
    %v2898 = vshll.u32 %v2889, %v2896
    %v2899 = vshrl.u32 %v2881, %v2897
    %v2900 = vor.u32 %v2898, %v2899
    %v2901 = vsub.s32 4294967266, %v2896
    %v2902 = vadd.s32 %v2901, 127
    %v2903 = vshll.u32 %v2902, 23
    %v2904 = vor.u32 4788187, %v2903
    %v2905 = vand.u32 2147483647, %v2904
    %v2907 = vcvt.s32.f32 %v2900
    %v2908 = vmul.f32 %v2907, %v2905
    %v2909 = vxor.u32 %v2908, 2147483648
    %v2910 = vsel %vm2827, %v2909, %v2908
    %v2911 = vsub.s32 4, %v2887
    %v2912 = vsel %vm2827, %v2911, %v2887
    %v2913 = vsel %vm2826, %v1760, %v2910
    %v2914 = vsel %vm2826, 0, %v2912
    %v2915 = vcosq.f32.pop %v2913
    %v2916 = vsinq.f32.pop %v2913
    %vm2917 = vweird.f32 %v1760
    %v2918 = vadd.s32 %v2914, 3
    %v2919 = vand.u32 %v2918, 3
    %vm2920 = vcmp.lt.s32.totalorder %v2919, 2
    %vm2921 = vcmp.eq.s32.totalorder %v2919, 0
    %v2922 = vxor.u32 %v2916, 2147483648
    %v2923 = vsel %vm2921, %v2915, %v2922
    %vm2924 = vcmp.eq.s32.totalorder %v2919, 2
    %v2925 = vxor.u32 %v2915, 2147483648
    %v2926 = vsel %vm2924, %v2925, %v2916
    %v2927 = vsel %vm2920, %v2923, %v2926
    %v2928 = vsel %vm2917, nan, %v2927
    %v2929 = vand.u32 2147483647, %v2301
    %vm2930 = vcmp.le.f32.partialorder %v2929, 0.7853982
    %vm2931 = vcmp.lt.s32.totalorder %v2301, 0
    %v2932 = vand.u32 %v2301, 2139095040
    %v2933 = vshrl.u32 %v2932, 23
    %v2934 = vsub.s32 %v2933, 127
    %v2935 = vand.u32 2147483647, %v2301
    %v2936 = vand.u32 %v2935, 8388607
    %v2937 = vor.u32 %v2936, 8388608
    %v2938 = vsub.s32 0, %v2937
    %v2939 = vadd.s32 %v2934, 1
    %vm2940 = vcmp.gt.s32.totalorder %v2939, 0
    %v2941 = vsel %vm2940, %v2939, 0
    %v2942 = vshrl.u32 %v2941, 5
    %v2943 = vand.u32 %v2941, 31
    %v2944 = vsub.s32 32, %v2943
    %v2945 = vshrl.u32 683565275, %v2944
    %v2946 = vshll.u32 683565275, %v2943
    %v2947 = vshrl.u32 2475754826, %v2944
    %v2948 = vor.u32 %v2946, %v2947
    %v2949 = vshll.u32 2475754826, %v2943
    %v2950 = vshrl.u32 2131351028, %v2944
    %v2951 = vor.u32 %v2949, %v2950
    %v2952 = vshll.u32 2131351028, %v2943
    %v2953 = vshrl.u32 2102212464, %v2944
    %v2954 = vor.u32 %v2952, %v2953
    %v2955 = vshll.u32 2102212464, %v2943
    %v2956 = vshrl.u32 920167782, %v2944
    %v2957 = vor.u32 %v2955, %v2956
    %v2958 = vshll.u32 920167782, %v2943
    %v2959 = vshrl.u32 1326507024, %v2944
    %v2960 = vor.u32 %v2958, %v2959
    %vm2961 = vcmp.lt.s32.totalorder %v2942, 1
    %vm2962 = vcmp.lt.s32.totalorder %v2942, 2
    %vm2963 = vcmp.lt.s32.totalorder %v2942, 3
    %vm2964 = vcmp.lt.s32.totalorder %v2942, 4
    %v2965 = vsel %vm2961, %v2945, %v2948
    %v2966 = vsel %vm2964, %v2954, 2102212464
    %v2967 = vsel %vm2963, %v2951, %v2966
    %v2968 = vsel %vm2962, %v2965, %v2967
    %v2969 = vsel %vm2961, %v2948, %v2951
    %v2970 = vsel %vm2964, %v2957, 920167782
    %v2971 = vsel %vm2963, %v2954, %v2970
    %v2972 = vsel %vm2962, %v2969, %v2971
    %v2973 = vsel %vm2961, %v2951, %v2954
    %v2974 = vsel %vm2964, %v2960, 1326507024
    %v2975 = vsel %vm2963, %v2957, %v2974
    %v2976 = vsel %vm2962, %v2973, %v2975
    %v2977 = vshll.u32 %v2937, 8
    %v2978 = vmul.u32.u64.compose %v2977, %v2976
    %v2979 = vextract.low.u32 %v2978
    %v2980 = vextract.high.u32 %v2978
    %v2981 = vmul.u32.u64.compose %v2977, %v2972
    %v2982 = vextract.low.u32 %v2981
    %v2983 = vextract.high.u32 %v2981
    %v2984 = vmul.u32 %v2977, %v2968
    %v2985 = vadd.s32 %v2980, %v2982
    %vm2986 = vc.u32 %v2980, %v2982
    %v2987 = vadd.s32 %v2983, 1
    %v2988 = vsel %vm2986, %v2987, %v2983
    %v2989 = vadd.s32 %v2984, %v2988
    %v2990 = vadd.s32 %v2989, 536870912
    %v2991 = vshrl.u32 %v2990, 30
    %v2992 = vshll.u32 %v2991, 30
    %v2993 = vsub.s32 %v2989, %v2992
    %vm2994 = vcmp.lt.s32.totalorder %v2993, 0
    %v2995 = vsub.s32 0, %v2993
    %v2996 = vsel %vm2994, %v2995, %v2993
    %v2997 = vclz %v2996
    %v2998 = vsub.s32 %v2997, 2
    %vm2999 = vcmp.gt.s32.totalorder 0, %v2998
    %v3000 = vsel %vm2999, 0, %v2998
    %v3001 = vsub.s32 32, %v3000
    %v3002 = vshll.u32 %v2993, %v3000
    %v3003 = vshrl.u32 %v2985, %v3001
    %v3004 = vor.u32 %v3002, %v3003
    %v3005 = vsub.s32 4294967266, %v3000
    %v3006 = vadd.s32 %v3005, 127
    %v3007 = vshll.u32 %v3006, 23
    %v3008 = vor.u32 4788187, %v3007
    %v3009 = vand.u32 2147483647, %v3008
    %v3011 = vcvt.s32.f32 %v3004
    %v3012 = vmul.f32 %v3011, %v3009
    %v3013 = vxor.u32 %v3012, 2147483648
    %v3014 = vsel %vm2931, %v3013, %v3012
    %v3015 = vsub.s32 4, %v2991
    %v3016 = vsel %vm2931, %v3015, %v2991
    %v3017 = vsel %vm2930, %v2301, %v3014
    %v3018 = vsel %vm2930, 0, %v3016
    %v3019 = vcosq.f32.pop %v3017
    %v3020 = vsinq.f32.pop %v3017
    %vm3021 = vweird.f32 %v2301
    %v3022 = vadd.s32 %v3018, 3
    %v3023 = vand.u32 %v3022, 3
    %vm3024 = vcmp.lt.s32.totalorder %v3023, 2
    %vm3025 = vcmp.eq.s32.totalorder %v3023, 0
    %v3026 = vxor.u32 %v3020, 2147483648
    %v3027 = vsel %vm3025, %v3019, %v3026
    %vm3028 = vcmp.eq.s32.totalorder %v3023, 2
    %v3029 = vxor.u32 %v3019, 2147483648
    %v3030 = vsel %vm3028, %v3029, %v3020
    %v3031 = vsel %vm3024, %v3027, %v3030
    %v3032 = vsel %vm3021, nan, %v3031
    %v3033 = vand.u32 2147483647, %v2303
    %vm3034 = vcmp.le.f32.partialorder %v3033, 0.7853982
    %vm3035 = vcmp.lt.s32.totalorder %v2303, 0
    %v3036 = vand.u32 %v2303, 2139095040
    %v3037 = vshrl.u32 %v3036, 23
    %v3038 = vsub.s32 %v3037, 127
    %v3039 = vand.u32 2147483647, %v2303
    %v3040 = vand.u32 %v3039, 8388607
    %v3041 = vor.u32 %v3040, 8388608
    %v3042 = vsub.s32 0, %v3041
    %v3043 = vadd.s32 %v3038, 1
    %vm3044 = vcmp.gt.s32.totalorder %v3043, 0
    %v3045 = vsel %vm3044, %v3043, 0
    %v3046 = vshrl.u32 %v3045, 5
    %v3047 = vand.u32 %v3045, 31
    %v3048 = vsub.s32 32, %v3047
    %v3049 = vshrl.u32 683565275, %v3048
    %v3050 = vshll.u32 683565275, %v3047
    %v3051 = vshrl.u32 2475754826, %v3048
    %v3052 = vor.u32 %v3050, %v3051
    %v3053 = vshll.u32 2475754826, %v3047
    %v3054 = vshrl.u32 2131351028, %v3048
    %v3055 = vor.u32 %v3053, %v3054
    %v3056 = vshll.u32 2131351028, %v3047
    %v3057 = vshrl.u32 2102212464, %v3048
    %v3058 = vor.u32 %v3056, %v3057
    %v3059 = vshll.u32 2102212464, %v3047
    %v3060 = vshrl.u32 920167782, %v3048
    %v3061 = vor.u32 %v3059, %v3060
    %v3062 = vshll.u32 920167782, %v3047
    %v3063 = vshrl.u32 1326507024, %v3048
    %v3064 = vor.u32 %v3062, %v3063
    %vm3065 = vcmp.lt.s32.totalorder %v3046, 1
    %vm3066 = vcmp.lt.s32.totalorder %v3046, 2
    %vm3067 = vcmp.lt.s32.totalorder %v3046, 3
    %vm3068 = vcmp.lt.s32.totalorder %v3046, 4
    %v3069 = vsel %vm3065, %v3049, %v3052
    %v3070 = vsel %vm3068, %v3058, 2102212464
    %v3071 = vsel %vm3067, %v3055, %v3070
    %v3072 = vsel %vm3066, %v3069, %v3071
    %v3073 = vsel %vm3065, %v3052, %v3055
    %v3074 = vsel %vm3068, %v3061, 920167782
    %v3075 = vsel %vm3067, %v3058, %v3074
    %v3076 = vsel %vm3066, %v3073, %v3075
    %v3077 = vsel %vm3065, %v3055, %v3058
    %v3078 = vsel %vm3068, %v3064, 1326507024
    %v3079 = vsel %vm3067, %v3061, %v3078
    %v3080 = vsel %vm3066, %v3077, %v3079
    %v3081 = vshll.u32 %v3041, 8
    %v3082 = vmul.u32.u64.compose %v3081, %v3080
    %v3083 = vextract.low.u32 %v3082
    %v3084 = vextract.high.u32 %v3082
    %v3085 = vmul.u32.u64.compose %v3081, %v3076
    %v3086 = vextract.low.u32 %v3085
    %v3087 = vextract.high.u32 %v3085
    %v3088 = vmul.u32 %v3081, %v3072
    %v3089 = vadd.s32 %v3084, %v3086
    %vm3090 = vc.u32 %v3084, %v3086
    %v3091 = vadd.s32 %v3087, 1
    %v3092 = vsel %vm3090, %v3091, %v3087
    %v3093 = vadd.s32 %v3088, %v3092
    %v3094 = vadd.s32 %v3093, 536870912
    %v3095 = vshrl.u32 %v3094, 30
    %v3096 = vshll.u32 %v3095, 30
    %v3097 = vsub.s32 %v3093, %v3096
    %vm3098 = vcmp.lt.s32.totalorder %v3097, 0
    %v3099 = vsub.s32 0, %v3097
    %v3100 = vsel %vm3098, %v3099, %v3097
    %v3101 = vclz %v3100
    %v3102 = vsub.s32 %v3101, 2
    %vm3103 = vcmp.gt.s32.totalorder 0, %v3102
    %v3104 = vsel %vm3103, 0, %v3102
    %v3105 = vsub.s32 32, %v3104
    %v3106 = vshll.u32 %v3097, %v3104
    %v3107 = vshrl.u32 %v3089, %v3105
    %v3108 = vor.u32 %v3106, %v3107
    %v3109 = vsub.s32 4294967266, %v3104
    %v3110 = vadd.s32 %v3109, 127
    %v3111 = vshll.u32 %v3110, 23
    %v3112 = vor.u32 4788187, %v3111
    %v3113 = vand.u32 2147483647, %v3112
    %v3115 = vcvt.s32.f32 %v3108
    %v3116 = vmul.f32 %v3115, %v3113
    %v3117 = vxor.u32 %v3116, 2147483648
    %v3118 = vsel %vm3035, %v3117, %v3116
    %v3119 = vsub.s32 4, %v3095
    %v3120 = vsel %vm3035, %v3119, %v3095
    %v3121 = vsel %vm3034, %v2303, %v3118
    %v3122 = vsel %vm3034, 0, %v3120
    %v3123 = vcosq.f32.pop %v3121
    %v3124 = vsinq.f32.pop %v3121
    %vm3125 = vweird.f32 %v2303
    %v3126 = vadd.s32 %v3122, 3
    %v3127 = vand.u32 %v3126, 3
    %vm3128 = vcmp.lt.s32.totalorder %v3127, 2
    %vm3129 = vcmp.eq.s32.totalorder %v3127, 0
    %v3130 = vxor.u32 %v3124, 2147483648
    %v3131 = vsel %vm3129, %v3123, %v3130
    %vm3132 = vcmp.eq.s32.totalorder %v3127, 2
    %v3133 = vxor.u32 %v3123, 2147483648
    %v3134 = vsel %vm3132, %v3133, %v3124
    %v3135 = vsel %vm3128, %v3131, %v3134
    %v3136 = vsel %vm3125, nan, %v3135
    %v3137 = vmul.f32 %v2408, 0.25
    %v3138 = vmul.f32 %v2512, 0.25
    %v3139 = vmul.f32 %v2616, 0.25
    %v3140 = vmul.f32 %v2720, 0.25
    %v3141 = vmul.f32 %v2824, 0.25
    %v3142 = vmul.f32 %v2928, 0.25
    %v3143 = vmul.f32 %v3032, 0.25
    %v3144 = vmul.f32 %v3136, 0.25
    %v3153 = vcombine.low %v3137, %v3138
    %v3154 = vcombine.high %v3137, %v3138
    %v3155 = vcombine.low %v3139, %v3140
    %v3156 = vcombine.high %v3139, %v3140
    %v3157 = vcombine.low %v3141, %v3142
    %v3158 = vcombine.high %v3141, %v3142
    %v3159 = vcombine.low %v3143, %v3144
    %v3160 = vcombine.high %v3143, %v3144
    %v3162 = vunpack.c.l.s4 1966171168
    %v3163 = vunpack.c.0.s8 %v3162
    %v3164 = vlaneseq
    %v3165 = vshrl.u32 %v3164, 7
    %v3166 = vsub.s32 %v3163, %v3165
    %v3167 = vrot.slane %v3153, %v3166
    %v3169 = vunpack.c.l.s4 1966171168
    %v3170 = vunpack.c.0.s8 %v3169
    %v3171 = vlaneseq
    %v3172 = vshrl.u32 %v3171, 7
    %v3173 = vsub.s32 %v3170, %v3172
    %v3174 = vrot.slane %v3154, %v3173
    %v3176 = vunpack.c.l.s4 1966171168
    %v3177 = vunpack.c.0.s8 %v3176
    %v3178 = vlaneseq
    %v3179 = vshrl.u32 %v3178, 7
    %v3180 = vsub.s32 %v3177, %v3179
    %v3181 = vrot.slane %v3155, %v3180
    %v3183 = vunpack.c.l.s4 1966171168
    %v3184 = vunpack.c.0.s8 %v3183
    %v3185 = vlaneseq
    %v3186 = vshrl.u32 %v3185, 7
    %v3187 = vsub.s32 %v3184, %v3186
    %v3188 = vrot.slane %v3156, %v3187
    %v3190 = vunpack.c.l.s4 1966171168
    %v3191 = vunpack.c.0.s8 %v3190
    %v3192 = vlaneseq
    %v3193 = vshrl.u32 %v3192, 7
    %v3194 = vsub.s32 %v3191, %v3193
    %v3195 = vrot.slane %v3157, %v3194
    %v3197 = vunpack.c.l.s4 1966171168
    %v3198 = vunpack.c.0.s8 %v3197
    %v3199 = vlaneseq
    %v3200 = vshrl.u32 %v3199, 7
    %v3201 = vsub.s32 %v3198, %v3200
    %v3202 = vrot.slane %v3158, %v3201
    %v3204 = vunpack.c.l.s4 1966171168
    %v3205 = vunpack.c.0.s8 %v3204
    %v3206 = vlaneseq
    %v3207 = vshrl.u32 %v3206, 7
    %v3208 = vsub.s32 %v3205, %v3207
    %v3209 = vrot.slane %v3159, %v3208
    %v3211 = vunpack.c.l.s4 1966171168
    %v3212 = vunpack.c.0.s8 %v3211
    %v3213 = vlaneseq
    %v3214 = vshrl.u32 %v3213, 7
    %v3215 = vsub.s32 %v3212, %v3214
    %v3216 = vrot.slane %v3160, %v3215
    %v3217 = vcombine.low %v3167, %v3181
    %v3218 = vcombine.high %v3167, %v3181
    %v3219 = vcombine.low %v3174, %v3188
    %v3220 = vcombine.high %v3174, %v3188
    %v3221 = vcombine.low %v3195, %v3209
    %v3222 = vcombine.high %v3195, %v3209
    %v3223 = vcombine.low %v3202, %v3216
    %v3224 = vcombine.high %v3202, %v3216
    %v3226 = vunpack.c.l.s4 1966171168
    %v3227 = vunpack.c.0.s8 %v3226
    %v3228 = vlaneseq
    %v3229 = vshrl.u32 %v3228, 7
    %v3230 = vsub.s32 %v3227, %v3229
    %v3231 = vrot.slane %v3217, %v3230
    %v3233 = vunpack.c.l.s4 1966171168
    %v3234 = vunpack.c.0.s8 %v3233
    %v3235 = vlaneseq
    %v3236 = vshrl.u32 %v3235, 7
    %v3237 = vsub.s32 %v3234, %v3236
    %v3238 = vrot.slane %v3219, %v3237
    %v3240 = vunpack.c.l.s4 1966171168
    %v3241 = vunpack.c.0.s8 %v3240
    %v3242 = vlaneseq
    %v3243 = vshrl.u32 %v3242, 7
    %v3244 = vsub.s32 %v3241, %v3243
    %v3245 = vrot.slane %v3218, %v3244
    %v3247 = vunpack.c.l.s4 1966171168
    %v3248 = vunpack.c.0.s8 %v3247
    %v3249 = vlaneseq
    %v3250 = vshrl.u32 %v3249, 7
    %v3251 = vsub.s32 %v3248, %v3250
    %v3252 = vrot.slane %v3220, %v3251
    %v3254 = vunpack.c.l.s4 1966171168
    %v3255 = vunpack.c.0.s8 %v3254
    %v3256 = vlaneseq
    %v3257 = vshrl.u32 %v3256, 7
    %v3258 = vsub.s32 %v3255, %v3257
    %v3259 = vrot.slane %v3221, %v3258
    %v3261 = vunpack.c.l.s4 1966171168
    %v3262 = vunpack.c.0.s8 %v3261
    %v3263 = vlaneseq
    %v3264 = vshrl.u32 %v3263, 7
    %v3265 = vsub.s32 %v3262, %v3264
    %v3266 = vrot.slane %v3223, %v3265
    %v3268 = vunpack.c.l.s4 1966171168
    %v3269 = vunpack.c.0.s8 %v3268
    %v3270 = vlaneseq
    %v3271 = vshrl.u32 %v3270, 7
    %v3272 = vsub.s32 %v3269, %v3271
    %v3273 = vrot.slane %v3222, %v3272
    %v3275 = vunpack.c.l.s4 1966171168
    %v3276 = vunpack.c.0.s8 %v3275
    %v3277 = vlaneseq
    %v3278 = vshrl.u32 %v3277, 7
    %v3279 = vsub.s32 %v3276, %v3278
    %v3280 = vrot.slane %v3224, %v3279
    %v3281 = vcombine.low %v3231, %v3259
    %v3282 = vcombine.high %v3231, %v3259
    %v3283 = vcombine.low %v3238, %v3266
    %v3284 = vcombine.high %v3238, %v3266
    %v3285 = vcombine.low %v3245, %v3273
    %v3286 = vcombine.high %v3245, %v3273
    %v3287 = vcombine.low %v3252, %v3280
    %v3288 = vcombine.high %v3252, %v3280
    %3297 = vst [vmem:[#allocation8] sm:$0xff] %v3281
    %3298 = vst [vmem:[#allocation8 + $0x8] sm:$0xff] %v3285
    %3299 = vst [vmem:[#allocation8 + $0x10] sm:$0xff] %v3282
    %3300 = vst [vmem:[#allocation8 + $0x18] sm:$0xff] %v3286
    %3301 = vst [vmem:[#allocation8 + $0x20] sm:$0xff] %v3283
    %3302 = vst [vmem:[#allocation8 + $0x28] sm:$0xff] %v3287
    %3303 = vst [vmem:[#allocation8 + $0x30] sm:$0xff] %v3284
    %3304 = vst [vmem:[#allocation8 + $0x38] sm:$0xff] %v3288
    // Predicated region
    $region26: #{tpu_custom_call.1} parent=1 // pred_check
      _
    $region27: #{tpu_custom_call.1} parent=1 // pred_check_branch
      %3306 = sbr.rel (0) target = $region29
    $region28: #{tpu_custom_call.1} parent=1 // pred_region
      %s3308 = ssub.s32 1024, 128
      %3309 = vsyncadd [#allocation4], %s3308
      %s3310 = sshll.u32 [#allocation8], 4
      %s3311 = int_to_ptr.vmem [resolvable:$true] %s3310
      %3316 = dma.vmem_to_hbm [thread:$0]  %s3311, 128, %s3, [#allocation4], 128, 128, 8
    $region29: #{tpu_custom_call.1} parent=1 // pred_fallthru
      _
    // Predicated region
    $region30: #{tpu_custom_call.1} parent=1 // pred_check
      _
    $region31: #{tpu_custom_call.1} parent=1 // pred_check_branch
      %3318 = sbr.rel (0) target = $region33
    $region32: #{tpu_custom_call.1} parent=1 // pred_region
      %3319 = dma.done [#allocation4], 1024
    $region33: #{tpu_custom_call.1} parent=1 // pred_fallthru
      _
    %3320 = vsyncpa [#allocation3], 1
    %3321 = vsyncpa [#allocation6], 1
    %3322 = vsyncpa [#allocation4], 1

</llo_original>
